<compile_context>
chip_gen: v5e
topology: v5e:2x2
jax: 0.10.0
libtpu: 0.0.40
codegen_flags: <defaults>
</compile_context>

<pallas_src>
import functools

import jax
import jax.numpy as jnp
from jax import lax
from jax.experimental import pallas as pl
from jax.experimental.pallas import tpu as pltpu

# Scaled-down analog of (input_size=600, hidden_size=1000, 4000, 1000).
B, T, D_IN, H, K = 2, 8, 16, 32, 2   # batch, seq, word-vec dim, hidden, #cue ids
L1, L2 = 128, 64                     # analog of layer1-out=4000, layer2-out=1000

_LANE = 128      # vreg lane width
_SUBLANE = 8     # f32 sublane count


def _ceil_to(n, m):
    return ((n + m - 1) // m) * m


def _pad_to(a, shape):
    """Zero-pad `a` on the trailing edges up to `shape`."""
    out = jnp.zeros(shape, a.dtype)
    return out.at[tuple(slice(0, s) for s in a.shape)].set(a)


def _pad_gate_cols(w, h, hp):
    """(r, 4h) -> (r, 4hp): pad each i/f/g/o gate block separately to hp cols.

    NOTE: at toy scale (H=32 -> HP=128) this inflates gate work 4x; at full
    scale (1000 -> 1024) the waste is ~2.4%, so measured bottlenecks here do
    not reflect full scale.  Correctness is unaffected.
    """
    out = jnp.zeros((w.shape[0], 4 * hp), w.dtype)
    for g in range(4):
        out = out.at[:, g * hp:g * hp + h].set(w[:, g * h:(g + 1) * h])
    return out


def cue_word_select_kernel(
    # ---- inputs -------------------------------------------------------------
    x_ref,        # (T*BP, DP)   bf16  time-major, batch/lane-padded, flattened
    w1x_ref,      # (DP, 4*HP)   bf16  encoder1 weight acting on data
    w1h_ref,      # (HP, 4*HP)   bf16  fused (W_ih1 h-part + W_hh1)
    b1_ref,       # (1, 4*HP)    f32   b_ih1 + b_hh1 (gate-padded)
    w2ht_ref,     # (HP, 4*HP)   bf16  W_ih2 part acting on h_t
    w2h2_ref,     # (HP, 4*HP)   bf16  fused (W_ih2 h_t2-part + W_hh2)
    b2_ref,       # (1, 4*HP)    f32   b_ih2 + b_hh2 (gate-padded)
    wl1a_hbm,     # (HP, L1P)    bf16  HBM: layer1 weight acting on h_t
    wl1b_hbm,     # (HP, L1P)    bf16  HBM: layer1 weight acting on tracker
    wl2_hbm,      # (L1P, L2P)   bf16  HBM: layer2 weight
    bl1_ref,      # (1, L1P)     f32
    bl2_ref,      # (1, L2P)     f32
    trk_ref,      # (BP, HP)     bf16  topic-tracker one-hot (padded)
    # ---- outputs ------------------------------------------------------------
    soft_ref,     # (BP, L2P)    f32   softmax(layer2 out, dim=0)
    states_ref,   # (4, BP, HP)  f32   packed h_t, c_t, h_t2, c_t2
    # ---- scratch ------------------------------------------------------------
    wl1a_buf,     # VMEM (HP, L1P)  bf16
    wl1b_buf,     # VMEM (HP, L1P)  bf16
    wl2_buf,      # VMEM (L1P, L2P) bf16
    xproj_ref,    # VMEM (T*BP, 4*HP) f32  hoisted input projection (+ b1)
    dma_sem,      # DMA semaphores (3,)
    *, n_real, n_steps,
):
    f32, bf16 = jnp.float32, jnp.bfloat16
    bp, hp = states_ref.shape[1], states_ref.shape[2]

    # Start streaming the MLP-head weights HBM->VMEM now; they are only needed
    # after the recurrent loop, so the DMA latency hides behind the T steps and
    # they never sit VMEM-resident during the loop.
    cp1 = pltpu.make_async_copy(wl1a_hbm, wl1a_buf, dma_sem.at[0])
    cp2 = pltpu.make_async_copy(wl1b_hbm, wl1b_buf, dma_sem.at[1])
    cp3 = pltpu.make_async_copy(wl2_hbm, wl2_buf, dma_sem.at[2])
    cp1.start()
    cp2.start()
    cp3.start()

    # Hoisted input projection: one batched matmul with T*BP rows of MXU
    # occupancy replaces one MXU push per serial recurrent step; b1 is folded
    # in for free.  Stored to VMEM scratch so it does not pin the vreg file
    # across the unrolled loop.
    xproj_ref[...] = (
        jnp.dot(x_ref[...], w1x_ref[...], preferred_element_type=f32)
        + b1_ref[...])

    # Hoist recurrent weight loads (re-used every step).
    w1h = w1h_ref[...]
    w2ht = w2ht_ref[...]
    w2h2 = w2h2_ref[...]
    b2 = b2_ref[...]          # (1, 4HP): cheap sublane-broadcast add per step

    def gates(pre):
        # PyTorch LSTMCell gate order: i, f, g, o — lane-aligned (hp % 128 == 0).
        i = jax.nn.sigmoid(pre[:, 0 * hp:1 * hp])
        f = jax.nn.sigmoid(pre[:, 1 * hp:2 * hp])
        g = jnp.tanh(pre[:, 2 * hp:3 * hp])
        o = jax.nn.sigmoid(pre[:, 3 * hp:4 * hp])
        return i, f, g, o

    def step(t, carry):
        h_t, c_t, h_t2, c_t2 = carry
        # encoder1(cat(data, h_t), (h_t, c_t)): data-term precomputed above.
        row0 = pl.multiple_of(t * bp, bp)
        pre1 = (xproj_ref[pl.ds(row0, bp), :]
                + jnp.dot(h_t.astype(bf16), w1h, preferred_element_type=f32))
        i1, f1, g1, o1 = gates(pre1)
        c_t = f1 * c_t + i1 * g1
        h_t = o1 * jnp.tanh(c_t)
        # encoder2(cat(zeros, h_t, h_t2), (h_t2, c_t2)) — zeros term dropped;
        # h_t2 matmuls fused into one.
        pre2 = (jnp.dot(h_t.astype(bf16), w2ht, preferred_element_type=f32)
                + jnp.dot(h_t2.astype(bf16), w2h2, preferred_element_type=f32)
                + b2)
        i2, f2, g2, o2 = gates(pre2)
        c_t2 = f2 * c_t2 + i2 * g2
        h_t2 = o2 * jnp.tanh(c_t2)
        return (h_t, c_t, h_t2, c_t2)

    z0 = jnp.zeros((bp, hp), f32)
    h_t, c_t, h_t2, c_t2 = lax.fori_loop(
        0, n_steps, step, (z0, z0, z0, z0), unroll=True)

    # Streamed head weights must have landed before the epilogue matmuls.
    cp1.wait()
    cp2.wait()
    cp3.wait()

    # MLP head: layer1 then layer2 (no nonlinearity between, as in the reference).
    o1 = (jnp.dot(h_t.astype(bf16), wl1a_buf[...], preferred_element_type=f32)
          + jnp.dot(trk_ref[...], wl1b_buf[...], preferred_element_type=f32)
          + bl1_ref[...])
    o2 = (jnp.dot(o1.astype(bf16), wl2_buf[...], preferred_element_type=f32)
          + bl2_ref[...])

    # softmax over dim=0 (the batch axis), masking padded batch rows to -inf.
    # Exact divide (not approx reciprocal) so each column sums to 1.
    row = lax.broadcasted_iota(jnp.int32, o2.shape, 0)
    logits = jnp.where(row < n_real, o2, jnp.float32(-1e30))
    zc = logits - jnp.max(logits, axis=0, keepdims=True)
    e = jnp.exp(zc)
    soft = e / jnp.sum(e, axis=0, keepdims=True)

    soft_ref[...] = soft.astype(soft_ref.dtype)
    states_ref[0] = h_t
    states_ref[1] = c_t
    states_ref[2] = h_t2
    states_ref[3] = c_t2


def init_params(key):
    """Deterministic parameter init mirroring the PyTorch module's shapes."""
    ks = jax.random.split(key, 12)

    def u(k, shape, fan):
        s = 1.0 / float(fan) ** 0.5
        return jax.random.uniform(k, shape, jnp.float32, -s, s)

    p = {}
    # encoder1 = LSTMCell(D_IN + H, H)
    p["W_ih1"] = u(ks[0], (4 * H, D_IN + H), H)
    p["W_hh1"] = u(ks[1], (4 * H, H), H)
    p["b_ih1"] = u(ks[2], (4 * H,), H)
    p["b_hh1"] = u(ks[3], (4 * H,), H)
    # encoder2 = LSTMCell(D_IN + 2H, H)
    p["W_ih2"] = u(ks[4], (4 * H, D_IN + 2 * H), H)
    p["W_hh2"] = u(ks[5], (4 * H, H), H)
    p["b_ih2"] = u(ks[6], (4 * H,), H)
    p["b_hh2"] = u(ks[7], (4 * H,), H)
    # layer1 = Linear(2H, L1); layer2 = Linear(L1, L2)
    p["W_l1"] = u(ks[8], (L1, 2 * H), 2 * H)
    p["b_l1"] = u(ks[9], (L1,), 2 * H)
    p["W_l2"] = u(ks[10], (L2, L1), L1)
    p["b_l2"] = u(ks[11], (L2,), L1)
    # TODO(synk): layer3 = Linear(L2, H) exists in __init__ but is never used
    # in forward(), so it is intentionally omitted here.
    return p


def cue_word_select_forward(x, hidx, p):
    """x: (B, T, D_IN) float32, hidx: (B, K) int32 cue-word ids."""
    f32, bf16 = jnp.float32, jnp.bfloat16
    nb, nt, din = x.shape
    hdim = p["W_hh1"].shape[1]
    l1, l2 = p["W_l1"].shape[0], p["W_l2"].shape[0]

    # TODO(synk): if the workload allows, stack several independent sequences
    # on the batch axis here so the recurrent matmul LHS has >> 8 rows (near
    # linear throughput gain up to the MXU row count).
    BP = _ceil_to(nb, _SUBLANE)   # batch -> full sublanes
    HP = _ceil_to(hdim, _LANE)    # hidden -> lane-aligned gate slices
    DP = _ceil_to(din, _LANE)     # word-vec dim -> lane-aligned matmul K
    L1P = _ceil_to(l1, _LANE)
    L2P = _ceil_to(l2, _LANE)

    # --- weight prep (pure glue): split / fuse / pad / cast to bf16 -----------
    # encoder1: gates = data @ w1x + h_t @ w1h + b1   (w1h = ih-h-part + hh, fused)
    w1x = _pad_to(_pad_gate_cols(p["W_ih1"][:, :din].T, hdim, HP),
                  (DP, 4 * HP)).astype(bf16)
    w1h = _pad_to(_pad_gate_cols(p["W_ih1"][:, din:].T + p["W_hh1"].T, hdim, HP),
                  (HP, 4 * HP)).astype(bf16)
    b1 = _pad_gate_cols((p["b_ih1"] + p["b_hh1"])[None, :], hdim, HP).astype(f32)
    # encoder2: gates = h_t @ w2ht + h_t2 @ w2h2 + b2  (zeros part of concat dropped)
    w2ht = _pad_to(_pad_gate_cols(p["W_ih2"][:, din:din + hdim].T, hdim, HP),
                   (HP, 4 * HP)).astype(bf16)
    w2h2 = _pad_to(_pad_gate_cols(p["W_ih2"][:, din + hdim:].T + p["W_hh2"].T,
                                  hdim, HP),
                   (HP, 4 * HP)).astype(bf16)
    b2 = _pad_gate_cols((p["b_ih2"] + p["b_hh2"])[None, :], hdim, HP).astype(f32)
    # MLP head (streamed from HBM inside the kernel, behind the recurrent loop).
    wl1a = _pad_to(p["W_l1"][:, :hdim].T, (HP, L1P)).astype(bf16)
    wl1b = _pad_to(p["W_l1"][:, hdim:].T, (HP, L1P)).astype(bf16)
    bl1 = _pad_to(p["b_l1"][None, :], (1, L1P)).astype(f32)
    wl2 = _pad_to(p["W_l2"].T, (L1P, L2P)).astype(bf16)
    bl2 = _pad_to(p["b_l2"][None, :], (1, L2P)).astype(f32)

    # Time-major bf16 input, batch padded to BP, feature dim padded to DP,
    # flattened to (T*BP, DP) for the hoisted single-shot input projection.
    x_tm = _pad_to(jnp.transpose(x, (1, 0, 2)).astype(bf16),
                   (nt, BP, DP)).reshape(nt * BP, DP)
    # topic_tracker = zeros(B, H).scatter(1, hidx, 1), built here (free), padded,
    # cast to bf16 (one-hot values exact in bf16).
    trk = jnp.zeros((BP, HP), f32).at[
        jnp.arange(nb)[:, None], hidx.astype(jnp.int32)].set(1.0).astype(bf16)

    vmem = pl.BlockSpec(memory_space=pltpu.MemorySpace.VMEM)
    hbm = pl.BlockSpec(memory_space=pl.ANY)     # streamed manually in-kernel
    out_shape = (
        jax.ShapeDtypeStruct((BP, L2P), f32),     # softmax(layer2 out, dim=0)
        jax.ShapeDtypeStruct((4, BP, HP), f32),   # packed h_t, c_t, h_t2, c_t2
    )
    fn = pl.pallas_call(
        functools.partial(cue_word_select_kernel, n_real=nb, n_steps=nt),
        out_shape=out_shape,
        in_specs=[vmem] * 7 + [hbm, hbm, hbm] + [vmem] * 3,
        out_specs=(vmem, vmem),
        scratch_shapes=[
            pltpu.VMEM((HP, L1P), bf16),          # wl1a landing buffer
            pltpu.VMEM((HP, L1P), bf16),          # wl1b landing buffer
            pltpu.VMEM((L1P, L2P), bf16),         # wl2 landing buffer
            pltpu.VMEM((nt * BP, 4 * HP), f32),   # hoisted input projection
            pltpu.SemaphoreType.DMA((3,)),
        ],
        compiler_params=pltpu.CompilerParams(
            # Tiny footprint at this toy size.  At full model scale, size this
            # to the resident set (recurrent bf16 weights + xproj + streamed
            # head buffers + double-buffer headroom), NOT the full weight set:
            # the MLP head is streamed, which is what lets it fit v7x's 64 MiB.
            vmem_limit_bytes=64 * 1024 * 1024),
    )
    soft_p, states_p = fn(x_tm, w1x, w1h, b1, w2ht, w2h2, b2,
                          wl1a, wl1b, wl2, bl1, bl2, trk)

    soft = soft_p[:nb, :l2]
    h_t = states_p[0, :nb, :hdim]
    c_t = states_p[1, :nb, :hdim]
    h_t2 = states_p[2, :nb, :hdim]
    c_t2 = states_p[3, :nb, :hdim]
    return soft, (h_t, c_t), (h_t2, c_t2)


def reference_forward(x, hidx, p):
    """Pure-JAX replica of the PyTorch forward (concat-based LSTM cells, scatter
    tracker, dim-0 softmax).  Uses the same numerics policy as the kernel
    (bf16 matmul operands, f32 accumulation) so the tolerance is meaningful.
    NOTE: the kernel fuses the W_ih h-part with W_hh in f32 before the bf16
    cast, which rounds slightly differently than two separate bf16 matmuls;
    that difference is covered by the 2e-2 tolerance below."""
    bf16, f32 = jnp.bfloat16, jnp.float32
    nb = x.shape[0]

    def mm(a, w):  # a @ w.T with bf16 operands, f32 accumulation
        return jnp.dot(a.astype(bf16), w.astype(bf16).T, preferred_element_type=f32)

    def cell(inp, h, c, W_ih, W_hh, b_ih, b_hh):
        pre = mm(inp, W_ih) + mm(h, W_hh) + b_ih + b_hh
        i = jax.nn.sigmoid(pre[:, :H])
        f = jax.nn.sigmoid(pre[:, H:2 * H])
        g = jnp.tanh(pre[:, 2 * H:3 * H])
        o = jax.nn.sigmoid(pre[:, 3 * H:])
        c_new = f * c + i * g
        return o * jnp.tanh(c_new), c_new

    h_t = jnp.zeros((nb, H), f32)
    c_t = jnp.zeros((nb, H), f32)
    h_t2 = jnp.zeros((nb, H), f32)
    c_t2 = jnp.zeros((nb, H), f32)
    zeros = jnp.zeros((nb, D_IN), f32)
    for t in range(T):
        data = x[:, t, :]
        h_t, c_t = cell(jnp.concatenate([data, h_t], axis=1), h_t, c_t,
                        p["W_ih1"], p["W_hh1"], p["b_ih1"], p["b_hh1"])
        h_t2, c_t2 = cell(jnp.concatenate([zeros, h_t, h_t2], axis=1), h_t2, c_t2,
                          p["W_ih2"], p["W_hh2"], p["b_ih2"], p["b_hh2"])
    tracker = jnp.zeros((nb, H), f32).at[jnp.arange(nb)[:, None], hidx].set(1.0)
    mlp_in = jnp.concatenate([h_t, tracker], axis=1)
    o1 = mm(mlp_in, p["W_l1"]) + p["b_l1"]
    o2 = mm(o1, p["W_l2"]) + p["b_l2"]
    return jax.nn.softmax(o2, axis=0), (h_t, c_t), (h_t2, c_t2)


if __name__ == "__main__":
    key = jax.random.PRNGKey(0)
    kx, kh, kp = jax.random.split(key, 3)
    x = jax.random.normal(kx, (B, T, D_IN), jnp.float32)
    hidx = jax.random.randint(kh, (B, K), 0, H, jnp.int32)
    params = init_params(kp)

    outs = cue_word_select_forward(x, hidx, params)
    outs = jax.block_until_ready(outs)
    soft, (h_t, c_t), (h_t2, c_t2) = outs

    rsoft, (rh, rc), (rh2, rc2) = reference_forward(x, hidx, params)
    pairs = [(soft, rsoft), (h_t, rh), (c_t, rc), (h_t2, rh2), (c_t2, rc2)]
    # Tolerance accounts for bf16 weight-fusion rounding; structural errors
    # would be orders of magnitude larger.
    ok = all(bool(jnp.allclose(a, b, atol=2e-2, rtol=2e-2)) for a, b in pairs)
    assert ok, "Pallas kernel output mismatch vs pure-JAX reference"
    print("KERNEL_OK")
</pallas_src>

<mosaic_0001>
module attributes {stable_mosaic.version = 11 : i64} {
  func.func @cue_word_select_kernel(%arg0: memref<64x128xbf16, #tpu.memory_space<vmem>>, %arg1: memref<128x512xbf16, #tpu.memory_space<vmem>>, %arg2: memref<128x512xbf16, #tpu.memory_space<vmem>>, %arg3: memref<1x512xf32, #tpu.memory_space<vmem>>, %arg4: memref<128x512xbf16, #tpu.memory_space<vmem>>, %arg5: memref<128x512xbf16, #tpu.memory_space<vmem>>, %arg6: memref<1x512xf32, #tpu.memory_space<vmem>>, %arg7: memref<128x128xbf16, #tpu.memory_space<any>>, %arg8: memref<128x128xbf16, #tpu.memory_space<any>>, %arg9: memref<128x128xbf16, #tpu.memory_space<any>>, %arg10: memref<1x128xf32, #tpu.memory_space<vmem>>, %arg11: memref<1x128xf32, #tpu.memory_space<vmem>>, %arg12: memref<8x128xbf16, #tpu.memory_space<vmem>>, %arg13: memref<8x128xf32, #tpu.memory_space<vmem>>, %arg14: memref<4x8x128xf32, #tpu.memory_space<vmem>>, %arg15: memref<128x128xbf16, #tpu.memory_space<vmem>>, %arg16: memref<128x128xbf16, #tpu.memory_space<vmem>>, %arg17: memref<128x128xbf16, #tpu.memory_space<vmem>>, %arg18: memref<64x512xf32, #tpu.memory_space<vmem>>, %arg19: memref<3x!tpu.dma_semaphore, #tpu.memory_space<semaphore_mem>>) attributes {dimension_semantics = [], scalar_prefetch = 0 : i64, scratch_operands = 5 : i64, tpu.core_type = #tpu.core_type<tc>} {
    %c0_i32 = arith.constant 0 : i32
    %0 = tpu.memref_slice %arg19[%c0_i32] : memref<3x!tpu.dma_semaphore, #tpu.memory_space<semaphore_mem>> -> memref<1x!tpu.dma_semaphore, #tpu.memory_space<semaphore_mem>>
    %1 = tpu.memref_squeeze %0 : memref<1x!tpu.dma_semaphore, #tpu.memory_space<semaphore_mem>> -> memref<!tpu.dma_semaphore, #tpu.memory_space<semaphore_mem>>
    tpu.enqueue_dma source(%arg7 : memref<128x128xbf16, #tpu.memory_space<any>>) target(%arg15 : memref<128x128xbf16, #tpu.memory_space<vmem>>) target_semaphore(%1 : memref<!tpu.dma_semaphore, #tpu.memory_space<semaphore_mem>>)
    %c1_i32 = arith.constant 1 : i32
    %2 = tpu.memref_slice %arg19[%c1_i32] : memref<3x!tpu.dma_semaphore, #tpu.memory_space<semaphore_mem>> -> memref<1x!tpu.dma_semaphore, #tpu.memory_space<semaphore_mem>>
    %3 = tpu.memref_squeeze %2 : memref<1x!tpu.dma_semaphore, #tpu.memory_space<semaphore_mem>> -> memref<!tpu.dma_semaphore, #tpu.memory_space<semaphore_mem>>
    tpu.enqueue_dma source(%arg8 : memref<128x128xbf16, #tpu.memory_space<any>>) target(%arg16 : memref<128x128xbf16, #tpu.memory_space<vmem>>) target_semaphore(%3 : memref<!tpu.dma_semaphore, #tpu.memory_space<semaphore_mem>>)
    %c2_i32 = arith.constant 2 : i32
    %4 = tpu.memref_slice %arg19[%c2_i32] : memref<3x!tpu.dma_semaphore, #tpu.memory_space<semaphore_mem>> -> memref<1x!tpu.dma_semaphore, #tpu.memory_space<semaphore_mem>>
    %5 = tpu.memref_squeeze %4 : memref<1x!tpu.dma_semaphore, #tpu.memory_space<semaphore_mem>> -> memref<!tpu.dma_semaphore, #tpu.memory_space<semaphore_mem>>
    tpu.enqueue_dma source(%arg9 : memref<128x128xbf16, #tpu.memory_space<any>>) target(%arg17 : memref<128x128xbf16, #tpu.memory_space<vmem>>) target_semaphore(%5 : memref<!tpu.dma_semaphore, #tpu.memory_space<semaphore_mem>>)
    %c0 = arith.constant 0 : index
    %c0_0 = arith.constant 0 : index
    %6 = vector.load %arg0[%c0, %c0_0] : memref<64x128xbf16, #tpu.memory_space<vmem>>, vector<64x128xbf16>
    %c0_1 = arith.constant 0 : index
    %c0_2 = arith.constant 0 : index
    %7 = vector.load %arg1[%c0_1, %c0_2] : memref<128x512xbf16, #tpu.memory_space<vmem>>, vector<128x512xbf16>
    %cst = arith.constant dense<0.000000e+00> : vector<64x512xf32>
    %8 = tpu.matmul %6, %7, %cst {dimension_numbers = #tpu.dot_dimension_numbers<[1], [0], [0], [1], [0, 0, 1, 1], [], []>} : vector<64x128xbf16>, vector<128x512xbf16>, vector<64x512xf32> -> vector<64x512xf32>
    %c0_3 = arith.constant 0 : index
    %c0_4 = arith.constant 0 : index
    %9 = vector.load %arg3[%c0_3, %c0_4] : memref<1x512xf32, #tpu.memory_space<vmem>>, vector<1x512xf32>
    %10 = vector.broadcast %9 : vector<1x512xf32> to vector<64x512xf32>
    %11 = arith.addf %8, %10 : vector<64x512xf32>
    %c0_5 = arith.constant 0 : index
    %c0_6 = arith.constant 0 : index
    %12 = vector.load %arg18[%c0_5, %c0_6] : memref<64x512xf32, #tpu.memory_space<vmem>>, vector<64x512xf32>
    tpu.vector_store %arg18[%c0_5, %c0_6], %11 {strides = array<i32>} : memref<64x512xf32, #tpu.memory_space<vmem>>, vector<64x512xf32>,
    %c0_7 = arith.constant 0 : index
    %c0_8 = arith.constant 0 : index
    %13 = vector.load %arg2[%c0_7, %c0_8] : memref<128x512xbf16, #tpu.memory_space<vmem>>, vector<128x512xbf16>
    %c0_9 = arith.constant 0 : index
    %c0_10 = arith.constant 0 : index
    %14 = vector.load %arg4[%c0_9, %c0_10] : memref<128x512xbf16, #tpu.memory_space<vmem>>, vector<128x512xbf16>
    %c0_11 = arith.constant 0 : index
    %c0_12 = arith.constant 0 : index
    %15 = vector.load %arg5[%c0_11, %c0_12] : memref<128x512xbf16, #tpu.memory_space<vmem>>, vector<128x512xbf16>
    %c0_13 = arith.constant 0 : index
    %c0_14 = arith.constant 0 : index
    %16 = vector.load %arg6[%c0_13, %c0_14] : memref<1x512xf32, #tpu.memory_space<vmem>>, vector<1x512xf32>
    %cst_15 = arith.constant 0.000000e+00 : f32
    %17 = vector.broadcast %cst_15 : f32 to vector<8x128xf32>
    %c0_i32_16 = arith.constant 0 : i32
    %c8_i32 = arith.constant 8 : i32
    %18 = arith.muli %c0_i32_16, %c8_i32 : i32
    %19 = tpu.assume_multiple %18, 8 : i32
    %20 = arith.index_cast %19 : i32 to index
    %c0_17 = arith.constant 0 : index
    %21 = vector.load %arg18[%20, %c0_17] : memref<64x512xf32, #tpu.memory_space<vmem>>, vector<8x512xf32>
    %22 = arith.truncf %17 : vector<8x128xf32> to vector<8x128xbf16>
    %cst_18 = arith.constant dense<0.000000e+00> : vector<8x512xf32>
    %23 = tpu.matmul %22, %13, %cst_18 {dimension_numbers = #tpu.dot_dimension_numbers<[1], [0], [0], [1], [0, 0, 1, 1], [], []>} : vector<8x128xbf16>, vector<128x512xbf16>, vector<8x512xf32> -> vector<8x512xf32>
    %24 = arith.addf %21, %23 : vector<8x512xf32>
    %25 = vector.extract_strided_slice %24 {offsets = [0, 0], sizes = [8, 128], strides = [1, 1]} : vector<8x512xf32> to vector<8x128xf32>
    %26 = arith.negf %25 : vector<8x128xf32>
    %27 = math.exp %26 : vector<8x128xf32>
    %cst_19 = arith.constant 1.000000e+00 : f32
    %28 = vector.broadcast %cst_19 : f32 to vector<8x128xf32>
    %29 = arith.addf %28, %27 : vector<8x128xf32>
    %30 = arith.divf %28, %29 : vector<8x128xf32>
    %31 = vector.extract_strided_slice %24 {offsets = [0, 128], sizes = [8, 128], strides = [1, 1]} : vector<8x512xf32> to vector<8x128xf32>
    %32 = arith.negf %31 : vector<8x128xf32>
    %33 = math.exp %32 : vector<8x128xf32>
    %cst_20 = arith.constant 1.000000e+00 : f32
    %34 = vector.broadcast %cst_20 : f32 to vector<8x128xf32>
    %35 = arith.addf %34, %33 : vector<8x128xf32>
    %36 = arith.divf %34, %35 : vector<8x128xf32>
    %37 = vector.extract_strided_slice %24 {offsets = [0, 256], sizes = [8, 128], strides = [1, 1]} : vector<8x512xf32> to vector<8x128xf32>
    %38 = math.tanh %37 : vector<8x128xf32>
    %39 = vector.extract_strided_slice %24 {offsets = [0, 384], sizes = [8, 128], strides = [1, 1]} : vector<8x512xf32> to vector<8x128xf32>
    %40 = arith.negf %39 : vector<8x128xf32>
    %41 = math.exp %40 : vector<8x128xf32>
    %cst_21 = arith.constant 1.000000e+00 : f32
    %42 = vector.broadcast %cst_21 : f32 to vector<8x128xf32>
    %43 = arith.addf %42, %41 : vector<8x128xf32>
    %44 = arith.divf %42, %43 : vector<8x128xf32>
    %45 = arith.mulf %36, %17 : vector<8x128xf32>
    %46 = arith.mulf %30, %38 : vector<8x128xf32>
    %47 = arith.addf %45, %46 : vector<8x128xf32>
    %48 = math.tanh %47 : vector<8x128xf32>
    %49 = arith.mulf %44, %48 : vector<8x128xf32>
    %50 = arith.truncf %49 : vector<8x128xf32> to vector<8x128xbf16>
    %cst_22 = arith.constant dense<0.000000e+00> : vector<8x512xf32>
    %51 = tpu.matmul %50, %14, %cst_22 {dimension_numbers = #tpu.dot_dimension_numbers<[1], [0], [0], [1], [0, 0, 1, 1], [], []>} : vector<8x128xbf16>, vector<128x512xbf16>, vector<8x512xf32> -> vector<8x512xf32>
    %52 = arith.truncf %17 : vector<8x128xf32> to vector<8x128xbf16>
    %cst_23 = arith.constant dense<0.000000e+00> : vector<8x512xf32>
    %53 = tpu.matmul %52, %15, %cst_23 {dimension_numbers = #tpu.dot_dimension_numbers<[1], [0], [0], [1], [0, 0, 1, 1], [], []>} : vector<8x128xbf16>, vector<128x512xbf16>, vector<8x512xf32> -> vector<8x512xf32>
    %54 = arith.addf %51, %53 : vector<8x512xf32>
    %55 = vector.broadcast %16 : vector<1x512xf32> to vector<8x512xf32>
    %56 = arith.addf %54, %55 : vector<8x512xf32>
    %57 = vector.extract_strided_slice %56 {offsets = [0, 0], sizes = [8, 128], strides = [1, 1]} : vector<8x512xf32> to vector<8x128xf32>
    %58 = arith.negf %57 : vector<8x128xf32>
    %59 = math.exp %58 : vector<8x128xf32>
    %cst_24 = arith.constant 1.000000e+00 : f32
    %60 = vector.broadcast %cst_24 : f32 to vector<8x128xf32>
    %61 = arith.addf %60, %59 : vector<8x128xf32>
    %62 = arith.divf %60, %61 : vector<8x128xf32>
    %63 = vector.extract_strided_slice %56 {offsets = [0, 128], sizes = [8, 128], strides = [1, 1]} : vector<8x512xf32> to vector<8x128xf32>
    %64 = arith.negf %63 : vector<8x128xf32>
    %65 = math.exp %64 : vector<8x128xf32>
    %cst_25 = arith.constant 1.000000e+00 : f32
    %66 = vector.broadcast %cst_25 : f32 to vector<8x128xf32>
    %67 = arith.addf %66, %65 : vector<8x128xf32>
    %68 = arith.divf %66, %67 : vector<8x128xf32>
    %69 = vector.extract_strided_slice %56 {offsets = [0, 256], sizes = [8, 128], strides = [1, 1]} : vector<8x512xf32> to vector<8x128xf32>
    %70 = math.tanh %69 : vector<8x128xf32>
    %71 = vector.extract_strided_slice %56 {offsets = [0, 384], sizes = [8, 128], strides = [1, 1]} : vector<8x512xf32> to vector<8x128xf32>
    %72 = arith.negf %71 : vector<8x128xf32>
    %73 = math.exp %72 : vector<8x128xf32>
    %cst_26 = arith.constant 1.000000e+00 : f32
    %74 = vector.broadcast %cst_26 : f32 to vector<8x128xf32>
    %75 = arith.addf %74, %73 : vector<8x128xf32>
    %76 = arith.divf %74, %75 : vector<8x128xf32>
    %77 = arith.mulf %68, %17 : vector<8x128xf32>
    %78 = arith.mulf %62, %70 : vector<8x128xf32>
    %79 = arith.addf %77, %78 : vector<8x128xf32>
    %80 = math.tanh %79 : vector<8x128xf32>
    %81 = arith.mulf %76, %80 : vector<8x128xf32>
    %c1_i32_27 = arith.constant 1 : i32
    %c8_i32_28 = arith.constant 8 : i32
    %82 = arith.muli %c1_i32_27, %c8_i32_28 : i32
    %83 = tpu.assume_multiple %82, 8 : i32
    %84 = arith.index_cast %83 : i32 to index
    %c0_29 = arith.constant 0 : index
    %85 = vector.load %arg18[%84, %c0_29] : memref<64x512xf32, #tpu.memory_space<vmem>>, vector<8x512xf32>
    %86 = arith.truncf %49 : vector<8x128xf32> to vector<8x128xbf16>
    %cst_30 = arith.constant dense<0.000000e+00> : vector<8x512xf32>
    %87 = tpu.matmul %86, %13, %cst_30 {dimension_numbers = #tpu.dot_dimension_numbers<[1], [0], [0], [1], [0, 0, 1, 1], [], []>} : vector<8x128xbf16>, vector<128x512xbf16>, vector<8x512xf32> -> vector<8x512xf32>
    %88 = arith.addf %85, %87 : vector<8x512xf32>
    %89 = vector.extract_strided_slice %88 {offsets = [0, 0], sizes = [8, 128], strides = [1, 1]} : vector<8x512xf32> to vector<8x128xf32>
    %90 = arith.negf %89 : vector<8x128xf32>
    %91 = math.exp %90 : vector<8x128xf32>
    %cst_31 = arith.constant 1.000000e+00 : f32
    %92 = vector.broadcast %cst_31 : f32 to vector<8x128xf32>
    %93 = arith.addf %92, %91 : vector<8x128xf32>
    %94 = arith.divf %92, %93 : vector<8x128xf32>
    %95 = vector.extract_strided_slice %88 {offsets = [0, 128], sizes = [8, 128], strides = [1, 1]} : vector<8x512xf32> to vector<8x128xf32>
    %96 = arith.negf %95 : vector<8x128xf32>
    %97 = math.exp %96 : vector<8x128xf32>
    %cst_32 = arith.constant 1.000000e+00 : f32
    %98 = vector.broadcast %cst_32 : f32 to vector<8x128xf32>
    %99 = arith.addf %98, %97 : vector<8x128xf32>
    %100 = arith.divf %98, %99 : vector<8x128xf32>
    %101 = vector.extract_strided_slice %88 {offsets = [0, 256], sizes = [8, 128], strides = [1, 1]} : vector<8x512xf32> to vector<8x128xf32>
    %102 = math.tanh %101 : vector<8x128xf32>
    %103 = vector.extract_strided_slice %88 {offsets = [0, 384], sizes = [8, 128], strides = [1, 1]} : vector<8x512xf32> to vector<8x128xf32>
    %104 = arith.negf %103 : vector<8x128xf32>
    %105 = math.exp %104 : vector<8x128xf32>
    %cst_33 = arith.constant 1.000000e+00 : f32
    %106 = vector.broadcast %cst_33 : f32 to vector<8x128xf32>
    %107 = arith.addf %106, %105 : vector<8x128xf32>
    %108 = arith.divf %106, %107 : vector<8x128xf32>
    %109 = arith.mulf %100, %47 : vector<8x128xf32>
    %110 = arith.mulf %94, %102 : vector<8x128xf32>
    %111 = arith.addf %109, %110 : vector<8x128xf32>
    %112 = math.tanh %111 : vector<8x128xf32>
    %113 = arith.mulf %108, %112 : vector<8x128xf32>
    %114 = arith.truncf %113 : vector<8x128xf32> to vector<8x128xbf16>
    %cst_34 = arith.constant dense<0.000000e+00> : vector<8x512xf32>
    %115 = tpu.matmul %114, %14, %cst_34 {dimension_numbers = #tpu.dot_dimension_numbers<[1], [0], [0], [1], [0, 0, 1, 1], [], []>} : vector<8x128xbf16>, vector<128x512xbf16>, vector<8x512xf32> -> vector<8x512xf32>
    %116 = arith.truncf %81 : vector<8x128xf32> to vector<8x128xbf16>
    %cst_35 = arith.constant dense<0.000000e+00> : vector<8x512xf32>
    %117 = tpu.matmul %116, %15, %cst_35 {dimension_numbers = #tpu.dot_dimension_numbers<[1], [0], [0], [1], [0, 0, 1, 1], [], []>} : vector<8x128xbf16>, vector<128x512xbf16>, vector<8x512xf32> -> vector<8x512xf32>
    %118 = arith.addf %115, %117 : vector<8x512xf32>
    %119 = vector.broadcast %16 : vector<1x512xf32> to vector<8x512xf32>
    %120 = arith.addf %118, %119 : vector<8x512xf32>
    %121 = vector.extract_strided_slice %120 {offsets = [0, 0], sizes = [8, 128], strides = [1, 1]} : vector<8x512xf32> to vector<8x128xf32>
    %122 = arith.negf %121 : vector<8x128xf32>
    %123 = math.exp %122 : vector<8x128xf32>
    %cst_36 = arith.constant 1.000000e+00 : f32
    %124 = vector.broadcast %cst_36 : f32 to vector<8x128xf32>
    %125 = arith.addf %124, %123 : vector<8x128xf32>
    %126 = arith.divf %124, %125 : vector<8x128xf32>
    %127 = vector.extract_strided_slice %120 {offsets = [0, 128], sizes = [8, 128], strides = [1, 1]} : vector<8x512xf32> to vector<8x128xf32>
    %128 = arith.negf %127 : vector<8x128xf32>
    %129 = math.exp %128 : vector<8x128xf32>
    %cst_37 = arith.constant 1.000000e+00 : f32
    %130 = vector.broadcast %cst_37 : f32 to vector<8x128xf32>
    %131 = arith.addf %130, %129 : vector<8x128xf32>
    %132 = arith.divf %130, %131 : vector<8x128xf32>
    %133 = vector.extract_strided_slice %120 {offsets = [0, 256], sizes = [8, 128], strides = [1, 1]} : vector<8x512xf32> to vector<8x128xf32>
    %134 = math.tanh %133 : vector<8x128xf32>
    %135 = vector.extract_strided_slice %120 {offsets = [0, 384], sizes = [8, 128], strides = [1, 1]} : vector<8x512xf32> to vector<8x128xf32>
    %136 = arith.negf %135 : vector<8x128xf32>
    %137 = math.exp %136 : vector<8x128xf32>
    %cst_38 = arith.constant 1.000000e+00 : f32
    %138 = vector.broadcast %cst_38 : f32 to vector<8x128xf32>
    %139 = arith.addf %138, %137 : vector<8x128xf32>
    %140 = arith.divf %138, %139 : vector<8x128xf32>
    %141 = arith.mulf %132, %79 : vector<8x128xf32>
    %142 = arith.mulf %126, %134 : vector<8x128xf32>
    %143 = arith.addf %141, %142 : vector<8x128xf32>
    %144 = math.tanh %143 : vector<8x128xf32>
    %145 = arith.mulf %140, %144 : vector<8x128xf32>
    %c2_i32_39 = arith.constant 2 : i32
    %c8_i32_40 = arith.constant 8 : i32
    %146 = arith.muli %c2_i32_39, %c8_i32_40 : i32
    %147 = tpu.assume_multiple %146, 8 : i32
    %148 = arith.index_cast %147 : i32 to index
    %c0_41 = arith.constant 0 : index
    %149 = vector.load %arg18[%148, %c0_41] : memref<64x512xf32, #tpu.memory_space<vmem>>, vector<8x512xf32>
    %150 = arith.truncf %113 : vector<8x128xf32> to vector<8x128xbf16>
    %cst_42 = arith.constant dense<0.000000e+00> : vector<8x512xf32>
    %151 = tpu.matmul %150, %13, %cst_42 {dimension_numbers = #tpu.dot_dimension_numbers<[1], [0], [0], [1], [0, 0, 1, 1], [], []>} : vector<8x128xbf16>, vector<128x512xbf16>, vector<8x512xf32> -> vector<8x512xf32>
    %152 = arith.addf %149, %151 : vector<8x512xf32>
    %153 = vector.extract_strided_slice %152 {offsets = [0, 0], sizes = [8, 128], strides = [1, 1]} : vector<8x512xf32> to vector<8x128xf32>
    %154 = arith.negf %153 : vector<8x128xf32>
    %155 = math.exp %154 : vector<8x128xf32>
    %cst_43 = arith.constant 1.000000e+00 : f32
    %156 = vector.broadcast %cst_43 : f32 to vector<8x128xf32>
    %157 = arith.addf %156, %155 : vector<8x128xf32>
    %158 = arith.divf %156, %157 : vector<8x128xf32>
    %159 = vector.extract_strided_slice %152 {offsets = [0, 128], sizes = [8, 128], strides = [1, 1]} : vector<8x512xf32> to vector<8x128xf32>
    %160 = arith.negf %159 : vector<8x128xf32>
    %161 = math.exp %160 : vector<8x128xf32>
    %cst_44 = arith.constant 1.000000e+00 : f32
    %162 = vector.broadcast %cst_44 : f32 to vector<8x128xf32>
    %163 = arith.addf %162, %161 : vector<8x128xf32>
    %164 = arith.divf %162, %163 : vector<8x128xf32>
    %165 = vector.extract_strided_slice %152 {offsets = [0, 256], sizes = [8, 128], strides = [1, 1]} : vector<8x512xf32> to vector<8x128xf32>
    %166 = math.tanh %165 : vector<8x128xf32>
    %167 = vector.extract_strided_slice %152 {offsets = [0, 384], sizes = [8, 128], strides = [1, 1]} : vector<8x512xf32> to vector<8x128xf32>
    %168 = arith.negf %167 : vector<8x128xf32>
    %169 = math.exp %168 : vector<8x128xf32>
    %cst_45 = arith.constant 1.000000e+00 : f32
    %170 = vector.broadcast %cst_45 : f32 to vector<8x128xf32>
    %171 = arith.addf %170, %169 : vector<8x128xf32>
    %172 = arith.divf %170, %171 : vector<8x128xf32>
    %173 = arith.mulf %164, %111 : vector<8x128xf32>
    %174 = arith.mulf %158, %166 : vector<8x128xf32>
    %175 = arith.addf %173, %174 : vector<8x128xf32>
    %176 = math.tanh %175 : vector<8x128xf32>
    %177 = arith.mulf %172, %176 : vector<8x128xf32>
    %178 = arith.truncf %177 : vector<8x128xf32> to vector<8x128xbf16>
    %cst_46 = arith.constant dense<0.000000e+00> : vector<8x512xf32>
    %179 = tpu.matmul %178, %14, %cst_46 {dimension_numbers = #tpu.dot_dimension_numbers<[1], [0], [0], [1], [0, 0, 1, 1], [], []>} : vector<8x128xbf16>, vector<128x512xbf16>, vector<8x512xf32> -> vector<8x512xf32>
    %180 = arith.truncf %145 : vector<8x128xf32> to vector<8x128xbf16>
    %cst_47 = arith.constant dense<0.000000e+00> : vector<8x512xf32>
    %181 = tpu.matmul %180, %15, %cst_47 {dimension_numbers = #tpu.dot_dimension_numbers<[1], [0], [0], [1], [0, 0, 1, 1], [], []>} : vector<8x128xbf16>, vector<128x512xbf16>, vector<8x512xf32> -> vector<8x512xf32>
    %182 = arith.addf %179, %181 : vector<8x512xf32>
    %183 = vector.broadcast %16 : vector<1x512xf32> to vector<8x512xf32>
    %184 = arith.addf %182, %183 : vector<8x512xf32>
    %185 = vector.extract_strided_slice %184 {offsets = [0, 0], sizes = [8, 128], strides = [1, 1]} : vector<8x512xf32> to vector<8x128xf32>
    %186 = arith.negf %185 : vector<8x128xf32>
    %187 = math.exp %186 : vector<8x128xf32>
    %cst_48 = arith.constant 1.000000e+00 : f32
    %188 = vector.broadcast %cst_48 : f32 to vector<8x128xf32>
    %189 = arith.addf %188, %187 : vector<8x128xf32>
    %190 = arith.divf %188, %189 : vector<8x128xf32>
    %191 = vector.extract_strided_slice %184 {offsets = [0, 128], sizes = [8, 128], strides = [1, 1]} : vector<8x512xf32> to vector<8x128xf32>
    %192 = arith.negf %191 : vector<8x128xf32>
    %193 = math.exp %192 : vector<8x128xf32>
    %cst_49 = arith.constant 1.000000e+00 : f32
    %194 = vector.broadcast %cst_49 : f32 to vector<8x128xf32>
    %195 = arith.addf %194, %193 : vector<8x128xf32>
    %196 = arith.divf %194, %195 : vector<8x128xf32>
    %197 = vector.extract_strided_slice %184 {offsets = [0, 256], sizes = [8, 128], strides = [1, 1]} : vector<8x512xf32> to vector<8x128xf32>
    %198 = math.tanh %197 : vector<8x128xf32>
    %199 = vector.extract_strided_slice %184 {offsets = [0, 384], sizes = [8, 128], strides = [1, 1]} : vector<8x512xf32> to vector<8x128xf32>
    %200 = arith.negf %199 : vector<8x128xf32>
    %201 = math.exp %200 : vector<8x128xf32>
    %cst_50 = arith.constant 1.000000e+00 : f32
    %202 = vector.broadcast %cst_50 : f32 to vector<8x128xf32>
    %203 = arith.addf %202, %201 : vector<8x128xf32>
    %204 = arith.divf %202, %203 : vector<8x128xf32>
    %205 = arith.mulf %196, %143 : vector<8x128xf32>
    %206 = arith.mulf %190, %198 : vector<8x128xf32>
    %207 = arith.addf %205, %206 : vector<8x128xf32>
    %208 = math.tanh %207 : vector<8x128xf32>
    %209 = arith.mulf %204, %208 : vector<8x128xf32>
    %c3_i32 = arith.constant 3 : i32
    %c8_i32_51 = arith.constant 8 : i32
    %210 = arith.muli %c3_i32, %c8_i32_51 : i32
    %211 = tpu.assume_multiple %210, 8 : i32
    %212 = arith.index_cast %211 : i32 to index
    %c0_52 = arith.constant 0 : index
    %213 = vector.load %arg18[%212, %c0_52] : memref<64x512xf32, #tpu.memory_space<vmem>>, vector<8x512xf32>
    %214 = arith.truncf %177 : vector<8x128xf32> to vector<8x128xbf16>
    %cst_53 = arith.constant dense<0.000000e+00> : vector<8x512xf32>
    %215 = tpu.matmul %214, %13, %cst_53 {dimension_numbers = #tpu.dot_dimension_numbers<[1], [0], [0], [1], [0, 0, 1, 1], [], []>} : vector<8x128xbf16>, vector<128x512xbf16>, vector<8x512xf32> -> vector<8x512xf32>
    %216 = arith.addf %213, %215 : vector<8x512xf32>
    %217 = vector.extract_strided_slice %216 {offsets = [0, 0], sizes = [8, 128], strides = [1, 1]} : vector<8x512xf32> to vector<8x128xf32>
    %218 = arith.negf %217 : vector<8x128xf32>
    %219 = math.exp %218 : vector<8x128xf32>
    %cst_54 = arith.constant 1.000000e+00 : f32
    %220 = vector.broadcast %cst_54 : f32 to vector<8x128xf32>
    %221 = arith.addf %220, %219 : vector<8x128xf32>
    %222 = arith.divf %220, %221 : vector<8x128xf32>
    %223 = vector.extract_strided_slice %216 {offsets = [0, 128], sizes = [8, 128], strides = [1, 1]} : vector<8x512xf32> to vector<8x128xf32>
    %224 = arith.negf %223 : vector<8x128xf32>
    %225 = math.exp %224 : vector<8x128xf32>
    %cst_55 = arith.constant 1.000000e+00 : f32
    %226 = vector.broadcast %cst_55 : f32 to vector<8x128xf32>
    %227 = arith.addf %226, %225 : vector<8x128xf32>
    %228 = arith.divf %226, %227 : vector<8x128xf32>
    %229 = vector.extract_strided_slice %216 {offsets = [0, 256], sizes = [8, 128], strides = [1, 1]} : vector<8x512xf32> to vector<8x128xf32>
    %230 = math.tanh %229 : vector<8x128xf32>
    %231 = vector.extract_strided_slice %216 {offsets = [0, 384], sizes = [8, 128], strides = [1, 1]} : vector<8x512xf32> to vector<8x128xf32>
    %232 = arith.negf %231 : vector<8x128xf32>
    %233 = math.exp %232 : vector<8x128xf32>
    %cst_56 = arith.constant 1.000000e+00 : f32
    %234 = vector.broadcast %cst_56 : f32 to vector<8x128xf32>
    %235 = arith.addf %234, %233 : vector<8x128xf32>
    %236 = arith.divf %234, %235 : vector<8x128xf32>
    %237 = arith.mulf %228, %175 : vector<8x128xf32>
    %238 = arith.mulf %222, %230 : vector<8x128xf32>
    %239 = arith.addf %237, %238 : vector<8x128xf32>
    %240 = math.tanh %239 : vector<8x128xf32>
    %241 = arith.mulf %236, %240 : vector<8x128xf32>
    %242 = arith.truncf %241 : vector<8x128xf32> to vector<8x128xbf16>
    %cst_57 = arith.constant dense<0.000000e+00> : vector<8x512xf32>
    %243 = tpu.matmul %242, %14, %cst_57 {dimension_numbers = #tpu.dot_dimension_numbers<[1], [0], [0], [1], [0, 0, 1, 1], [], []>} : vector<8x128xbf16>, vector<128x512xbf16>, vector<8x512xf32> -> vector<8x512xf32>
    %244 = arith.truncf %209 : vector<8x128xf32> to vector<8x128xbf16>
    %cst_58 = arith.constant dense<0.000000e+00> : vector<8x512xf32>
    %245 = tpu.matmul %244, %15, %cst_58 {dimension_numbers = #tpu.dot_dimension_numbers<[1], [0], [0], [1], [0, 0, 1, 1], [], []>} : vector<8x128xbf16>, vector<128x512xbf16>, vector<8x512xf32> -> vector<8x512xf32>
    %246 = arith.addf %243, %245 : vector<8x512xf32>
    %247 = vector.broadcast %16 : vector<1x512xf32> to vector<8x512xf32>
    %248 = arith.addf %246, %247 : vector<8x512xf32>
    %249 = vector.extract_strided_slice %248 {offsets = [0, 0], sizes = [8, 128], strides = [1, 1]} : vector<8x512xf32> to vector<8x128xf32>
    %250 = arith.negf %249 : vector<8x128xf32>
    %251 = math.exp %250 : vector<8x128xf32>
    %cst_59 = arith.constant 1.000000e+00 : f32
    %252 = vector.broadcast %cst_59 : f32 to vector<8x128xf32>
    %253 = arith.addf %252, %251 : vector<8x128xf32>
    %254 = arith.divf %252, %253 : vector<8x128xf32>
    %255 = vector.extract_strided_slice %248 {offsets = [0, 128], sizes = [8, 128], strides = [1, 1]} : vector<8x512xf32> to vector<8x128xf32>
    %256 = arith.negf %255 : vector<8x128xf32>
    %257 = math.exp %256 : vector<8x128xf32>
    %cst_60 = arith.constant 1.000000e+00 : f32
    %258 = vector.broadcast %cst_60 : f32 to vector<8x128xf32>
    %259 = arith.addf %258, %257 : vector<8x128xf32>
    %260 = arith.divf %258, %259 : vector<8x128xf32>
    %261 = vector.extract_strided_slice %248 {offsets = [0, 256], sizes = [8, 128], strides = [1, 1]} : vector<8x512xf32> to vector<8x128xf32>
    %262 = math.tanh %261 : vector<8x128xf32>
    %263 = vector.extract_strided_slice %248 {offsets = [0, 384], sizes = [8, 128], strides = [1, 1]} : vector<8x512xf32> to vector<8x128xf32>
    %264 = arith.negf %263 : vector<8x128xf32>
    %265 = math.exp %264 : vector<8x128xf32>
    %cst_61 = arith.constant 1.000000e+00 : f32
    %266 = vector.broadcast %cst_61 : f32 to vector<8x128xf32>
    %267 = arith.addf %266, %265 : vector<8x128xf32>
    %268 = arith.divf %266, %267 : vector<8x128xf32>
    %269 = arith.mulf %260, %207 : vector<8x128xf32>
    %270 = arith.mulf %254, %262 : vector<8x128xf32>
    %271 = arith.addf %269, %270 : vector<8x128xf32>
    %272 = math.tanh %271 : vector<8x128xf32>
    %273 = arith.mulf %268, %272 : vector<8x128xf32>
    %c4_i32 = arith.constant 4 : i32
    %c8_i32_62 = arith.constant 8 : i32
    %274 = arith.muli %c4_i32, %c8_i32_62 : i32
    %275 = tpu.assume_multiple %274, 8 : i32
    %276 = arith.index_cast %275 : i32 to index
    %c0_63 = arith.constant 0 : index
    %277 = vector.load %arg18[%276, %c0_63] : memref<64x512xf32, #tpu.memory_space<vmem>>, vector<8x512xf32>
    %278 = arith.truncf %241 : vector<8x128xf32> to vector<8x128xbf16>
    %cst_64 = arith.constant dense<0.000000e+00> : vector<8x512xf32>
    %279 = tpu.matmul %278, %13, %cst_64 {dimension_numbers = #tpu.dot_dimension_numbers<[1], [0], [0], [1], [0, 0, 1, 1], [], []>} : vector<8x128xbf16>, vector<128x512xbf16>, vector<8x512xf32> -> vector<8x512xf32>
    %280 = arith.addf %277, %279 : vector<8x512xf32>
    %281 = vector.extract_strided_slice %280 {offsets = [0, 0], sizes = [8, 128], strides = [1, 1]} : vector<8x512xf32> to vector<8x128xf32>
    %282 = arith.negf %281 : vector<8x128xf32>
    %283 = math.exp %282 : vector<8x128xf32>
    %cst_65 = arith.constant 1.000000e+00 : f32
    %284 = vector.broadcast %cst_65 : f32 to vector<8x128xf32>
    %285 = arith.addf %284, %283 : vector<8x128xf32>
    %286 = arith.divf %284, %285 : vector<8x128xf32>
    %287 = vector.extract_strided_slice %280 {offsets = [0, 128], sizes = [8, 128], strides = [1, 1]} : vector<8x512xf32> to vector<8x128xf32>
    %288 = arith.negf %287 : vector<8x128xf32>
    %289 = math.exp %288 : vector<8x128xf32>
    %cst_66 = arith.constant 1.000000e+00 : f32
    %290 = vector.broadcast %cst_66 : f32 to vector<8x128xf32>
    %291 = arith.addf %290, %289 : vector<8x128xf32>
    %292 = arith.divf %290, %291 : vector<8x128xf32>
    %293 = vector.extract_strided_slice %280 {offsets = [0, 256], sizes = [8, 128], strides = [1, 1]} : vector<8x512xf32> to vector<8x128xf32>
    %294 = math.tanh %293 : vector<8x128xf32>
    %295 = vector.extract_strided_slice %280 {offsets = [0, 384], sizes = [8, 128], strides = [1, 1]} : vector<8x512xf32> to vector<8x128xf32>
    %296 = arith.negf %295 : vector<8x128xf32>
    %297 = math.exp %296 : vector<8x128xf32>
    %cst_67 = arith.constant 1.000000e+00 : f32
    %298 = vector.broadcast %cst_67 : f32 to vector<8x128xf32>
    %299 = arith.addf %298, %297 : vector<8x128xf32>
    %300 = arith.divf %298, %299 : vector<8x128xf32>
    %301 = arith.mulf %292, %239 : vector<8x128xf32>
    %302 = arith.mulf %286, %294 : vector<8x128xf32>
    %303 = arith.addf %301, %302 : vector<8x128xf32>
    %304 = math.tanh %303 : vector<8x128xf32>
    %305 = arith.mulf %300, %304 : vector<8x128xf32>
    %306 = arith.truncf %305 : vector<8x128xf32> to vector<8x128xbf16>
    %cst_68 = arith.constant dense<0.000000e+00> : vector<8x512xf32>
    %307 = tpu.matmul %306, %14, %cst_68 {dimension_numbers = #tpu.dot_dimension_numbers<[1], [0], [0], [1], [0, 0, 1, 1], [], []>} : vector<8x128xbf16>, vector<128x512xbf16>, vector<8x512xf32> -> vector<8x512xf32>
    %308 = arith.truncf %273 : vector<8x128xf32> to vector<8x128xbf16>
    %cst_69 = arith.constant dense<0.000000e+00> : vector<8x512xf32>
    %309 = tpu.matmul %308, %15, %cst_69 {dimension_numbers = #tpu.dot_dimension_numbers<[1], [0], [0], [1], [0, 0, 1, 1], [], []>} : vector<8x128xbf16>, vector<128x512xbf16>, vector<8x512xf32> -> vector<8x512xf32>
    %310 = arith.addf %307, %309 : vector<8x512xf32>
    %311 = vector.broadcast %16 : vector<1x512xf32> to vector<8x512xf32>
    %312 = arith.addf %310, %311 : vector<8x512xf32>
    %313 = vector.extract_strided_slice %312 {offsets = [0, 0], sizes = [8, 128], strides = [1, 1]} : vector<8x512xf32> to vector<8x128xf32>
    %314 = arith.negf %313 : vector<8x128xf32>
    %315 = math.exp %314 : vector<8x128xf32>
    %cst_70 = arith.constant 1.000000e+00 : f32
    %316 = vector.broadcast %cst_70 : f32 to vector<8x128xf32>
    %317 = arith.addf %316, %315 : vector<8x128xf32>
    %318 = arith.divf %316, %317 : vector<8x128xf32>
    %319 = vector.extract_strided_slice %312 {offsets = [0, 128], sizes = [8, 128], strides = [1, 1]} : vector<8x512xf32> to vector<8x128xf32>
    %320 = arith.negf %319 : vector<8x128xf32>
    %321 = math.exp %320 : vector<8x128xf32>
    %cst_71 = arith.constant 1.000000e+00 : f32
    %322 = vector.broadcast %cst_71 : f32 to vector<8x128xf32>
    %323 = arith.addf %322, %321 : vector<8x128xf32>
    %324 = arith.divf %322, %323 : vector<8x128xf32>
    %325 = vector.extract_strided_slice %312 {offsets = [0, 256], sizes = [8, 128], strides = [1, 1]} : vector<8x512xf32> to vector<8x128xf32>
    %326 = math.tanh %325 : vector<8x128xf32>
    %327 = vector.extract_strided_slice %312 {offsets = [0, 384], sizes = [8, 128], strides = [1, 1]} : vector<8x512xf32> to vector<8x128xf32>
    %328 = arith.negf %327 : vector<8x128xf32>
    %329 = math.exp %328 : vector<8x128xf32>
    %cst_72 = arith.constant 1.000000e+00 : f32
    %330 = vector.broadcast %cst_72 : f32 to vector<8x128xf32>
    %331 = arith.addf %330, %329 : vector<8x128xf32>
    %332 = arith.divf %330, %331 : vector<8x128xf32>
    %333 = arith.mulf %324, %271 : vector<8x128xf32>
    %334 = arith.mulf %318, %326 : vector<8x128xf32>
    %335 = arith.addf %333, %334 : vector<8x128xf32>
    %336 = math.tanh %335 : vector<8x128xf32>
    %337 = arith.mulf %332, %336 : vector<8x128xf32>
    %c5_i32 = arith.constant 5 : i32
    %c8_i32_73 = arith.constant 8 : i32
    %338 = arith.muli %c5_i32, %c8_i32_73 : i32
    %339 = tpu.assume_multiple %338, 8 : i32
    %340 = arith.index_cast %339 : i32 to index
    %c0_74 = arith.constant 0 : index
    %341 = vector.load %arg18[%340, %c0_74] : memref<64x512xf32, #tpu.memory_space<vmem>>, vector<8x512xf32>
    %342 = arith.truncf %305 : vector<8x128xf32> to vector<8x128xbf16>
    %cst_75 = arith.constant dense<0.000000e+00> : vector<8x512xf32>
    %343 = tpu.matmul %342, %13, %cst_75 {dimension_numbers = #tpu.dot_dimension_numbers<[1], [0], [0], [1], [0, 0, 1, 1], [], []>} : vector<8x128xbf16>, vector<128x512xbf16>, vector<8x512xf32> -> vector<8x512xf32>
    %344 = arith.addf %341, %343 : vector<8x512xf32>
    %345 = vector.extract_strided_slice %344 {offsets = [0, 0], sizes = [8, 128], strides = [1, 1]} : vector<8x512xf32> to vector<8x128xf32>
    %346 = arith.negf %345 : vector<8x128xf32>
    %347 = math.exp %346 : vector<8x128xf32>
    %cst_76 = arith.constant 1.000000e+00 : f32
    %348 = vector.broadcast %cst_76 : f32 to vector<8x128xf32>
    %349 = arith.addf %348, %347 : vector<8x128xf32>
    %350 = arith.divf %348, %349 : vector<8x128xf32>
    %351 = vector.extract_strided_slice %344 {offsets = [0, 128], sizes = [8, 128], strides = [1, 1]} : vector<8x512xf32> to vector<8x128xf32>
    %352 = arith.negf %351 : vector<8x128xf32>
    %353 = math.exp %352 : vector<8x128xf32>
    %cst_77 = arith.constant 1.000000e+00 : f32
    %354 = vector.broadcast %cst_77 : f32 to vector<8x128xf32>
    %355 = arith.addf %354, %353 : vector<8x128xf32>
    %356 = arith.divf %354, %355 : vector<8x128xf32>
    %357 = vector.extract_strided_slice %344 {offsets = [0, 256], sizes = [8, 128], strides = [1, 1]} : vector<8x512xf32> to vector<8x128xf32>
    %358 = math.tanh %357 : vector<8x128xf32>
    %359 = vector.extract_strided_slice %344 {offsets = [0, 384], sizes = [8, 128], strides = [1, 1]} : vector<8x512xf32> to vector<8x128xf32>
    %360 = arith.negf %359 : vector<8x128xf32>
    %361 = math.exp %360 : vector<8x128xf32>
    %cst_78 = arith.constant 1.000000e+00 : f32
    %362 = vector.broadcast %cst_78 : f32 to vector<8x128xf32>
    %363 = arith.addf %362, %361 : vector<8x128xf32>
    %364 = arith.divf %362, %363 : vector<8x128xf32>
    %365 = arith.mulf %356, %303 : vector<8x128xf32>
    %366 = arith.mulf %350, %358 : vector<8x128xf32>
    %367 = arith.addf %365, %366 : vector<8x128xf32>
    %368 = math.tanh %367 : vector<8x128xf32>
    %369 = arith.mulf %364, %368 : vector<8x128xf32>
    %370 = arith.truncf %369 : vector<8x128xf32> to vector<8x128xbf16>
    %cst_79 = arith.constant dense<0.000000e+00> : vector<8x512xf32>
    %371 = tpu.matmul %370, %14, %cst_79 {dimension_numbers = #tpu.dot_dimension_numbers<[1], [0], [0], [1], [0, 0, 1, 1], [], []>} : vector<8x128xbf16>, vector<128x512xbf16>, vector<8x512xf32> -> vector<8x512xf32>
    %372 = arith.truncf %337 : vector<8x128xf32> to vector<8x128xbf16>
    %cst_80 = arith.constant dense<0.000000e+00> : vector<8x512xf32>
    %373 = tpu.matmul %372, %15, %cst_80 {dimension_numbers = #tpu.dot_dimension_numbers<[1], [0], [0], [1], [0, 0, 1, 1], [], []>} : vector<8x128xbf16>, vector<128x512xbf16>, vector<8x512xf32> -> vector<8x512xf32>
    %374 = arith.addf %371, %373 : vector<8x512xf32>
    %375 = vector.broadcast %16 : vector<1x512xf32> to vector<8x512xf32>
    %376 = arith.addf %374, %375 : vector<8x512xf32>
    %377 = vector.extract_strided_slice %376 {offsets = [0, 0], sizes = [8, 128], strides = [1, 1]} : vector<8x512xf32> to vector<8x128xf32>
    %378 = arith.negf %377 : vector<8x128xf32>
    %379 = math.exp %378 : vector<8x128xf32>
    %cst_81 = arith.constant 1.000000e+00 : f32
    %380 = vector.broadcast %cst_81 : f32 to vector<8x128xf32>
    %381 = arith.addf %380, %379 : vector<8x128xf32>
    %382 = arith.divf %380, %381 : vector<8x128xf32>
    %383 = vector.extract_strided_slice %376 {offsets = [0, 128], sizes = [8, 128], strides = [1, 1]} : vector<8x512xf32> to vector<8x128xf32>
    %384 = arith.negf %383 : vector<8x128xf32>
    %385 = math.exp %384 : vector<8x128xf32>
    %cst_82 = arith.constant 1.000000e+00 : f32
    %386 = vector.broadcast %cst_82 : f32 to vector<8x128xf32>
    %387 = arith.addf %386, %385 : vector<8x128xf32>
    %388 = arith.divf %386, %387 : vector<8x128xf32>
    %389 = vector.extract_strided_slice %376 {offsets = [0, 256], sizes = [8, 128], strides = [1, 1]} : vector<8x512xf32> to vector<8x128xf32>
    %390 = math.tanh %389 : vector<8x128xf32>
    %391 = vector.extract_strided_slice %376 {offsets = [0, 384], sizes = [8, 128], strides = [1, 1]} : vector<8x512xf32> to vector<8x128xf32>
    %392 = arith.negf %391 : vector<8x128xf32>
    %393 = math.exp %392 : vector<8x128xf32>
    %cst_83 = arith.constant 1.000000e+00 : f32
    %394 = vector.broadcast %cst_83 : f32 to vector<8x128xf32>
    %395 = arith.addf %394, %393 : vector<8x128xf32>
    %396 = arith.divf %394, %395 : vector<8x128xf32>
    %397 = arith.mulf %388, %335 : vector<8x128xf32>
    %398 = arith.mulf %382, %390 : vector<8x128xf32>
    %399 = arith.addf %397, %398 : vector<8x128xf32>
    %400 = math.tanh %399 : vector<8x128xf32>
    %401 = arith.mulf %396, %400 : vector<8x128xf32>
    %c6_i32 = arith.constant 6 : i32
    %c8_i32_84 = arith.constant 8 : i32
    %402 = arith.muli %c6_i32, %c8_i32_84 : i32
    %403 = tpu.assume_multiple %402, 8 : i32
    %404 = arith.index_cast %403 : i32 to index
    %c0_85 = arith.constant 0 : index
    %405 = vector.load %arg18[%404, %c0_85] : memref<64x512xf32, #tpu.memory_space<vmem>>, vector<8x512xf32>
    %406 = arith.truncf %369 : vector<8x128xf32> to vector<8x128xbf16>
    %cst_86 = arith.constant dense<0.000000e+00> : vector<8x512xf32>
    %407 = tpu.matmul %406, %13, %cst_86 {dimension_numbers = #tpu.dot_dimension_numbers<[1], [0], [0], [1], [0, 0, 1, 1], [], []>} : vector<8x128xbf16>, vector<128x512xbf16>, vector<8x512xf32> -> vector<8x512xf32>
    %408 = arith.addf %405, %407 : vector<8x512xf32>
    %409 = vector.extract_strided_slice %408 {offsets = [0, 0], sizes = [8, 128], strides = [1, 1]} : vector<8x512xf32> to vector<8x128xf32>
    %410 = arith.negf %409 : vector<8x128xf32>
    %411 = math.exp %410 : vector<8x128xf32>
    %cst_87 = arith.constant 1.000000e+00 : f32
    %412 = vector.broadcast %cst_87 : f32 to vector<8x128xf32>
    %413 = arith.addf %412, %411 : vector<8x128xf32>
    %414 = arith.divf %412, %413 : vector<8x128xf32>
    %415 = vector.extract_strided_slice %408 {offsets = [0, 128], sizes = [8, 128], strides = [1, 1]} : vector<8x512xf32> to vector<8x128xf32>
    %416 = arith.negf %415 : vector<8x128xf32>
    %417 = math.exp %416 : vector<8x128xf32>
    %cst_88 = arith.constant 1.000000e+00 : f32
    %418 = vector.broadcast %cst_88 : f32 to vector<8x128xf32>
    %419 = arith.addf %418, %417 : vector<8x128xf32>
    %420 = arith.divf %418, %419 : vector<8x128xf32>
    %421 = vector.extract_strided_slice %408 {offsets = [0, 256], sizes = [8, 128], strides = [1, 1]} : vector<8x512xf32> to vector<8x128xf32>
    %422 = math.tanh %421 : vector<8x128xf32>
    %423 = vector.extract_strided_slice %408 {offsets = [0, 384], sizes = [8, 128], strides = [1, 1]} : vector<8x512xf32> to vector<8x128xf32>
    %424 = arith.negf %423 : vector<8x128xf32>
    %425 = math.exp %424 : vector<8x128xf32>
    %cst_89 = arith.constant 1.000000e+00 : f32
    %426 = vector.broadcast %cst_89 : f32 to vector<8x128xf32>
    %427 = arith.addf %426, %425 : vector<8x128xf32>
    %428 = arith.divf %426, %427 : vector<8x128xf32>
    %429 = arith.mulf %420, %367 : vector<8x128xf32>
    %430 = arith.mulf %414, %422 : vector<8x128xf32>
    %431 = arith.addf %429, %430 : vector<8x128xf32>
    %432 = math.tanh %431 : vector<8x128xf32>
    %433 = arith.mulf %428, %432 : vector<8x128xf32>
    %434 = arith.truncf %433 : vector<8x128xf32> to vector<8x128xbf16>
    %cst_90 = arith.constant dense<0.000000e+00> : vector<8x512xf32>
    %435 = tpu.matmul %434, %14, %cst_90 {dimension_numbers = #tpu.dot_dimension_numbers<[1], [0], [0], [1], [0, 0, 1, 1], [], []>} : vector<8x128xbf16>, vector<128x512xbf16>, vector<8x512xf32> -> vector<8x512xf32>
    %436 = arith.truncf %401 : vector<8x128xf32> to vector<8x128xbf16>
    %cst_91 = arith.constant dense<0.000000e+00> : vector<8x512xf32>
    %437 = tpu.matmul %436, %15, %cst_91 {dimension_numbers = #tpu.dot_dimension_numbers<[1], [0], [0], [1], [0, 0, 1, 1], [], []>} : vector<8x128xbf16>, vector<128x512xbf16>, vector<8x512xf32> -> vector<8x512xf32>
    %438 = arith.addf %435, %437 : vector<8x512xf32>
    %439 = vector.broadcast %16 : vector<1x512xf32> to vector<8x512xf32>
    %440 = arith.addf %438, %439 : vector<8x512xf32>
    %441 = vector.extract_strided_slice %440 {offsets = [0, 0], sizes = [8, 128], strides = [1, 1]} : vector<8x512xf32> to vector<8x128xf32>
    %442 = arith.negf %441 : vector<8x128xf32>
    %443 = math.exp %442 : vector<8x128xf32>
    %cst_92 = arith.constant 1.000000e+00 : f32
    %444 = vector.broadcast %cst_92 : f32 to vector<8x128xf32>
    %445 = arith.addf %444, %443 : vector<8x128xf32>
    %446 = arith.divf %444, %445 : vector<8x128xf32>
    %447 = vector.extract_strided_slice %440 {offsets = [0, 128], sizes = [8, 128], strides = [1, 1]} : vector<8x512xf32> to vector<8x128xf32>
    %448 = arith.negf %447 : vector<8x128xf32>
    %449 = math.exp %448 : vector<8x128xf32>
    %cst_93 = arith.constant 1.000000e+00 : f32
    %450 = vector.broadcast %cst_93 : f32 to vector<8x128xf32>
    %451 = arith.addf %450, %449 : vector<8x128xf32>
    %452 = arith.divf %450, %451 : vector<8x128xf32>
    %453 = vector.extract_strided_slice %440 {offsets = [0, 256], sizes = [8, 128], strides = [1, 1]} : vector<8x512xf32> to vector<8x128xf32>
    %454 = math.tanh %453 : vector<8x128xf32>
    %455 = vector.extract_strided_slice %440 {offsets = [0, 384], sizes = [8, 128], strides = [1, 1]} : vector<8x512xf32> to vector<8x128xf32>
    %456 = arith.negf %455 : vector<8x128xf32>
    %457 = math.exp %456 : vector<8x128xf32>
    %cst_94 = arith.constant 1.000000e+00 : f32
    %458 = vector.broadcast %cst_94 : f32 to vector<8x128xf32>
    %459 = arith.addf %458, %457 : vector<8x128xf32>
    %460 = arith.divf %458, %459 : vector<8x128xf32>
    %461 = arith.mulf %452, %399 : vector<8x128xf32>
    %462 = arith.mulf %446, %454 : vector<8x128xf32>
    %463 = arith.addf %461, %462 : vector<8x128xf32>
    %464 = math.tanh %463 : vector<8x128xf32>
    %465 = arith.mulf %460, %464 : vector<8x128xf32>
    %c7_i32 = arith.constant 7 : i32
    %c8_i32_95 = arith.constant 8 : i32
    %466 = arith.muli %c7_i32, %c8_i32_95 : i32
    %467 = tpu.assume_multiple %466, 8 : i32
    %468 = arith.index_cast %467 : i32 to index
    %c0_96 = arith.constant 0 : index
    %469 = vector.load %arg18[%468, %c0_96] : memref<64x512xf32, #tpu.memory_space<vmem>>, vector<8x512xf32>
    %470 = arith.truncf %433 : vector<8x128xf32> to vector<8x128xbf16>
    %cst_97 = arith.constant dense<0.000000e+00> : vector<8x512xf32>
    %471 = tpu.matmul %470, %13, %cst_97 {dimension_numbers = #tpu.dot_dimension_numbers<[1], [0], [0], [1], [0, 0, 1, 1], [], []>} : vector<8x128xbf16>, vector<128x512xbf16>, vector<8x512xf32> -> vector<8x512xf32>
    %472 = arith.addf %469, %471 : vector<8x512xf32>
    %473 = vector.extract_strided_slice %472 {offsets = [0, 0], sizes = [8, 128], strides = [1, 1]} : vector<8x512xf32> to vector<8x128xf32>
    %474 = arith.negf %473 : vector<8x128xf32>
    %475 = math.exp %474 : vector<8x128xf32>
    %cst_98 = arith.constant 1.000000e+00 : f32
    %476 = vector.broadcast %cst_98 : f32 to vector<8x128xf32>
    %477 = arith.addf %476, %475 : vector<8x128xf32>
    %478 = arith.divf %476, %477 : vector<8x128xf32>
    %479 = vector.extract_strided_slice %472 {offsets = [0, 128], sizes = [8, 128], strides = [1, 1]} : vector<8x512xf32> to vector<8x128xf32>
    %480 = arith.negf %479 : vector<8x128xf32>
    %481 = math.exp %480 : vector<8x128xf32>
    %cst_99 = arith.constant 1.000000e+00 : f32
    %482 = vector.broadcast %cst_99 : f32 to vector<8x128xf32>
    %483 = arith.addf %482, %481 : vector<8x128xf32>
    %484 = arith.divf %482, %483 : vector<8x128xf32>
    %485 = vector.extract_strided_slice %472 {offsets = [0, 256], sizes = [8, 128], strides = [1, 1]} : vector<8x512xf32> to vector<8x128xf32>
    %486 = math.tanh %485 : vector<8x128xf32>
    %487 = vector.extract_strided_slice %472 {offsets = [0, 384], sizes = [8, 128], strides = [1, 1]} : vector<8x512xf32> to vector<8x128xf32>
    %488 = arith.negf %487 : vector<8x128xf32>
    %489 = math.exp %488 : vector<8x128xf32>
    %cst_100 = arith.constant 1.000000e+00 : f32
    %490 = vector.broadcast %cst_100 : f32 to vector<8x128xf32>
    %491 = arith.addf %490, %489 : vector<8x128xf32>
    %492 = arith.divf %490, %491 : vector<8x128xf32>
    %493 = arith.mulf %484, %431 : vector<8x128xf32>
    %494 = arith.mulf %478, %486 : vector<8x128xf32>
    %495 = arith.addf %493, %494 : vector<8x128xf32>
    %496 = math.tanh %495 : vector<8x128xf32>
    %497 = arith.mulf %492, %496 : vector<8x128xf32>
    %498 = arith.truncf %497 : vector<8x128xf32> to vector<8x128xbf16>
    %cst_101 = arith.constant dense<0.000000e+00> : vector<8x512xf32>
    %499 = tpu.matmul %498, %14, %cst_101 {dimension_numbers = #tpu.dot_dimension_numbers<[1], [0], [0], [1], [0, 0, 1, 1], [], []>} : vector<8x128xbf16>, vector<128x512xbf16>, vector<8x512xf32> -> vector<8x512xf32>
    %500 = arith.truncf %465 : vector<8x128xf32> to vector<8x128xbf16>
    %cst_102 = arith.constant dense<0.000000e+00> : vector<8x512xf32>
    %501 = tpu.matmul %500, %15, %cst_102 {dimension_numbers = #tpu.dot_dimension_numbers<[1], [0], [0], [1], [0, 0, 1, 1], [], []>} : vector<8x128xbf16>, vector<128x512xbf16>, vector<8x512xf32> -> vector<8x512xf32>
    %502 = arith.addf %499, %501 : vector<8x512xf32>
    %503 = vector.broadcast %16 : vector<1x512xf32> to vector<8x512xf32>
    %504 = arith.addf %502, %503 : vector<8x512xf32>
    %505 = vector.extract_strided_slice %504 {offsets = [0, 0], sizes = [8, 128], strides = [1, 1]} : vector<8x512xf32> to vector<8x128xf32>
    %506 = arith.negf %505 : vector<8x128xf32>
    %507 = math.exp %506 : vector<8x128xf32>
    %cst_103 = arith.constant 1.000000e+00 : f32
    %508 = vector.broadcast %cst_103 : f32 to vector<8x128xf32>
    %509 = arith.addf %508, %507 : vector<8x128xf32>
    %510 = arith.divf %508, %509 : vector<8x128xf32>
    %511 = vector.extract_strided_slice %504 {offsets = [0, 128], sizes = [8, 128], strides = [1, 1]} : vector<8x512xf32> to vector<8x128xf32>
    %512 = arith.negf %511 : vector<8x128xf32>
    %513 = math.exp %512 : vector<8x128xf32>
    %cst_104 = arith.constant 1.000000e+00 : f32
    %514 = vector.broadcast %cst_104 : f32 to vector<8x128xf32>
    %515 = arith.addf %514, %513 : vector<8x128xf32>
    %516 = arith.divf %514, %515 : vector<8x128xf32>
    %517 = vector.extract_strided_slice %504 {offsets = [0, 256], sizes = [8, 128], strides = [1, 1]} : vector<8x512xf32> to vector<8x128xf32>
    %518 = math.tanh %517 : vector<8x128xf32>
    %519 = vector.extract_strided_slice %504 {offsets = [0, 384], sizes = [8, 128], strides = [1, 1]} : vector<8x512xf32> to vector<8x128xf32>
    %520 = arith.negf %519 : vector<8x128xf32>
    %521 = math.exp %520 : vector<8x128xf32>
    %cst_105 = arith.constant 1.000000e+00 : f32
    %522 = vector.broadcast %cst_105 : f32 to vector<8x128xf32>
    %523 = arith.addf %522, %521 : vector<8x128xf32>
    %524 = arith.divf %522, %523 : vector<8x128xf32>
    %525 = arith.mulf %516, %463 : vector<8x128xf32>
    %526 = arith.mulf %510, %518 : vector<8x128xf32>
    %527 = arith.addf %525, %526 : vector<8x128xf32>
    %528 = math.tanh %527 : vector<8x128xf32>
    %529 = arith.mulf %524, %528 : vector<8x128xf32>
    %c8_i32_106 = arith.constant 8 : i32
    %c0_i32_107 = arith.constant 0 : i32
    %530 = tpu.memref_slice %arg19[%c0_i32_107] : memref<3x!tpu.dma_semaphore, #tpu.memory_space<semaphore_mem>> -> memref<1x!tpu.dma_semaphore, #tpu.memory_space<semaphore_mem>>
    %531 = tpu.memref_squeeze %530 : memref<1x!tpu.dma_semaphore, #tpu.memory_space<semaphore_mem>> -> memref<!tpu.dma_semaphore, #tpu.memory_space<semaphore_mem>>
    tpu.wait_dma2 semaphore(%531 : memref<!tpu.dma_semaphore, #tpu.memory_space<semaphore_mem>>) src(%arg7 : memref<128x128xbf16, #tpu.memory_space<any>>) dst(%arg15 : memref<128x128xbf16, #tpu.memory_space<vmem>>)
    %c1_i32_108 = arith.constant 1 : i32
    %532 = tpu.memref_slice %arg19[%c1_i32_108] : memref<3x!tpu.dma_semaphore, #tpu.memory_space<semaphore_mem>> -> memref<1x!tpu.dma_semaphore, #tpu.memory_space<semaphore_mem>>
    %533 = tpu.memref_squeeze %532 : memref<1x!tpu.dma_semaphore, #tpu.memory_space<semaphore_mem>> -> memref<!tpu.dma_semaphore, #tpu.memory_space<semaphore_mem>>
    tpu.wait_dma2 semaphore(%533 : memref<!tpu.dma_semaphore, #tpu.memory_space<semaphore_mem>>) src(%arg8 : memref<128x128xbf16, #tpu.memory_space<any>>) dst(%arg16 : memref<128x128xbf16, #tpu.memory_space<vmem>>)
    %c2_i32_109 = arith.constant 2 : i32
    %534 = tpu.memref_slice %arg19[%c2_i32_109] : memref<3x!tpu.dma_semaphore, #tpu.memory_space<semaphore_mem>> -> memref<1x!tpu.dma_semaphore, #tpu.memory_space<semaphore_mem>>
    %535 = tpu.memref_squeeze %534 : memref<1x!tpu.dma_semaphore, #tpu.memory_space<semaphore_mem>> -> memref<!tpu.dma_semaphore, #tpu.memory_space<semaphore_mem>>
    tpu.wait_dma2 semaphore(%535 : memref<!tpu.dma_semaphore, #tpu.memory_space<semaphore_mem>>) src(%arg9 : memref<128x128xbf16, #tpu.memory_space<any>>) dst(%arg17 : memref<128x128xbf16, #tpu.memory_space<vmem>>)
    %536 = arith.truncf %497 : vector<8x128xf32> to vector<8x128xbf16>
    %c0_110 = arith.constant 0 : index
    %c0_111 = arith.constant 0 : index
    %537 = vector.load %arg15[%c0_110, %c0_111] : memref<128x128xbf16, #tpu.memory_space<vmem>>, vector<128x128xbf16>
    %cst_112 = arith.constant dense<0.000000e+00> : vector<8x128xf32>
    %538 = tpu.matmul %536, %537, %cst_112 {dimension_numbers = #tpu.dot_dimension_numbers<[1], [0], [0], [1], [0, 0, 1, 1], [], []>} : vector<8x128xbf16>, vector<128x128xbf16>, vector<8x128xf32> -> vector<8x128xf32>
    %c0_113 = arith.constant 0 : index
    %c0_114 = arith.constant 0 : index
    %539 = vector.load %arg12[%c0_113, %c0_114] : memref<8x128xbf16, #tpu.memory_space<vmem>>, vector<8x128xbf16>
    %c0_115 = arith.constant 0 : index
    %c0_116 = arith.constant 0 : index
    %540 = vector.load %arg16[%c0_115, %c0_116] : memref<128x128xbf16, #tpu.memory_space<vmem>>, vector<128x128xbf16>
    %cst_117 = arith.constant dense<0.000000e+00> : vector<8x128xf32>
    %541 = tpu.matmul %539, %540, %cst_117 {dimension_numbers = #tpu.dot_dimension_numbers<[1], [0], [0], [1], [0, 0, 1, 1], [], []>} : vector<8x128xbf16>, vector<128x128xbf16>, vector<8x128xf32> -> vector<8x128xf32>
    %542 = arith.addf %538, %541 : vector<8x128xf32>
    %c0_118 = arith.constant 0 : index
    %c0_119 = arith.constant 0 : index
    %543 = vector.load %arg10[%c0_118, %c0_119] : memref<1x128xf32, #tpu.memory_space<vmem>>, vector<1x128xf32>
    %544 = vector.broadcast %543 : vector<1x128xf32> to vector<8x128xf32>
    %545 = arith.addf %542, %544 : vector<8x128xf32>
    %546 = arith.truncf %545 : vector<8x128xf32> to vector<8x128xbf16>
    %c0_120 = arith.constant 0 : index
    %c0_121 = arith.constant 0 : index
    %547 = vector.load %arg17[%c0_120, %c0_121] : memref<128x128xbf16, #tpu.memory_space<vmem>>, vector<128x128xbf16>
    %cst_122 = arith.constant dense<0.000000e+00> : vector<8x128xf32>
    %548 = tpu.matmul %546, %547, %cst_122 {dimension_numbers = #tpu.dot_dimension_numbers<[1], [0], [0], [1], [0, 0, 1, 1], [], []>} : vector<8x128xbf16>, vector<128x128xbf16>, vector<8x128xf32> -> vector<8x128xf32>
    %c0_123 = arith.constant 0 : index
    %c0_124 = arith.constant 0 : index
    %549 = vector.load %arg11[%c0_123, %c0_124] : memref<1x128xf32, #tpu.memory_space<vmem>>, vector<1x128xf32>
    %550 = vector.broadcast %549 : vector<1x128xf32> to vector<8x128xf32>
    %551 = arith.addf %548, %550 : vector<8x128xf32>
    %552 = tpu.iota {dimensions = array<i32: 0>} : vector<8x128xi32>
    %c2_i32_125 = arith.constant 2 : i32
    %553 = vector.broadcast %c2_i32_125 : i32 to vector<8x128xi32>
    %554 = arith.cmpi slt, %552, %553 : vector<8x128xi32>
    %cst_126 = arith.constant -1.000000e+30 : f32
    %555 = vector.broadcast %cst_126 : f32 to vector<8x128xf32>
    %556 = arith.select %554, %551, %555 : vector<8x128xi1>, vector<8x128xf32>
    %cst_127 = arith.constant dense<0xFF800000> : vector<128xf32>
    %557 = vector.multi_reduction <maximumf>, %556, %cst_127 [0] : vector<8x128xf32> to vector<128xf32>
    %558 = vector.shape_cast %557 : vector<128xf32> to vector<1x128xf32>
    %559 = vector.broadcast %558 : vector<1x128xf32> to vector<8x128xf32>
    %560 = arith.subf %556, %559 : vector<8x128xf32>
    %561 = math.exp %560 : vector<8x128xf32>
    %cst_128 = arith.constant dense<0.000000e+00> : vector<128xf32>
    %562 = vector.multi_reduction <add>, %561, %cst_128 [0] : vector<8x128xf32> to vector<128xf32>
    %563 = vector.shape_cast %562 : vector<128xf32> to vector<1x128xf32>
    %564 = vector.broadcast %563 : vector<1x128xf32> to vector<8x128xf32>
    %565 = arith.divf %561, %564 : vector<8x128xf32>
    %c0_129 = arith.constant 0 : index
    %c0_130 = arith.constant 0 : index
    %566 = vector.load %arg13[%c0_129, %c0_130] : memref<8x128xf32, #tpu.memory_space<vmem>>, vector<8x128xf32>
    tpu.vector_store %arg13[%c0_129, %c0_130], %565 {strides = array<i32>} : memref<8x128xf32, #tpu.memory_space<vmem>>, vector<8x128xf32>,
    %c0_131 = arith.constant 0 : index
    %c0_132 = arith.constant 0 : index
    %c0_133 = arith.constant 0 : index
    %567 = vector.load %arg14[%c0_131, %c0_132, %c0_133] : memref<4x8x128xf32, #tpu.memory_space<vmem>>, vector<1x8x128xf32>
    %568 = vector.shape_cast %567 : vector<1x8x128xf32> to vector<8x128xf32>
    %569 = vector.shape_cast %497 : vector<8x128xf32> to vector<1x8x128xf32>
    tpu.vector_store %arg14[%c0_131, %c0_132, %c0_133], %569 {strides = array<i32>} : memref<4x8x128xf32, #tpu.memory_space<vmem>>, vector<1x8x128xf32>,
    %c1 = arith.constant 1 : index
    %c0_134 = arith.constant 0 : index
    %c0_135 = arith.constant 0 : index
    %570 = vector.load %arg14[%c1, %c0_134, %c0_135] : memref<4x8x128xf32, #tpu.memory_space<vmem>>, vector<1x8x128xf32>
    %571 = vector.shape_cast %570 : vector<1x8x128xf32> to vector<8x128xf32>
    %572 = vector.shape_cast %495 : vector<8x128xf32> to vector<1x8x128xf32>
    tpu.vector_store %arg14[%c1, %c0_134, %c0_135], %572 {strides = array<i32>} : memref<4x8x128xf32, #tpu.memory_space<vmem>>, vector<1x8x128xf32>,
    %c2 = arith.constant 2 : index
    %c0_136 = arith.constant 0 : index
    %c0_137 = arith.constant 0 : index
    %573 = vector.load %arg14[%c2, %c0_136, %c0_137] : memref<4x8x128xf32, #tpu.memory_space<vmem>>, vector<1x8x128xf32>
    %574 = vector.shape_cast %573 : vector<1x8x128xf32> to vector<8x128xf32>
    %575 = vector.shape_cast %529 : vector<8x128xf32> to vector<1x8x128xf32>
    tpu.vector_store %arg14[%c2, %c0_136, %c0_137], %575 {strides = array<i32>} : memref<4x8x128xf32, #tpu.memory_space<vmem>>, vector<1x8x128xf32>,
    %c3 = arith.constant 3 : index
    %c0_138 = arith.constant 0 : index
    %c0_139 = arith.constant 0 : index
    %576 = vector.load %arg14[%c3, %c0_138, %c0_139] : memref<4x8x128xf32, #tpu.memory_space<vmem>>, vector<1x8x128xf32>
    %577 = vector.shape_cast %576 : vector<1x8x128xf32> to vector<8x128xf32>
    %578 = vector.shape_cast %527 : vector<8x128xf32> to vector<1x8x128xf32>
    tpu.vector_store %arg14[%c3, %c0_138, %c0_139], %578 {strides = array<i32>} : memref<4x8x128xf32, #tpu.memory_space<vmem>>, vector<1x8x128xf32>,
    return
  }
}

</mosaic_0001>

<llo_original>
// kernel: tpu_custom_call.1
$region0: #{tpu_custom_call.1}
  #allocation0 [shape = 'u32[]', space=smem, size = 0x4, offset = 0x4, fixed_abs, tag = 'smem constant byte address 0x4 - core index']
  #allocation1 [shape = 'u32[72,128]{1,0:T(1,128)}', space=vmem, size = 0x9000, scoped, tag = 'internal scratch']
  #allocation2 [shape = 'bf16[128,128]{1,0:T(8,128)(2,1)}', space=vmem, size = 0x8000, scoped, tag = 'scratch operand']
  #allocation3 [shape = 'bf16[128,128]{1,0:T(8,128)(2,1)}', space=vmem, size = 0x8000, scoped, tag = 'scratch operand']
  #allocation4 [shape = 'bf16[128,128]{1,0:T(8,128)(2,1)}', space=vmem, size = 0x8000, scoped, tag = 'scratch operand']
  #allocation5 [shape = 'f32[64,512]{1,0:T(8,128)}', space=vmem, size = 0x20000, scoped, tag = 'scratch operand']
  #allocation6 [shape = 's32[3]{0}', space=sflag, size = 0xc, scoped, tag = 'scratch operand']
  #allocation21 [shape = 's32[]', space=sflag, size = 0x4, offset = 0, fixed_abs, tag = 'sflag constant byte address 0x0 - dummy sync flag']
  #allocation22 [shape = 's32[]', space=sflag, size = 0x4, offset = 0, fixed_abs, tag = 'sflag constant byte address 0x0 - dummy sync flag']
  #allocation23 [shape = 'u32[]', space=smem, size = 0x4, offset = 0x44, fixed_abs, tag = 'smem constant byte address 0x44 - assertion arg 0']
  #allocation24 [shape = 'u32[]', space=smem, size = 0x4, offset = 0x48, fixed_abs, tag = 'smem constant byte address 0x48 - assertion arg 1']
  #allocation25 [shape = 's32[]', space=sflag, size = 0x4, offset = 0, fixed_abs, tag = 'sflag constant byte address 0x0 - dummy sync flag']
  #allocation26 [shape = 's32[]', space=sflag, size = 0x4, offset = 0, fixed_abs, tag = 'sflag constant byte address 0x0 - dummy sync flag']
  #allocation27 [shape = 's32[]', space=sflag, size = 0x4, offset = 0, fixed_abs, tag = 'sflag constant byte address 0x0 - dummy sync flag']
  #allocation28 [shape = 's32[]', space=sflag, size = 0x4, offset = 0, fixed_abs, tag = 'sflag constant byte address 0x0 - dummy sync flag']
  %s0 = inlined_call_operand.hbm [shape: bf16[64,128], index: 0, kind: input, shape index: {}]
  %s1 = inlined_call_operand.hbm [shape: bf16[128,512], index: 1, kind: input, shape index: {}]
  %s2 = inlined_call_operand.hbm [shape: bf16[128,512], index: 2, kind: input, shape index: {}]
  %s3 = inlined_call_operand.hbm [shape: f32[1,512], index: 3, kind: input, shape index: {}]
  %s4 = inlined_call_operand.hbm [shape: bf16[128,512], index: 4, kind: input, shape index: {}]
  %s5 = inlined_call_operand.hbm [shape: bf16[128,512], index: 5, kind: input, shape index: {}]
  %s6 = inlined_call_operand.vmem [shape: f32[1,512], index: 6, kind: input, shape index: {}]
  %s7 = inlined_call_operand.hbm [shape: bf16[128,128], index: 7, kind: input, shape index: {}]
  %s8 = inlined_call_operand.hbm [shape: bf16[128,128], index: 8, kind: input, shape index: {}]
  %s9 = inlined_call_operand.hbm [shape: bf16[128,128], index: 9, kind: input, shape index: {}]
  %s10 = inlined_call_operand.vmem [shape: f32[1,128], index: 10, kind: input, shape index: {}]
  %s11 = inlined_call_operand.vmem [shape: f32[1,128], index: 11, kind: input, shape index: {}]
  %s12 = inlined_call_operand.vmem [shape: bf16[8,128], index: 12, kind: input, shape index: {}]
  %s13 = inlined_call_operand.hbm [shape: f32[8,128], index: 13, kind: output, shape index: {0}]
  %s14 = inlined_call_operand.hbm [shape: f32[4,8,128], index: 14, kind: output, shape index: {1}]
  %15 = xla_tuple %s13, %s14
  %s16 = sld [smem:[#allocation0]]
  $region94: #{tpu_custom_call.1} parent=0
    _
  %s18 = ssub.s32 1, %s16
  %s19 = scalar_select 0, %s18, %s16
  $region1: #{tpu_custom_call.1} parent=0
    #allocation7 [shape = 'u8[16384]{0}', space=vmem, size = 0x4000, scoped, tag = 'input window, operand 0, single buffered']
    #allocation8 [shape = 's32[1]{0}', space=sflag, size = 0x4, scoped, tag = 'scoped memory for tpu_custom_call.1']
    #allocation9 [shape = 's32[1]{0}', space=sflag, size = 0x4, scoped, tag = 'scoped memory for tpu_custom_call.1']
    #allocation10 [shape = 'u8[131072]{0}', space=vmem, size = 0x20000, scoped, tag = 'input window, operand 1, single buffered']
    #allocation11 [shape = 's32[1]{0}', space=sflag, size = 0x4, scoped, tag = 'scoped memory for tpu_custom_call.1']
    #allocation12 [shape = 'u8[131072]{0}', space=vmem, size = 0x20000, scoped, tag = 'input window, operand 2, single buffered']
    #allocation13 [shape = 'u8[2048]{0}', space=vmem, size = 0x800, scoped, tag = 'input window, operand 3, single buffered']
    #allocation14 [shape = 's32[1]{0}', space=sflag, size = 0x4, scoped, tag = 'scoped memory for tpu_custom_call.1']
    #allocation15 [shape = 'u8[131072]{0}', space=vmem, size = 0x20000, scoped, tag = 'input window, operand 4, single buffered']
    #allocation16 [shape = 'u8[131072]{0}', space=vmem, size = 0x20000, scoped, tag = 'input window, operand 5, single buffered']
    #allocation17 [shape = 's32[1]{0}', space=sflag, size = 0x4, scoped, tag = 'scoped memory for tpu_custom_call.1']
    #allocation18 [shape = 'u8[4096]{0}', space=vmem, size = 0x1000, scoped, tag = 'output window, operand 0, single buffered']
    #allocation19 [shape = 'u8[16384]{0}', space=vmem, size = 0x4000, scoped, tag = 'output window, operand 1, single buffered']
    #allocation20 [shape = 's32[1]{0}', space=sflag, size = 0x4, scoped, tag = 'scoped memory for tpu_custom_call.1']
    %20 = vsyncpa [#allocation8], 0
    %21 = vsyncpa [#allocation11], 0
    %22 = vsyncpa [#allocation14], 0
    %23 = vsyncpa [#allocation17], 0
    %24 = vsyncpa [#allocation9], 0
    %25 = vsyncpa [#allocation20], 0
    // Predicated region
    $region2: #{tpu_custom_call.1} parent=1 // pred_check
      _
    $region3: #{tpu_custom_call.1} parent=1 // pred_check_branch
      %27 = sbr.rel (0) target = $region5
    $region4: #{tpu_custom_call.1} parent=1 // pred_region
      %29 = vsyncadd [#allocation8], 0
      %s30 = sshll.u32 %s0, 4
      %s31 = int_to_ptr.hbm [resolvable:$true] %s30
      %s32 = sshll.u32 [#allocation7], 4
      %s33 = int_to_ptr.vmem [resolvable:$true] %s32
      %38 = dma.hbm_to_vmem [thread:$0]  %s31, 512, %s33, [#allocation8], 64, 64, 4
    $region5: #{tpu_custom_call.1} parent=1 // pred_fallthru
      _
    // Predicated region
    $region6: #{tpu_custom_call.1} parent=1 // pred_check
      _
    $region7: #{tpu_custom_call.1} parent=1 // pred_check_branch
      %40 = sbr.rel (0) target = $region9
    $region8: #{tpu_custom_call.1} parent=1 // pred_region
      %42 = vsyncadd [#allocation11], 0
      %s43 = sshll.u32 %s1, 4
      %s44 = int_to_ptr.hbm [resolvable:$true] %s43
      %s45 = sshll.u32 [#allocation10], 4
      %s46 = int_to_ptr.vmem [resolvable:$true] %s45
      %51 = dma.hbm_to_vmem [thread:$0]  %s44, 4096, %s46, [#allocation11], 256, 256, 16
    $region9: #{tpu_custom_call.1} parent=1 // pred_fallthru
      _
    // Predicated region
    $region10: #{tpu_custom_call.1} parent=1 // pred_check
      _
    $region11: #{tpu_custom_call.1} parent=1 // pred_check_branch
      %53 = sbr.rel (0) target = $region13
    $region12: #{tpu_custom_call.1} parent=1 // pred_region
      %55 = vsyncadd [#allocation11], 0
      %s56 = sshll.u32 %s2, 4
      %s57 = int_to_ptr.hbm [resolvable:$true] %s56
      %s58 = sshll.u32 [#allocation12], 4
      %s59 = int_to_ptr.vmem [resolvable:$true] %s58
      %64 = dma.hbm_to_vmem [thread:$0]  %s57, 4096, %s59, [#allocation11], 256, 256, 16
    $region13: #{tpu_custom_call.1} parent=1 // pred_fallthru
      _
    // Predicated region
    $region14: #{tpu_custom_call.1} parent=1 // pred_check
      _
    $region15: #{tpu_custom_call.1} parent=1 // pred_check_branch
      %66 = sbr.rel (0) target = $region17
    $region16: #{tpu_custom_call.1} parent=1 // pred_region
      %68 = vsyncadd [#allocation14], 0
      %s70 = sshll.u32 %s3, 4
      %s71 = int_to_ptr.hbm [resolvable:$true] %s70
      %s72 = sshll.u32 [#allocation13], 4
      %s73 = int_to_ptr.vmem [resolvable:$true] %s72
      %75 = dma.hbm_to_vmem [thread:$0]  %s71, 64, %s73, [#allocation14]
    $region17: #{tpu_custom_call.1} parent=1 // pred_fallthru
      _
    // Predicated region
    $region18: #{tpu_custom_call.1} parent=1 // pred_check
      _
    $region19: #{tpu_custom_call.1} parent=1 // pred_check_branch
      %77 = sbr.rel (0) target = $region21
    $region20: #{tpu_custom_call.1} parent=1 // pred_region
      %79 = vsyncadd [#allocation14], 0
      %s80 = sshll.u32 %s4, 4
      %s81 = int_to_ptr.hbm [resolvable:$true] %s80
      %s82 = sshll.u32 [#allocation15], 4
      %s83 = int_to_ptr.vmem [resolvable:$true] %s82
      %88 = dma.hbm_to_vmem [thread:$0]  %s81, 4096, %s83, [#allocation14], 256, 256, 16
    $region21: #{tpu_custom_call.1} parent=1 // pred_fallthru
      _
    // Predicated region
    $region22: #{tpu_custom_call.1} parent=1 // pred_check
      _
    $region23: #{tpu_custom_call.1} parent=1 // pred_check_branch
      %90 = sbr.rel (0) target = $region25
    $region24: #{tpu_custom_call.1} parent=1 // pred_region
      %92 = vsyncadd [#allocation17], 0
      %s93 = sshll.u32 %s5, 4
      %s94 = int_to_ptr.hbm [resolvable:$true] %s93
      %s95 = sshll.u32 [#allocation16], 4
      %s96 = int_to_ptr.vmem [resolvable:$true] %s95
      %101 = dma.hbm_to_vmem [thread:$0]  %s94, 4096, %s96, [#allocation17], 256, 256, 16
    $region25: #{tpu_custom_call.1} parent=1 // pred_fallthru
      _
    // Predicated region
    $region26: #{tpu_custom_call.1} parent=1 // pred_check
      _
    $region27: #{tpu_custom_call.1} parent=1 // pred_check_branch
      %103 = sbr.rel (0) target = $region29
    $region28: #{tpu_custom_call.1} parent=1 // pred_region
      _
    $region29: #{tpu_custom_call.1} parent=1 // pred_fallthru
      _
    // Predicated region
    $region30: #{tpu_custom_call.1} parent=1 // pred_check
      _
    $region31: #{tpu_custom_call.1} parent=1 // pred_check_branch
      %105 = sbr.rel (0) target = $region33
    $region32: #{tpu_custom_call.1} parent=1 // pred_region
      _
    $region33: #{tpu_custom_call.1} parent=1 // pred_fallthru
      _
    // Predicated region
    $region34: #{tpu_custom_call.1} parent=1 // pred_check
      _
    $region35: #{tpu_custom_call.1} parent=1 // pred_check_branch
      %107 = sbr.rel (0) target = $region37
    $region36: #{tpu_custom_call.1} parent=1 // pred_region
      _
    $region37: #{tpu_custom_call.1} parent=1 // pred_fallthru
      _
    // Predicated region
    $region38: #{tpu_custom_call.1} parent=1 // pred_check
      _
    $region39: #{tpu_custom_call.1} parent=1 // pred_check_branch
      %109 = sbr.rel (0) target = $region41
    $region40: #{tpu_custom_call.1} parent=1 // pred_region
      _
    $region41: #{tpu_custom_call.1} parent=1 // pred_fallthru
      _
    // Predicated region
    $region42: #{tpu_custom_call.1} parent=1 // pred_check
      _
    $region43: #{tpu_custom_call.1} parent=1 // pred_check_branch
      %111 = sbr.rel (0) target = $region45
    $region44: #{tpu_custom_call.1} parent=1 // pred_region
      %113 = dma.done [#allocation8], 512
    $region45: #{tpu_custom_call.1} parent=1 // pred_fallthru
      _
    // Predicated region
    $region46: #{tpu_custom_call.1} parent=1 // pred_check
      _
    $region47: #{tpu_custom_call.1} parent=1 // pred_check_branch
      %115 = sbr.rel (0) target = $region49
    $region48: #{tpu_custom_call.1} parent=1 // pred_region
      %117 = dma.done [#allocation11], 4096
    $region49: #{tpu_custom_call.1} parent=1 // pred_fallthru
      _
    // Predicated region
    $region50: #{tpu_custom_call.1} parent=1 // pred_check
      _
    $region51: #{tpu_custom_call.1} parent=1 // pred_check_branch
      %119 = sbr.rel (0) target = $region53
    $region52: #{tpu_custom_call.1} parent=1 // pred_region
      %121 = dma.done [#allocation11], 4096
    $region53: #{tpu_custom_call.1} parent=1 // pred_fallthru
      _
    // Predicated region
    $region54: #{tpu_custom_call.1} parent=1 // pred_check
      _
    $region55: #{tpu_custom_call.1} parent=1 // pred_check_branch
      %123 = sbr.rel (0) target = $region57
    $region56: #{tpu_custom_call.1} parent=1 // pred_region
      %125 = dma.done [#allocation14], 64
    $region57: #{tpu_custom_call.1} parent=1 // pred_fallthru
      _
    // Predicated region
    $region58: #{tpu_custom_call.1} parent=1 // pred_check
      _
    $region59: #{tpu_custom_call.1} parent=1 // pred_check_branch
      %127 = sbr.rel (0) target = $region61
    $region60: #{tpu_custom_call.1} parent=1 // pred_region
      %129 = dma.done [#allocation14], 4096
    $region61: #{tpu_custom_call.1} parent=1 // pred_fallthru
      _
    // Predicated region
    $region62: #{tpu_custom_call.1} parent=1 // pred_check
      _
    $region63: #{tpu_custom_call.1} parent=1 // pred_check_branch
      %131 = sbr.rel (0) target = $region65
    $region64: #{tpu_custom_call.1} parent=1 // pred_region
      %133 = dma.done [#allocation17], 4096
    $region65: #{tpu_custom_call.1} parent=1 // pred_fallthru
      _
    // Predicated region
    $region66: #{tpu_custom_call.1} parent=1 // pred_check
      _
    $region67: #{tpu_custom_call.1} parent=1 // pred_check_branch
      %136 = sbr.rel target = $region69
    $region68: #{tpu_custom_call.1} parent=1 // pred_region
      %137 = sst [smem:[#allocation23]] [#allocation22]
      %138 = sst [smem:[#allocation24]] [#allocation21]
    $region69: #{tpu_custom_call.1} parent=1 // pred_fallthru
      _
    %140 = shalt.err (0)
    %s142 = sshll.u32 %s7, 4
    %s143 = int_to_ptr.hbm [resolvable:$true] %s142
    %s144 = sshll.u32 [#allocation2], 4
    %s145 = int_to_ptr.vmem [resolvable:$true] %s144
    %147 = dma.hbm_to_vmem [thread:$0]  %s143, 1024, %s145, [#allocation6]
    %s148 = scalar_lea.sflag [#allocation6], 1
    // Predicated region
    $region70: #{tpu_custom_call.1} parent=1 // pred_check
      _
    $region71: #{tpu_custom_call.1} parent=1 // pred_check_branch
      %150 = sbr.rel target = $region73
    $region72: #{tpu_custom_call.1} parent=1 // pred_region
      %151 = sst [smem:[#allocation23]] [#allocation26]
      %152 = sst [smem:[#allocation24]] [#allocation25]
    $region73: #{tpu_custom_call.1} parent=1 // pred_fallthru
      _
    %154 = shalt.err (0)
    %s156 = sshll.u32 %s8, 4
    %s157 = int_to_ptr.hbm [resolvable:$true] %s156
    %s158 = sshll.u32 [#allocation3], 4
    %s159 = int_to_ptr.vmem [resolvable:$true] %s158
    %161 = dma.hbm_to_vmem [thread:$0]  %s157, 1024, %s159, %s148
    %s162 = scalar_lea.sflag [#allocation6], 2
    // Predicated region
    $region74: #{tpu_custom_call.1} parent=1 // pred_check
      _
    $region75: #{tpu_custom_call.1} parent=1 // pred_check_branch
      %164 = sbr.rel target = $region77
    $region76: #{tpu_custom_call.1} parent=1 // pred_region
      %165 = sst [smem:[#allocation23]] [#allocation28]
      %166 = sst [smem:[#allocation24]] [#allocation27]
    $region77: #{tpu_custom_call.1} parent=1 // pred_fallthru
      _
    %168 = shalt.err (0)
    %s170 = sshll.u32 %s9, 4
    %s171 = int_to_ptr.hbm [resolvable:$true] %s170
    %s172 = sshll.u32 [#allocation4], 4
    %s173 = int_to_ptr.vmem [resolvable:$true] %s172
    %175 = dma.hbm_to_vmem [thread:$0]  %s171, 1024, %s173, %s162
    %v176 = vld [vmem:[#allocation7] sm:$0xf]
    %v177 = vld [vmem:[#allocation7 + $0x4] sm:$0xf]
    %v178 = vld [vmem:[#allocation7 + $0x8] sm:$0xf]
    %v179 = vld [vmem:[#allocation7 + $0xc] sm:$0xf]
    %v180 = vld [vmem:[#allocation7 + $0x10] sm:$0xf]
    %v181 = vld [vmem:[#allocation7 + $0x14] sm:$0xf]
    %v182 = vld [vmem:[#allocation7 + $0x18] sm:$0xf]
    %v183 = vld [vmem:[#allocation7 + $0x1c] sm:$0xf]
    %v184 = vld [vmem:[#allocation10] sm:$0xff]
    %v185 = vld [vmem:[#allocation10 + $0x8] sm:$0xff]
    %v186 = vld [vmem:[#allocation10 + $0x10] sm:$0xff]
    %v187 = vld [vmem:[#allocation10 + $0x18] sm:$0xff]
    %v188 = vld [vmem:[#allocation10 + $0x20] sm:$0xff]
    %v189 = vld [vmem:[#allocation10 + $0x28] sm:$0xff]
    %v190 = vld [vmem:[#allocation10 + $0x30] sm:$0xff]
    %v191 = vld [vmem:[#allocation10 + $0x38] sm:$0xff]
    %v192 = vld [vmem:[#allocation10 + $0x40] sm:$0xff]
    %v193 = vld [vmem:[#allocation10 + $0x48] sm:$0xff]
    %v194 = vld [vmem:[#allocation10 + $0x50] sm:$0xff]
    %v195 = vld [vmem:[#allocation10 + $0x58] sm:$0xff]
    %v196 = vld [vmem:[#allocation10 + $0x60] sm:$0xff]
    %v197 = vld [vmem:[#allocation10 + $0x68] sm:$0xff]
    %v198 = vld [vmem:[#allocation10 + $0x70] sm:$0xff]
    %v199 = vld [vmem:[#allocation10 + $0x78] sm:$0xff]
    %v200 = vld [vmem:[#allocation10 + $0x80] sm:$0xff]
    %v201 = vld [vmem:[#allocation10 + $0x88] sm:$0xff]
    %v202 = vld [vmem:[#allocation10 + $0x90] sm:$0xff]
    %v203 = vld [vmem:[#allocation10 + $0x98] sm:$0xff]
    %v204 = vld [vmem:[#allocation10 + $0xa0] sm:$0xff]
    %v205 = vld [vmem:[#allocation10 + $0xa8] sm:$0xff]
    %v206 = vld [vmem:[#allocation10 + $0xb0] sm:$0xff]
    %v207 = vld [vmem:[#allocation10 + $0xb8] sm:$0xff]
    %v208 = vld [vmem:[#allocation10 + $0xc0] sm:$0xff]
    %v209 = vld [vmem:[#allocation10 + $0xc8] sm:$0xff]
    %v210 = vld [vmem:[#allocation10 + $0xd0] sm:$0xff]
    %v211 = vld [vmem:[#allocation10 + $0xd8] sm:$0xff]
    %v212 = vld [vmem:[#allocation10 + $0xe0] sm:$0xff]
    %v213 = vld [vmem:[#allocation10 + $0xe8] sm:$0xff]
    %v214 = vld [vmem:[#allocation10 + $0xf0] sm:$0xff]
    %v215 = vld [vmem:[#allocation10 + $0xf8] sm:$0xff]
    %v216 = vld [vmem:[#allocation13] sm:$0xf]
    %v218 = vperm.slane %v216, 0
    %v219 = vperm.slane %v216, 1
    %v220 = vperm.slane %v216, 2
    %v221 = vperm.slane %v216, 3
    %v234 = vunpack.c.l.b16 %v176
    %v235 = vunpack.c.l.b16 %v177
    %v236 = vunpack.c.l.b16 %v178
    %v237 = vunpack.c.l.b16 %v179
    %v238 = vunpack.c.l.b16 %v180
    %v239 = vunpack.c.l.b16 %v181
    %v240 = vunpack.c.l.b16 %v182
    %v241 = vunpack.c.l.b16 %v183
    %v242 = vpack.c.b16 %v235, %v234
    %v243 = vpack.c.b16 %v237, %v236
    %v244 = vpack.c.b16 %v239, %v238
    %v245 = vpack.c.b16 %v241, %v240
    %v282 = vunpack.c.l.b16 %v184
    %v283 = vunpack.c.h.b16 %v184
    %v284 = vunpack.c.l.b16 %v185
    %v285 = vunpack.c.h.b16 %v185
    %v286 = vunpack.c.l.b16 %v186
    %v287 = vunpack.c.h.b16 %v186
    %v288 = vunpack.c.l.b16 %v187
    %v289 = vunpack.c.h.b16 %v187
    %v290 = vunpack.c.l.b16 %v188
    %v291 = vunpack.c.h.b16 %v188
    %v292 = vunpack.c.l.b16 %v189
    %v293 = vunpack.c.h.b16 %v189
    %v294 = vunpack.c.l.b16 %v190
    %v295 = vunpack.c.h.b16 %v190
    %v296 = vunpack.c.l.b16 %v191
    %v297 = vunpack.c.h.b16 %v191
    %v298 = vunpack.c.l.b16 %v192
    %v299 = vunpack.c.h.b16 %v192
    %v300 = vunpack.c.l.b16 %v193
    %v301 = vunpack.c.h.b16 %v193
    %v302 = vunpack.c.l.b16 %v194
    %v303 = vunpack.c.h.b16 %v194
    %v304 = vunpack.c.l.b16 %v195
    %v305 = vunpack.c.h.b16 %v195
    %v306 = vunpack.c.l.b16 %v196
    %v307 = vunpack.c.h.b16 %v196
    %v308 = vunpack.c.l.b16 %v197
    %v309 = vunpack.c.h.b16 %v197
    %v310 = vunpack.c.l.b16 %v198
    %v311 = vunpack.c.h.b16 %v198
    %v312 = vunpack.c.l.b16 %v199
    %v313 = vunpack.c.h.b16 %v199
    %v314 = vunpack.c.l.b16 %v200
    %v315 = vunpack.c.h.b16 %v200
    %v316 = vunpack.c.l.b16 %v201
    %v317 = vunpack.c.h.b16 %v201
    %v318 = vunpack.c.l.b16 %v202
    %v319 = vunpack.c.h.b16 %v202
    %v320 = vunpack.c.l.b16 %v203
    %v321 = vunpack.c.h.b16 %v203
    %v322 = vunpack.c.l.b16 %v204
    %v323 = vunpack.c.h.b16 %v204
    %v324 = vunpack.c.l.b16 %v205
    %v325 = vunpack.c.h.b16 %v205
    %v326 = vunpack.c.l.b16 %v206
    %v327 = vunpack.c.h.b16 %v206
    %v328 = vunpack.c.l.b16 %v207
    %v329 = vunpack.c.h.b16 %v207
    %v330 = vunpack.c.l.b16 %v208
    %v331 = vunpack.c.h.b16 %v208
    %v332 = vunpack.c.l.b16 %v209
    %v333 = vunpack.c.h.b16 %v209
    %v334 = vunpack.c.l.b16 %v210
    %v335 = vunpack.c.h.b16 %v210
    %v336 = vunpack.c.l.b16 %v211
    %v337 = vunpack.c.h.b16 %v211
    %v338 = vunpack.c.l.b16 %v212
    %v339 = vunpack.c.h.b16 %v212
    %v340 = vunpack.c.l.b16 %v213
    %v341 = vunpack.c.h.b16 %v213
    %v342 = vunpack.c.l.b16 %v214
    %v343 = vunpack.c.h.b16 %v214
    %v344 = vunpack.c.l.b16 %v215
    %v345 = vunpack.c.h.b16 %v215
    %v346 = vpack.c.b16 %v286, %v282
    %v347 = vpack.c.b16 %v287, %v283
    %v348 = vpack.c.b16 %v288, %v284
    %v349 = vpack.c.b16 %v289, %v285
    %v350 = vpack.c.b16 %v294, %v290
    %v351 = vpack.c.b16 %v295, %v291
    %v352 = vpack.c.b16 %v296, %v292
    %v353 = vpack.c.b16 %v297, %v293
    %v354 = vpack.c.b16 %v302, %v298
    %v355 = vpack.c.b16 %v303, %v299
    %v356 = vpack.c.b16 %v304, %v300
    %v357 = vpack.c.b16 %v305, %v301
    %v358 = vpack.c.b16 %v310, %v306
    %v359 = vpack.c.b16 %v311, %v307
    %v360 = vpack.c.b16 %v312, %v308
    %v361 = vpack.c.b16 %v313, %v309
    %v362 = vpack.c.b16 %v318, %v314
    %v363 = vpack.c.b16 %v319, %v315
    %v364 = vpack.c.b16 %v320, %v316
    %v365 = vpack.c.b16 %v321, %v317
    %v366 = vpack.c.b16 %v326, %v322
    %v367 = vpack.c.b16 %v327, %v323
    %v368 = vpack.c.b16 %v328, %v324
    %v369 = vpack.c.b16 %v329, %v325
    %v370 = vpack.c.b16 %v334, %v330
    %v371 = vpack.c.b16 %v335, %v331
    %v372 = vpack.c.b16 %v336, %v332
    %v373 = vpack.c.b16 %v337, %v333
    %v374 = vpack.c.b16 %v342, %v338
    %v375 = vpack.c.b16 %v343, %v339
    %v376 = vpack.c.b16 %v344, %v340
    %v377 = vpack.c.b16 %v345, %v341
    %410 = vmatpush.bf16.msra.mxu0 %v374
    %411 = vmatpush.bf16.msra.mxu0 %v370
    %412 = vmatpush.bf16.msra.mxu0 %v366
    %413 = vmatpush.bf16.msra.mxu0 %v362
    %414 = vmatpush.bf16.msra.mxu0 %v358
    %415 = vmatpush.bf16.msra.mxu0 %v354
    %416 = vmatpush.bf16.msra.mxu0 %v350
    %417 = vmatpush.bf16.msra.mxu0 %v346
    %418 = vmatmul.bf16.gmra.mxu0 %v242
    %v419 = vpop.f32.mrf.mxu0
    %v420 = vadd.f32 %v218, %v419
    %v421 = vpop.f32.mrf.mxu0
    %v422 = vadd.f32 %v218, %v421
    %423 = vmatmul.bf16.gmra.mxu0 %v243
    %v424 = vpop.f32.mrf.mxu0
    %v425 = vadd.f32 %v218, %v424
    %v426 = vpop.f32.mrf.mxu0
    %v427 = vadd.f32 %v218, %v426
    %428 = vmatmul.bf16.gmra.mxu0 %v244
    %v429 = vpop.f32.mrf.mxu0
    %v430 = vadd.f32 %v218, %v429
    %v431 = vpop.f32.mrf.mxu0
    %v432 = vadd.f32 %v218, %v431
    %433 = vmatmul.bf16.gmra.mxu0 %v245
    %v434 = vpop.f32.mrf.mxu0
    %v435 = vadd.f32 %v218, %v434
    %v436 = vpop.f32.mrf.mxu0
    %v437 = vadd.f32 %v218, %v436
    %438 = vdwg.mxu0
    %439 = vmatpush.bf16.msra.mxu0 %v375
    %440 = vmatpush.bf16.msra.mxu0 %v371
    %441 = vmatpush.bf16.msra.mxu0 %v367
    %442 = vmatpush.bf16.msra.mxu0 %v363
    %443 = vmatpush.bf16.msra.mxu0 %v359
    %444 = vmatpush.bf16.msra.mxu0 %v355
    %445 = vmatpush.bf16.msra.mxu0 %v351
    %446 = vmatpush.bf16.msra.mxu0 %v347
    %447 = vmatmul.bf16.gmra.mxu0 %v242
    %v448 = vpop.f32.mrf.mxu0
    %v449 = vadd.f32 %v219, %v448
    %v450 = vpop.f32.mrf.mxu0
    %v451 = vadd.f32 %v219, %v450
    %452 = vmatmul.bf16.gmra.mxu0 %v243
    %v453 = vpop.f32.mrf.mxu0
    %v454 = vadd.f32 %v219, %v453
    %v455 = vpop.f32.mrf.mxu0
    %v456 = vadd.f32 %v219, %v455
    %457 = vmatmul.bf16.gmra.mxu0 %v244
    %v458 = vpop.f32.mrf.mxu0
    %v459 = vadd.f32 %v219, %v458
    %v460 = vpop.f32.mrf.mxu0
    %v461 = vadd.f32 %v219, %v460
    %462 = vmatmul.bf16.gmra.mxu0 %v245
    %v463 = vpop.f32.mrf.mxu0
    %v464 = vadd.f32 %v219, %v463
    %v465 = vpop.f32.mrf.mxu0
    %v466 = vadd.f32 %v219, %v465
    %467 = vdwg.mxu0
    %468 = vmatpush.bf16.msra.mxu0 %v376
    %469 = vmatpush.bf16.msra.mxu0 %v372
    %470 = vmatpush.bf16.msra.mxu0 %v368
    %471 = vmatpush.bf16.msra.mxu0 %v364
    %472 = vmatpush.bf16.msra.mxu0 %v360
    %473 = vmatpush.bf16.msra.mxu0 %v356
    %474 = vmatpush.bf16.msra.mxu0 %v352
    %475 = vmatpush.bf16.msra.mxu0 %v348
    %476 = vmatmul.bf16.gmra.mxu0 %v242
    %v477 = vpop.f32.mrf.mxu0
    %v478 = vadd.f32 %v220, %v477
    %v479 = vpop.f32.mrf.mxu0
    %v480 = vadd.f32 %v220, %v479
    %481 = vmatmul.bf16.gmra.mxu0 %v243
    %v482 = vpop.f32.mrf.mxu0
    %v483 = vadd.f32 %v220, %v482
    %v484 = vpop.f32.mrf.mxu0
    %v485 = vadd.f32 %v220, %v484
    %486 = vmatmul.bf16.gmra.mxu0 %v244
    %v487 = vpop.f32.mrf.mxu0
    %v488 = vadd.f32 %v220, %v487
    %v489 = vpop.f32.mrf.mxu0
    %v490 = vadd.f32 %v220, %v489
    %491 = vmatmul.bf16.gmra.mxu0 %v245
    %v492 = vpop.f32.mrf.mxu0
    %v493 = vadd.f32 %v220, %v492
    %v494 = vpop.f32.mrf.mxu0
    %v495 = vadd.f32 %v220, %v494
    %496 = vdwg.mxu0
    %497 = vmatpush.bf16.msra.mxu0 %v377
    %498 = vmatpush.bf16.msra.mxu0 %v373
    %499 = vmatpush.bf16.msra.mxu0 %v369
    %500 = vmatpush.bf16.msra.mxu0 %v365
    %501 = vmatpush.bf16.msra.mxu0 %v361
    %502 = vmatpush.bf16.msra.mxu0 %v357
    %503 = vmatpush.bf16.msra.mxu0 %v353
    %504 = vmatpush.bf16.msra.mxu0 %v349
    %505 = vmatmul.bf16.gmra.mxu0 %v242
    %v506 = vpop.f32.mrf.mxu0
    %v507 = vadd.f32 %v221, %v506
    %v508 = vpop.f32.mrf.mxu0
    %v509 = vadd.f32 %v221, %v508
    %510 = vmatmul.bf16.gmra.mxu0 %v243
    %v511 = vpop.f32.mrf.mxu0
    %v512 = vadd.f32 %v221, %v511
    %v513 = vpop.f32.mrf.mxu0
    %v514 = vadd.f32 %v221, %v513
    %515 = vmatmul.bf16.gmra.mxu0 %v244
    %v516 = vpop.f32.mrf.mxu0
    %v517 = vadd.f32 %v221, %v516
    %v518 = vpop.f32.mrf.mxu0
    %v519 = vadd.f32 %v221, %v518
    %520 = vmatmul.bf16.gmra.mxu0 %v245
    %v521 = vpop.f32.mrf.mxu0
    %v522 = vadd.f32 %v221, %v521
    %v523 = vpop.f32.mrf.mxu0
    %v524 = vadd.f32 %v221, %v523
    %525 = vdwg.mxu0
    %526 = vst [vmem:[#allocation5] sm:$0xff] %v420
    %527 = vst [vmem:[#allocation5 + $0x8] sm:$0xff] %v449
    %528 = vst [vmem:[#allocation5 + $0x10] sm:$0xff] %v478
    %529 = vst [vmem:[#allocation5 + $0x18] sm:$0xff] %v507
    %530 = vst [vmem:[#allocation5 + $0x20] sm:$0xff] %v422
    %531 = vst [vmem:[#allocation5 + $0x28] sm:$0xff] %v451
    %532 = vst [vmem:[#allocation5 + $0x30] sm:$0xff] %v480
    %533 = vst [vmem:[#allocation5 + $0x38] sm:$0xff] %v509
    %534 = vst [vmem:[#allocation5 + $0x40] sm:$0xff] %v425
    %535 = vst [vmem:[#allocation5 + $0x48] sm:$0xff] %v454
    %536 = vst [vmem:[#allocation5 + $0x50] sm:$0xff] %v483
    %537 = vst [vmem:[#allocation5 + $0x58] sm:$0xff] %v512
    %538 = vst [vmem:[#allocation5 + $0x60] sm:$0xff] %v427
    %539 = vst [vmem:[#allocation5 + $0x68] sm:$0xff] %v456
    %540 = vst [vmem:[#allocation5 + $0x70] sm:$0xff] %v485
    %541 = vst [vmem:[#allocation5 + $0x78] sm:$0xff] %v514
    %542 = vst [vmem:[#allocation5 + $0x80] sm:$0xff] %v430
    %543 = vst [vmem:[#allocation5 + $0x88] sm:$0xff] %v459
    %544 = vst [vmem:[#allocation5 + $0x90] sm:$0xff] %v488
    %545 = vst [vmem:[#allocation5 + $0x98] sm:$0xff] %v517
    %546 = vst [vmem:[#allocation5 + $0xa0] sm:$0xff] %v432
    %547 = vst [vmem:[#allocation5 + $0xa8] sm:$0xff] %v461
    %548 = vst [vmem:[#allocation5 + $0xb0] sm:$0xff] %v490
    %549 = vst [vmem:[#allocation5 + $0xb8] sm:$0xff] %v519
    %550 = vst [vmem:[#allocation5 + $0xc0] sm:$0xff] %v435
    %551 = vst [vmem:[#allocation5 + $0xc8] sm:$0xff] %v464
    %552 = vst [vmem:[#allocation5 + $0xd0] sm:$0xff] %v493
    %553 = vst [vmem:[#allocation5 + $0xd8] sm:$0xff] %v522
    %554 = vst [vmem:[#allocation5 + $0xe0] sm:$0xff] %v437
    %555 = vst [vmem:[#allocation5 + $0xe8] sm:$0xff] %v466
    %556 = vst [vmem:[#allocation5 + $0xf0] sm:$0xff] %v495
    %557 = vst [vmem:[#allocation5 + $0xf8] sm:$0xff] %v524
    %v558 = vld [vmem:[#allocation12] sm:$0xff]
    %v559 = vld [vmem:[#allocation12 + $0x8] sm:$0xff]
    %v560 = vld [vmem:[#allocation12 + $0x10] sm:$0xff]
    %v561 = vld [vmem:[#allocation12 + $0x18] sm:$0xff]
    %v562 = vld [vmem:[#allocation12 + $0x20] sm:$0xff]
    %v563 = vld [vmem:[#allocation12 + $0x28] sm:$0xff]
    %v564 = vld [vmem:[#allocation12 + $0x30] sm:$0xff]
    %v565 = vld [vmem:[#allocation12 + $0x38] sm:$0xff]
    %v566 = vld [vmem:[#allocation12 + $0x40] sm:$0xff]
    %v567 = vld [vmem:[#allocation12 + $0x48] sm:$0xff]
    %v568 = vld [vmem:[#allocation12 + $0x50] sm:$0xff]
    %v569 = vld [vmem:[#allocation12 + $0x58] sm:$0xff]
    %v570 = vld [vmem:[#allocation12 + $0x60] sm:$0xff]
    %v571 = vld [vmem:[#allocation12 + $0x68] sm:$0xff]
    %v572 = vld [vmem:[#allocation12 + $0x70] sm:$0xff]
    %v573 = vld [vmem:[#allocation12 + $0x78] sm:$0xff]
    %v574 = vld [vmem:[#allocation12 + $0x80] sm:$0xff]
    %v575 = vld [vmem:[#allocation12 + $0x88] sm:$0xff]
    %v576 = vld [vmem:[#allocation12 + $0x90] sm:$0xff]
    %v577 = vld [vmem:[#allocation12 + $0x98] sm:$0xff]
    %v578 = vld [vmem:[#allocation12 + $0xa0] sm:$0xff]
    %v579 = vld [vmem:[#allocation12 + $0xa8] sm:$0xff]
    %v580 = vld [vmem:[#allocation12 + $0xb0] sm:$0xff]
    %v581 = vld [vmem:[#allocation12 + $0xb8] sm:$0xff]
    %v582 = vld [vmem:[#allocation12 + $0xc0] sm:$0xff]
    %v583 = vld [vmem:[#allocation12 + $0xc8] sm:$0xff]
    %v584 = vld [vmem:[#allocation12 + $0xd0] sm:$0xff]
    %v585 = vld [vmem:[#allocation12 + $0xd8] sm:$0xff]
    %v586 = vld [vmem:[#allocation12 + $0xe0] sm:$0xff]
    %v587 = vld [vmem:[#allocation12 + $0xe8] sm:$0xff]
    %v588 = vld [vmem:[#allocation12 + $0xf0] sm:$0xff]
    %v589 = vld [vmem:[#allocation12 + $0xf8] sm:$0xff]
    %v590 = vld [vmem:[#allocation15] sm:$0xff]
    %v591 = vld [vmem:[#allocation15 + $0x8] sm:$0xff]
    %v592 = vld [vmem:[#allocation15 + $0x10] sm:$0xff]
    %v593 = vld [vmem:[#allocation15 + $0x18] sm:$0xff]
    %v594 = vld [vmem:[#allocation15 + $0x20] sm:$0xff]
    %v595 = vld [vmem:[#allocation15 + $0x28] sm:$0xff]
    %v596 = vld [vmem:[#allocation15 + $0x30] sm:$0xff]
    %v597 = vld [vmem:[#allocation15 + $0x38] sm:$0xff]
    %v598 = vld [vmem:[#allocation15 + $0x40] sm:$0xff]
    %v599 = vld [vmem:[#allocation15 + $0x48] sm:$0xff]
    %v600 = vld [vmem:[#allocation15 + $0x50] sm:$0xff]
    %v601 = vld [vmem:[#allocation15 + $0x58] sm:$0xff]
    %v602 = vld [vmem:[#allocation15 + $0x60] sm:$0xff]
    %v603 = vld [vmem:[#allocation15 + $0x68] sm:$0xff]
    %v604 = vld [vmem:[#allocation15 + $0x70] sm:$0xff]
    %v605 = vld [vmem:[#allocation15 + $0x78] sm:$0xff]
    %v606 = vld [vmem:[#allocation15 + $0x80] sm:$0xff]
    %v607 = vld [vmem:[#allocation15 + $0x88] sm:$0xff]
    %v608 = vld [vmem:[#allocation15 + $0x90] sm:$0xff]
    %v609 = vld [vmem:[#allocation15 + $0x98] sm:$0xff]
    %v610 = vld [vmem:[#allocation15 + $0xa0] sm:$0xff]
    %v611 = vld [vmem:[#allocation15 + $0xa8] sm:$0xff]
    %v612 = vld [vmem:[#allocation15 + $0xb0] sm:$0xff]
    %v613 = vld [vmem:[#allocation15 + $0xb8] sm:$0xff]
    %v614 = vld [vmem:[#allocation15 + $0xc0] sm:$0xff]
    %v615 = vld [vmem:[#allocation15 + $0xc8] sm:$0xff]
    %v616 = vld [vmem:[#allocation15 + $0xd0] sm:$0xff]
    %v617 = vld [vmem:[#allocation15 + $0xd8] sm:$0xff]
    %v618 = vld [vmem:[#allocation15 + $0xe0] sm:$0xff]
    %v619 = vld [vmem:[#allocation15 + $0xe8] sm:$0xff]
    %v620 = vld [vmem:[#allocation15 + $0xf0] sm:$0xff]
    %v621 = vld [vmem:[#allocation15 + $0xf8] sm:$0xff]
    %v622 = vld [vmem:[#allocation16] sm:$0xff]
    %v623 = vld [vmem:[#allocation16 + $0x8] sm:$0xff]
    %v624 = vld [vmem:[#allocation16 + $0x10] sm:$0xff]
    %v625 = vld [vmem:[#allocation16 + $0x18] sm:$0xff]
    %v626 = vld [vmem:[#allocation16 + $0x20] sm:$0xff]
    %v627 = vld [vmem:[#allocation16 + $0x28] sm:$0xff]
    %v628 = vld [vmem:[#allocation16 + $0x30] sm:$0xff]
    %v629 = vld [vmem:[#allocation16 + $0x38] sm:$0xff]
    %v630 = vld [vmem:[#allocation16 + $0x40] sm:$0xff]
    %v631 = vld [vmem:[#allocation16 + $0x48] sm:$0xff]
    %v632 = vld [vmem:[#allocation16 + $0x50] sm:$0xff]
    %v633 = vld [vmem:[#allocation16 + $0x58] sm:$0xff]
    %v634 = vld [vmem:[#allocation16 + $0x60] sm:$0xff]
    %v635 = vld [vmem:[#allocation16 + $0x68] sm:$0xff]
    %v636 = vld [vmem:[#allocation16 + $0x70] sm:$0xff]
    %v637 = vld [vmem:[#allocation16 + $0x78] sm:$0xff]
    %v638 = vld [vmem:[#allocation16 + $0x80] sm:$0xff]
    %v639 = vld [vmem:[#allocation16 + $0x88] sm:$0xff]
    %v640 = vld [vmem:[#allocation16 + $0x90] sm:$0xff]
    %v641 = vld [vmem:[#allocation16 + $0x98] sm:$0xff]
    %v642 = vld [vmem:[#allocation16 + $0xa0] sm:$0xff]
    %v643 = vld [vmem:[#allocation16 + $0xa8] sm:$0xff]
    %v644 = vld [vmem:[#allocation16 + $0xb0] sm:$0xff]
    %v645 = vld [vmem:[#allocation16 + $0xb8] sm:$0xff]
    %v646 = vld [vmem:[#allocation16 + $0xc0] sm:$0xff]
    %v647 = vld [vmem:[#allocation16 + $0xc8] sm:$0xff]
    %v648 = vld [vmem:[#allocation16 + $0xd0] sm:$0xff]
    %v649 = vld [vmem:[#allocation16 + $0xd8] sm:$0xff]
    %v650 = vld [vmem:[#allocation16 + $0xe0] sm:$0xff]
    %v651 = vld [vmem:[#allocation16 + $0xe8] sm:$0xff]
    %v652 = vld [vmem:[#allocation16 + $0xf0] sm:$0xff]
    %v653 = vld [vmem:[#allocation16 + $0xf8] sm:$0xff]
    %v654 = vld [vmem:[%s6] sm:$0xf]
    %s655 = smul.u32 0, 4
    %s656 = smul.addr %s655, 8
    %s657 = scalar_lea.vmem [#allocation5], %s656
    %v658 = vld [vmem:[%s657] sm:$0xff]
    %v659 = vld [vmem:[%s657 + $0x8] sm:$0xff]
    %v660 = vld [vmem:[%s657 + $0x10] sm:$0xff]
    %v661 = vld [vmem:[%s657 + $0x18] sm:$0xff]
    %v694 = vunpack.c.l.b16 %v558
    %v695 = vunpack.c.h.b16 %v558
    %v696 = vunpack.c.l.b16 %v559
    %v697 = vunpack.c.h.b16 %v559
    %v698 = vunpack.c.l.b16 %v560
    %v699 = vunpack.c.h.b16 %v560
    %v700 = vunpack.c.l.b16 %v561
    %v701 = vunpack.c.h.b16 %v561
    %v702 = vunpack.c.l.b16 %v562
    %v703 = vunpack.c.h.b16 %v562
    %v704 = vunpack.c.l.b16 %v563
    %v705 = vunpack.c.h.b16 %v563
    %v706 = vunpack.c.l.b16 %v564
    %v707 = vunpack.c.h.b16 %v564
    %v708 = vunpack.c.l.b16 %v565
    %v709 = vunpack.c.h.b16 %v565
    %v710 = vunpack.c.l.b16 %v566
    %v711 = vunpack.c.h.b16 %v566
    %v712 = vunpack.c.l.b16 %v567
    %v713 = vunpack.c.h.b16 %v567
    %v714 = vunpack.c.l.b16 %v568
    %v715 = vunpack.c.h.b16 %v568
    %v716 = vunpack.c.l.b16 %v569
    %v717 = vunpack.c.h.b16 %v569
    %v718 = vunpack.c.l.b16 %v570
    %v719 = vunpack.c.h.b16 %v570
    %v720 = vunpack.c.l.b16 %v571
    %v721 = vunpack.c.h.b16 %v571
    %v722 = vunpack.c.l.b16 %v572
    %v723 = vunpack.c.h.b16 %v572
    %v724 = vunpack.c.l.b16 %v573
    %v725 = vunpack.c.h.b16 %v573
    %v726 = vunpack.c.l.b16 %v574
    %v727 = vunpack.c.h.b16 %v574
    %v728 = vunpack.c.l.b16 %v575
    %v729 = vunpack.c.h.b16 %v575
    %v730 = vunpack.c.l.b16 %v576
    %v731 = vunpack.c.h.b16 %v576
    %v732 = vunpack.c.l.b16 %v577
    %v733 = vunpack.c.h.b16 %v577
    %v734 = vunpack.c.l.b16 %v578
    %v735 = vunpack.c.h.b16 %v578
    %v736 = vunpack.c.l.b16 %v579
    %v737 = vunpack.c.h.b16 %v579
    %v738 = vunpack.c.l.b16 %v580
    %v739 = vunpack.c.h.b16 %v580
    %v740 = vunpack.c.l.b16 %v581
    %v741 = vunpack.c.h.b16 %v581
    %v742 = vunpack.c.l.b16 %v582
    %v743 = vunpack.c.h.b16 %v582
    %v744 = vunpack.c.l.b16 %v583
    %v745 = vunpack.c.h.b16 %v583
    %v746 = vunpack.c.l.b16 %v584
    %v747 = vunpack.c.h.b16 %v584
    %v748 = vunpack.c.l.b16 %v585
    %v749 = vunpack.c.h.b16 %v585
    %v750 = vunpack.c.l.b16 %v586
    %v751 = vunpack.c.h.b16 %v586
    %v752 = vunpack.c.l.b16 %v587
    %v753 = vunpack.c.h.b16 %v587
    %v754 = vunpack.c.l.b16 %v588
    %v755 = vunpack.c.h.b16 %v588
    %v756 = vunpack.c.l.b16 %v589
    %v757 = vunpack.c.h.b16 %v589
    %v758 = vpack.c.b16 %v698, %v694
    %v759 = vpack.c.b16 %v699, %v695
    %v760 = vpack.c.b16 %v700, %v696
    %v761 = vpack.c.b16 %v701, %v697
    %v762 = vpack.c.b16 %v706, %v702
    %v763 = vpack.c.b16 %v707, %v703
    %v764 = vpack.c.b16 %v708, %v704
    %v765 = vpack.c.b16 %v709, %v705
    %v766 = vpack.c.b16 %v714, %v710
    %v767 = vpack.c.b16 %v715, %v711
    %v768 = vpack.c.b16 %v716, %v712
    %v769 = vpack.c.b16 %v717, %v713
    %v770 = vpack.c.b16 %v722, %v718
    %v771 = vpack.c.b16 %v723, %v719
    %v772 = vpack.c.b16 %v724, %v720
    %v773 = vpack.c.b16 %v725, %v721
    %v774 = vpack.c.b16 %v730, %v726
    %v775 = vpack.c.b16 %v731, %v727
    %v776 = vpack.c.b16 %v732, %v728
    %v777 = vpack.c.b16 %v733, %v729
    %v778 = vpack.c.b16 %v738, %v734
    %v779 = vpack.c.b16 %v739, %v735
    %v780 = vpack.c.b16 %v740, %v736
    %v781 = vpack.c.b16 %v741, %v737
    %v782 = vpack.c.b16 %v746, %v742
    %v783 = vpack.c.b16 %v747, %v743
    %v784 = vpack.c.b16 %v748, %v744
    %v785 = vpack.c.b16 %v749, %v745
    %v786 = vpack.c.b16 %v754, %v750
    %v787 = vpack.c.b16 %v755, %v751
    %v788 = vpack.c.b16 %v756, %v752
    %v789 = vpack.c.b16 %v757, %v753
    %822 = vmatpush.bf16.msra.mxu0 %v786
    %823 = vmatpush.bf16.msra.mxu0 %v782
    %824 = vmatpush.bf16.msra.mxu0 %v778
    %825 = vmatpush.bf16.msra.mxu0 %v774
    %826 = vmatpush.bf16.msra.mxu0 %v770
    %827 = vmatpush.bf16.msra.mxu0 %v766
    %828 = vmatpush.bf16.msra.mxu0 %v762
    %829 = vmatpush.bf16.msra.mxu0 %v758
    %830 = vmatmul.bf16.gmra.mxu0 0
    %v831 = vpop.f32.mrf.mxu0
    %v832 = vadd.f32 0.0, %v831
    %v833 = vpop.f32.mrf.mxu0
    %834 = vdwg.mxu0
    %835 = vmatpush.bf16.msra.mxu0 %v787
    %836 = vmatpush.bf16.msra.mxu0 %v783
    %837 = vmatpush.bf16.msra.mxu0 %v779
    %838 = vmatpush.bf16.msra.mxu0 %v775
    %839 = vmatpush.bf16.msra.mxu0 %v771
    %840 = vmatpush.bf16.msra.mxu0 %v767
    %841 = vmatpush.bf16.msra.mxu0 %v763
    %842 = vmatpush.bf16.msra.mxu0 %v759
    %843 = vmatmul.bf16.gmra.mxu0 0
    %v844 = vpop.f32.mrf.mxu0
    %v845 = vadd.f32 0.0, %v844
    %v846 = vpop.f32.mrf.mxu0
    %847 = vdwg.mxu0
    %848 = vmatpush.bf16.msra.mxu0 %v788
    %849 = vmatpush.bf16.msra.mxu0 %v784
    %850 = vmatpush.bf16.msra.mxu0 %v780
    %851 = vmatpush.bf16.msra.mxu0 %v776
    %852 = vmatpush.bf16.msra.mxu0 %v772
    %853 = vmatpush.bf16.msra.mxu0 %v768
    %854 = vmatpush.bf16.msra.mxu0 %v764
    %855 = vmatpush.bf16.msra.mxu0 %v760
    %856 = vmatmul.bf16.gmra.mxu0 0
    %v857 = vpop.f32.mrf.mxu0
    %v858 = vadd.f32 0.0, %v857
    %v859 = vpop.f32.mrf.mxu0
    %860 = vdwg.mxu0
    %861 = vmatpush.bf16.msra.mxu0 %v789
    %862 = vmatpush.bf16.msra.mxu0 %v785
    %863 = vmatpush.bf16.msra.mxu0 %v781
    %864 = vmatpush.bf16.msra.mxu0 %v777
    %865 = vmatpush.bf16.msra.mxu0 %v773
    %866 = vmatpush.bf16.msra.mxu0 %v769
    %867 = vmatpush.bf16.msra.mxu0 %v765
    %868 = vmatpush.bf16.msra.mxu0 %v761
    %869 = vmatmul.bf16.gmra.mxu0 0
    %v870 = vpop.f32.mrf.mxu0
    %v871 = vadd.f32 0.0, %v870
    %v872 = vpop.f32.mrf.mxu0
    %873 = vdwg.mxu0
    %v874 = vadd.f32 %v658, %v832
    %v875 = vadd.f32 %v659, %v845
    %v876 = vadd.f32 %v660, %v858
    %v877 = vadd.f32 %v661, %v871
    %v878 = vxor.u32 %v874, 2147483648
    %v879 = vmul.f32 %v878, 1.442695
    %v880 = vpow.pop %v879
    %v881 = vadd.f32 %v880, 1.0
    %v882 = vrcp.pop %v881
    %v883 = vmul.f32 %v881, %v882
    %v884 = vsub.f32 1.0, %v883
    %v885 = vmul.f32 %v882, %v884
    %v886 = vadd.f32 %v882, %v885
    %vm887 = vweird.f32 %v881
    %vm888 = vweird.f32 %v882
    %vm889 = vmor %vm887, %vm888
    %v890 = vsel %vm889, %v882, %v886
    %v891 = vand.u32 2147483647, %v881
    %vm892 = vcmp.eq.f32.partialorder %v891, 8.507059e+37
    %v893 = vand.u32 %v881, 2147483648
    %v894 = vor.u32 1.1754944e-38, %v893
    %v895 = vsel %vm892, %v894, %v890
    %v896 = vmul.f32 1.0, %v895
    %v897 = vxor.u32 %v875, 2147483648
    %v898 = vmul.f32 %v897, 1.442695
    %v899 = vpow.pop %v898
    %v900 = vadd.f32 %v899, 1.0
    %v901 = vrcp.pop %v900
    %v902 = vmul.f32 %v900, %v901
    %v903 = vsub.f32 1.0, %v902
    %v904 = vmul.f32 %v901, %v903
    %v905 = vadd.f32 %v901, %v904
    %vm906 = vweird.f32 %v900
    %vm907 = vweird.f32 %v901
    %vm908 = vmor %vm906, %vm907
    %v909 = vsel %vm908, %v901, %v905
    %v910 = vand.u32 2147483647, %v900
    %vm911 = vcmp.eq.f32.partialorder %v910, 8.507059e+37
    %v912 = vand.u32 %v900, 2147483648
    %v913 = vor.u32 1.1754944e-38, %v912
    %v914 = vsel %vm911, %v913, %v909
    %v915 = vmul.f32 1.0, %v914
    %v916 = vtanh.pop %v876
    %v917 = vxor.u32 %v877, 2147483648
    %v918 = vmul.f32 %v917, 1.442695
    %v919 = vpow.pop %v918
    %v920 = vadd.f32 %v919, 1.0
    %v921 = vrcp.pop %v920
    %v922 = vmul.f32 %v920, %v921
    %v923 = vsub.f32 1.0, %v922
    %v924 = vmul.f32 %v921, %v923
    %v925 = vadd.f32 %v921, %v924
    %vm926 = vweird.f32 %v920
    %vm927 = vweird.f32 %v921
    %vm928 = vmor %vm926, %vm927
    %v929 = vsel %vm928, %v921, %v925
    %v930 = vand.u32 2147483647, %v920
    %vm931 = vcmp.eq.f32.partialorder %v930, 8.507059e+37
    %v932 = vand.u32 %v920, 2147483648
    %v933 = vor.u32 1.1754944e-38, %v932
    %v934 = vsel %vm931, %v933, %v929
    %v935 = vmul.f32 1.0, %v934
    %v936 = vmul.f32 %v915, 0.0
    %v937 = vmul.f32 %v896, %v916
    %v938 = vadd.f32 %v936, %v937
    %v939 = vtanh.pop %v938
    %v940 = vmul.f32 %v935, %v939
    %v941 = vpack.c.bf16 %v940, %v940
    %v974 = vunpack.c.l.b16 %v622
    %v975 = vunpack.c.h.b16 %v622
    %v976 = vunpack.c.l.b16 %v623
    %v977 = vunpack.c.h.b16 %v623
    %v978 = vunpack.c.l.b16 %v624
    %v979 = vunpack.c.h.b16 %v624
    %v980 = vunpack.c.l.b16 %v625
    %v981 = vunpack.c.h.b16 %v625
    %v982 = vunpack.c.l.b16 %v626
    %v983 = vunpack.c.h.b16 %v626
    %v984 = vunpack.c.l.b16 %v627
    %v985 = vunpack.c.h.b16 %v627
    %v986 = vunpack.c.l.b16 %v628
    %v987 = vunpack.c.h.b16 %v628
    %v988 = vunpack.c.l.b16 %v629
    %v989 = vunpack.c.h.b16 %v629
    %v990 = vunpack.c.l.b16 %v630
    %v991 = vunpack.c.h.b16 %v630
    %v992 = vunpack.c.l.b16 %v631
    %v993 = vunpack.c.h.b16 %v631
    %v994 = vunpack.c.l.b16 %v632
    %v995 = vunpack.c.h.b16 %v632
    %v996 = vunpack.c.l.b16 %v633
    %v997 = vunpack.c.h.b16 %v633
    %v998 = vunpack.c.l.b16 %v634
    %v999 = vunpack.c.h.b16 %v634
    %v1000 = vunpack.c.l.b16 %v635
    %v1001 = vunpack.c.h.b16 %v635
    %v1002 = vunpack.c.l.b16 %v636
    %v1003 = vunpack.c.h.b16 %v636
    %v1004 = vunpack.c.l.b16 %v637
    %v1005 = vunpack.c.h.b16 %v637
    %v1006 = vunpack.c.l.b16 %v638
    %v1007 = vunpack.c.h.b16 %v638
    %v1008 = vunpack.c.l.b16 %v639
    %v1009 = vunpack.c.h.b16 %v639
    %v1010 = vunpack.c.l.b16 %v640
    %v1011 = vunpack.c.h.b16 %v640
    %v1012 = vunpack.c.l.b16 %v641
    %v1013 = vunpack.c.h.b16 %v641
    %v1014 = vunpack.c.l.b16 %v642
    %v1015 = vunpack.c.h.b16 %v642
    %v1016 = vunpack.c.l.b16 %v643
    %v1017 = vunpack.c.h.b16 %v643
    %v1018 = vunpack.c.l.b16 %v644
    %v1019 = vunpack.c.h.b16 %v644
    %v1020 = vunpack.c.l.b16 %v645
    %v1021 = vunpack.c.h.b16 %v645
    %v1022 = vunpack.c.l.b16 %v646
    %v1023 = vunpack.c.h.b16 %v646
    %v1024 = vunpack.c.l.b16 %v647
    %v1025 = vunpack.c.h.b16 %v647
    %v1026 = vunpack.c.l.b16 %v648
    %v1027 = vunpack.c.h.b16 %v648
    %v1028 = vunpack.c.l.b16 %v649
    %v1029 = vunpack.c.h.b16 %v649
    %v1030 = vunpack.c.l.b16 %v650
    %v1031 = vunpack.c.h.b16 %v650
    %v1032 = vunpack.c.l.b16 %v651
    %v1033 = vunpack.c.h.b16 %v651
    %v1034 = vunpack.c.l.b16 %v652
    %v1035 = vunpack.c.h.b16 %v652
    %v1036 = vunpack.c.l.b16 %v653
    %v1037 = vunpack.c.h.b16 %v653
    %v1038 = vpack.c.b16 %v978, %v974
    %v1039 = vpack.c.b16 %v979, %v975
    %v1040 = vpack.c.b16 %v980, %v976
    %v1041 = vpack.c.b16 %v981, %v977
    %v1042 = vpack.c.b16 %v986, %v982
    %v1043 = vpack.c.b16 %v987, %v983
    %v1044 = vpack.c.b16 %v988, %v984
    %v1045 = vpack.c.b16 %v989, %v985
    %v1046 = vpack.c.b16 %v994, %v990
    %v1047 = vpack.c.b16 %v995, %v991
    %v1048 = vpack.c.b16 %v996, %v992
    %v1049 = vpack.c.b16 %v997, %v993
    %v1050 = vpack.c.b16 %v1002, %v998
    %v1051 = vpack.c.b16 %v1003, %v999
    %v1052 = vpack.c.b16 %v1004, %v1000
    %v1053 = vpack.c.b16 %v1005, %v1001
    %v1054 = vpack.c.b16 %v1010, %v1006
    %v1055 = vpack.c.b16 %v1011, %v1007
    %v1056 = vpack.c.b16 %v1012, %v1008
    %v1057 = vpack.c.b16 %v1013, %v1009
    %v1058 = vpack.c.b16 %v1018, %v1014
    %v1059 = vpack.c.b16 %v1019, %v1015
    %v1060 = vpack.c.b16 %v1020, %v1016
    %v1061 = vpack.c.b16 %v1021, %v1017
    %v1062 = vpack.c.b16 %v1026, %v1022
    %v1063 = vpack.c.b16 %v1027, %v1023
    %v1064 = vpack.c.b16 %v1028, %v1024
    %v1065 = vpack.c.b16 %v1029, %v1025
    %v1066 = vpack.c.b16 %v1034, %v1030
    %v1067 = vpack.c.b16 %v1035, %v1031
    %v1068 = vpack.c.b16 %v1036, %v1032
    %v1069 = vpack.c.b16 %v1037, %v1033
    %1102 = vmatpush.bf16.msra.mxu0 %v1066
    %1103 = vmatpush.bf16.msra.mxu0 %v1062
    %1104 = vmatpush.bf16.msra.mxu0 %v1058
    %1105 = vmatpush.bf16.msra.mxu0 %v1054
    %1106 = vmatpush.bf16.msra.mxu0 %v1050
    %1107 = vmatpush.bf16.msra.mxu0 %v1046
    %1108 = vmatpush.bf16.msra.mxu0 %v1042
    %1109 = vmatpush.bf16.msra.mxu0 %v1038
    %1110 = vmatmul.bf16.gmra.mxu0 0
    %v1111 = vpop.f32.mrf.mxu0
    %v1112 = vadd.f32 0.0, %v1111
    %v1113 = vpop.f32.mrf.mxu0
    %1114 = vdwg.mxu0
    %1115 = vmatpush.bf16.msra.mxu0 %v1067
    %1116 = vmatpush.bf16.msra.mxu0 %v1063
    %1117 = vmatpush.bf16.msra.mxu0 %v1059
    %1118 = vmatpush.bf16.msra.mxu0 %v1055
    %1119 = vmatpush.bf16.msra.mxu0 %v1051
    %1120 = vmatpush.bf16.msra.mxu0 %v1047
    %1121 = vmatpush.bf16.msra.mxu0 %v1043
    %1122 = vmatpush.bf16.msra.mxu0 %v1039
    %1123 = vmatmul.bf16.gmra.mxu0 0
    %v1124 = vpop.f32.mrf.mxu0
    %v1125 = vadd.f32 0.0, %v1124
    %v1126 = vpop.f32.mrf.mxu0
    %1127 = vdwg.mxu0
    %1128 = vmatpush.bf16.msra.mxu0 %v1068
    %1129 = vmatpush.bf16.msra.mxu0 %v1064
    %1130 = vmatpush.bf16.msra.mxu0 %v1060
    %1131 = vmatpush.bf16.msra.mxu0 %v1056
    %1132 = vmatpush.bf16.msra.mxu0 %v1052
    %1133 = vmatpush.bf16.msra.mxu0 %v1048
    %1134 = vmatpush.bf16.msra.mxu0 %v1044
    %1135 = vmatpush.bf16.msra.mxu0 %v1040
    %1136 = vmatmul.bf16.gmra.mxu0 0
    %v1137 = vpop.f32.mrf.mxu0
    %v1138 = vadd.f32 0.0, %v1137
    %v1139 = vpop.f32.mrf.mxu0
    %1140 = vdwg.mxu0
    %1141 = vmatpush.bf16.msra.mxu0 %v1069
    %1142 = vmatpush.bf16.msra.mxu0 %v1065
    %1143 = vmatpush.bf16.msra.mxu0 %v1061
    %1144 = vmatpush.bf16.msra.mxu0 %v1057
    %1145 = vmatpush.bf16.msra.mxu0 %v1053
    %1146 = vmatpush.bf16.msra.mxu0 %v1049
    %1147 = vmatpush.bf16.msra.mxu0 %v1045
    %1148 = vmatpush.bf16.msra.mxu0 %v1041
    %1149 = vmatmul.bf16.gmra.mxu0 0
    %v1150 = vpop.f32.mrf.mxu0
    %v1151 = vadd.f32 0.0, %v1150
    %v1152 = vpop.f32.mrf.mxu0
    %1153 = vdwg.mxu0
    %v1186 = vunpack.c.l.b16 %v590
    %v1187 = vunpack.c.h.b16 %v590
    %v1188 = vunpack.c.l.b16 %v591
    %v1189 = vunpack.c.h.b16 %v591
    %v1190 = vunpack.c.l.b16 %v592
    %v1191 = vunpack.c.h.b16 %v592
    %v1192 = vunpack.c.l.b16 %v593
    %v1193 = vunpack.c.h.b16 %v593
    %v1194 = vunpack.c.l.b16 %v594
    %v1195 = vunpack.c.h.b16 %v594
    %v1196 = vunpack.c.l.b16 %v595
    %v1197 = vunpack.c.h.b16 %v595
    %v1198 = vunpack.c.l.b16 %v596
    %v1199 = vunpack.c.h.b16 %v596
    %v1200 = vunpack.c.l.b16 %v597
    %v1201 = vunpack.c.h.b16 %v597
    %v1202 = vunpack.c.l.b16 %v598
    %v1203 = vunpack.c.h.b16 %v598
    %v1204 = vunpack.c.l.b16 %v599
    %v1205 = vunpack.c.h.b16 %v599
    %v1206 = vunpack.c.l.b16 %v600
    %v1207 = vunpack.c.h.b16 %v600
    %v1208 = vunpack.c.l.b16 %v601
    %v1209 = vunpack.c.h.b16 %v601
    %v1210 = vunpack.c.l.b16 %v602
    %v1211 = vunpack.c.h.b16 %v602
    %v1212 = vunpack.c.l.b16 %v603
    %v1213 = vunpack.c.h.b16 %v603
    %v1214 = vunpack.c.l.b16 %v604
    %v1215 = vunpack.c.h.b16 %v604
    %v1216 = vunpack.c.l.b16 %v605
    %v1217 = vunpack.c.h.b16 %v605
    %v1218 = vunpack.c.l.b16 %v606
    %v1219 = vunpack.c.h.b16 %v606
    %v1220 = vunpack.c.l.b16 %v607
    %v1221 = vunpack.c.h.b16 %v607
    %v1222 = vunpack.c.l.b16 %v608
    %v1223 = vunpack.c.h.b16 %v608
    %v1224 = vunpack.c.l.b16 %v609
    %v1225 = vunpack.c.h.b16 %v609
    %v1226 = vunpack.c.l.b16 %v610
    %v1227 = vunpack.c.h.b16 %v610
    %v1228 = vunpack.c.l.b16 %v611
    %v1229 = vunpack.c.h.b16 %v611
    %v1230 = vunpack.c.l.b16 %v612
    %v1231 = vunpack.c.h.b16 %v612
    %v1232 = vunpack.c.l.b16 %v613
    %v1233 = vunpack.c.h.b16 %v613
    %v1234 = vunpack.c.l.b16 %v614
    %v1235 = vunpack.c.h.b16 %v614
    %v1236 = vunpack.c.l.b16 %v615
    %v1237 = vunpack.c.h.b16 %v615
    %v1238 = vunpack.c.l.b16 %v616
    %v1239 = vunpack.c.h.b16 %v616
    %v1240 = vunpack.c.l.b16 %v617
    %v1241 = vunpack.c.h.b16 %v617
    %v1242 = vunpack.c.l.b16 %v618
    %v1243 = vunpack.c.h.b16 %v618
    %v1244 = vunpack.c.l.b16 %v619
    %v1245 = vunpack.c.h.b16 %v619
    %v1246 = vunpack.c.l.b16 %v620
    %v1247 = vunpack.c.h.b16 %v620
    %v1248 = vunpack.c.l.b16 %v621
    %v1249 = vunpack.c.h.b16 %v621
    %v1250 = vpack.c.b16 %v1190, %v1186
    %v1251 = vpack.c.b16 %v1191, %v1187
    %v1252 = vpack.c.b16 %v1192, %v1188
    %v1253 = vpack.c.b16 %v1193, %v1189
    %v1254 = vpack.c.b16 %v1198, %v1194
    %v1255 = vpack.c.b16 %v1199, %v1195
    %v1256 = vpack.c.b16 %v1200, %v1196
    %v1257 = vpack.c.b16 %v1201, %v1197
    %v1258 = vpack.c.b16 %v1206, %v1202
    %v1259 = vpack.c.b16 %v1207, %v1203
    %v1260 = vpack.c.b16 %v1208, %v1204
    %v1261 = vpack.c.b16 %v1209, %v1205
    %v1262 = vpack.c.b16 %v1214, %v1210
    %v1263 = vpack.c.b16 %v1215, %v1211
    %v1264 = vpack.c.b16 %v1216, %v1212
    %v1265 = vpack.c.b16 %v1217, %v1213
    %v1266 = vpack.c.b16 %v1222, %v1218
    %v1267 = vpack.c.b16 %v1223, %v1219
    %v1268 = vpack.c.b16 %v1224, %v1220
    %v1269 = vpack.c.b16 %v1225, %v1221
    %v1270 = vpack.c.b16 %v1230, %v1226
    %v1271 = vpack.c.b16 %v1231, %v1227
    %v1272 = vpack.c.b16 %v1232, %v1228
    %v1273 = vpack.c.b16 %v1233, %v1229
    %v1274 = vpack.c.b16 %v1238, %v1234
    %v1275 = vpack.c.b16 %v1239, %v1235
    %v1276 = vpack.c.b16 %v1240, %v1236
    %v1277 = vpack.c.b16 %v1241, %v1237
    %v1278 = vpack.c.b16 %v1246, %v1242
    %v1279 = vpack.c.b16 %v1247, %v1243
    %v1280 = vpack.c.b16 %v1248, %v1244
    %v1281 = vpack.c.b16 %v1249, %v1245
    %1314 = vmatpush.bf16.msra.mxu0 %v1278
    %1315 = vmatpush.bf16.msra.mxu0 %v1274
    %1316 = vmatpush.bf16.msra.mxu0 %v1270
    %1317 = vmatpush.bf16.msra.mxu0 %v1266
    %1318 = vmatpush.bf16.msra.mxu0 %v1262
    %1319 = vmatpush.bf16.msra.mxu0 %v1258
    %1320 = vmatpush.bf16.msra.mxu0 %v1254
    %1321 = vmatpush.bf16.msra.mxu0 %v1250
    %1322 = vmatmul.bf16.gmra.mxu0 %v941
    %v1323 = vpop.f32.mrf.mxu0
    %v1324 = vadd.f32 %v1112, %v1323
    %v1325 = vpop.f32.mrf.mxu0
    %1326 = vdwg.mxu0
    %1327 = vmatpush.bf16.msra.mxu0 %v1279
    %1328 = vmatpush.bf16.msra.mxu0 %v1275
    %1329 = vmatpush.bf16.msra.mxu0 %v1271
    %1330 = vmatpush.bf16.msra.mxu0 %v1267
    %1331 = vmatpush.bf16.msra.mxu0 %v1263
    %1332 = vmatpush.bf16.msra.mxu0 %v1259
    %1333 = vmatpush.bf16.msra.mxu0 %v1255
    %1334 = vmatpush.bf16.msra.mxu0 %v1251
    %1335 = vmatmul.bf16.gmra.mxu0 %v941
    %v1336 = vpop.f32.mrf.mxu0
    %v1337 = vadd.f32 %v1125, %v1336
    %v1338 = vpop.f32.mrf.mxu0
    %1339 = vdwg.mxu0
    %1340 = vmatpush.bf16.msra.mxu0 %v1280
    %1341 = vmatpush.bf16.msra.mxu0 %v1276
    %1342 = vmatpush.bf16.msra.mxu0 %v1272
    %1343 = vmatpush.bf16.msra.mxu0 %v1268
    %1344 = vmatpush.bf16.msra.mxu0 %v1264
    %1345 = vmatpush.bf16.msra.mxu0 %v1260
    %1346 = vmatpush.bf16.msra.mxu0 %v1256
    %1347 = vmatpush.bf16.msra.mxu0 %v1252
    %1348 = vmatmul.bf16.gmra.mxu0 %v941
    %v1349 = vpop.f32.mrf.mxu0
    %v1350 = vadd.f32 %v1138, %v1349
    %v1351 = vpop.f32.mrf.mxu0
    %1352 = vdwg.mxu0
    %1353 = vmatpush.bf16.msra.mxu0 %v1281
    %1354 = vmatpush.bf16.msra.mxu0 %v1277
    %1355 = vmatpush.bf16.msra.mxu0 %v1273
    %1356 = vmatpush.bf16.msra.mxu0 %v1269
    %1357 = vmatpush.bf16.msra.mxu0 %v1265
    %1358 = vmatpush.bf16.msra.mxu0 %v1261
    %1359 = vmatpush.bf16.msra.mxu0 %v1257
    %1360 = vmatpush.bf16.msra.mxu0 %v1253
    %1361 = vmatmul.bf16.gmra.mxu0 %v941
    %v1362 = vpop.f32.mrf.mxu0
    %v1363 = vadd.f32 %v1151, %v1362
    %v1364 = vpop.f32.mrf.mxu0
    %1365 = vdwg.mxu0
    %v1367 = vperm.slane %v654, 0
    %v1368 = vperm.slane %v654, 1
    %v1369 = vperm.slane %v654, 2
    %v1370 = vperm.slane %v654, 3
    %v1375 = vadd.f32 %v1324, %v1367
    %v1376 = vadd.f32 %v1337, %v1368
    %v1377 = vadd.f32 %v1350, %v1369
    %v1378 = vadd.f32 %v1363, %v1370
    %v1379 = vxor.u32 %v1375, 2147483648
    %v1380 = vmul.f32 %v1379, 1.442695
    %v1381 = vpow.pop %v1380
    %v1382 = vadd.f32 %v1381, 1.0
    %v1383 = vrcp.pop %v1382
    %v1384 = vmul.f32 %v1382, %v1383
    %v1385 = vsub.f32 1.0, %v1384
    %v1386 = vmul.f32 %v1383, %v1385
    %v1387 = vadd.f32 %v1383, %v1386
    %vm1388 = vweird.f32 %v1382
    %vm1389 = vweird.f32 %v1383
    %vm1390 = vmor %vm1388, %vm1389
    %v1391 = vsel %vm1390, %v1383, %v1387
    %v1392 = vand.u32 2147483647, %v1382
    %vm1393 = vcmp.eq.f32.partialorder %v1392, 8.507059e+37
    %v1394 = vand.u32 %v1382, 2147483648
    %v1395 = vor.u32 1.1754944e-38, %v1394
    %v1396 = vsel %vm1393, %v1395, %v1391
    %v1397 = vmul.f32 1.0, %v1396
    %v1398 = vxor.u32 %v1376, 2147483648
    %v1399 = vmul.f32 %v1398, 1.442695
    %v1400 = vpow.pop %v1399
    %v1401 = vadd.f32 %v1400, 1.0
    %v1402 = vrcp.pop %v1401
    %v1403 = vmul.f32 %v1401, %v1402
    %v1404 = vsub.f32 1.0, %v1403
    %v1405 = vmul.f32 %v1402, %v1404
    %v1406 = vadd.f32 %v1402, %v1405
    %vm1407 = vweird.f32 %v1401
    %vm1408 = vweird.f32 %v1402
    %vm1409 = vmor %vm1407, %vm1408
    %v1410 = vsel %vm1409, %v1402, %v1406
    %v1411 = vand.u32 2147483647, %v1401
    %vm1412 = vcmp.eq.f32.partialorder %v1411, 8.507059e+37
    %v1413 = vand.u32 %v1401, 2147483648
    %v1414 = vor.u32 1.1754944e-38, %v1413
    %v1415 = vsel %vm1412, %v1414, %v1410
    %v1416 = vmul.f32 1.0, %v1415
    %v1417 = vtanh.pop %v1377
    %v1418 = vxor.u32 %v1378, 2147483648
    %v1419 = vmul.f32 %v1418, 1.442695
    %v1420 = vpow.pop %v1419
    %v1421 = vadd.f32 %v1420, 1.0
    %v1422 = vrcp.pop %v1421
    %v1423 = vmul.f32 %v1421, %v1422
    %v1424 = vsub.f32 1.0, %v1423
    %v1425 = vmul.f32 %v1422, %v1424
    %v1426 = vadd.f32 %v1422, %v1425
    %vm1427 = vweird.f32 %v1421
    %vm1428 = vweird.f32 %v1422
    %vm1429 = vmor %vm1427, %vm1428
    %v1430 = vsel %vm1429, %v1422, %v1426
    %v1431 = vand.u32 2147483647, %v1421
    %vm1432 = vcmp.eq.f32.partialorder %v1431, 8.507059e+37
    %v1433 = vand.u32 %v1421, 2147483648
    %v1434 = vor.u32 1.1754944e-38, %v1433
    %v1435 = vsel %vm1432, %v1434, %v1430
    %v1436 = vmul.f32 1.0, %v1435
    %v1437 = vmul.f32 %v1416, 0.0
    %v1438 = vmul.f32 %v1397, %v1417
    %v1439 = vadd.f32 %v1437, %v1438
    %v1440 = vtanh.pop %v1439
    %v1441 = vmul.f32 %v1436, %v1440
    %s1442 = smul.u32 1, 4
    %s1443 = smul.addr %s1442, 8
    %s1444 = scalar_lea.vmem [#allocation5], %s1443
    %v1445 = vld [vmem:[%s1444] sm:$0xff]
    %v1446 = vld [vmem:[%s1444 + $0x8] sm:$0xff]
    %v1447 = vld [vmem:[%s1444 + $0x10] sm:$0xff]
    %v1448 = vld [vmem:[%s1444 + $0x18] sm:$0xff]
    %1449 = vmatpush.bf16.msra.mxu0 %v786
    %1450 = vmatpush.bf16.msra.mxu0 %v782
    %1451 = vmatpush.bf16.msra.mxu0 %v778
    %1452 = vmatpush.bf16.msra.mxu0 %v774
    %1453 = vmatpush.bf16.msra.mxu0 %v770
    %1454 = vmatpush.bf16.msra.mxu0 %v766
    %1455 = vmatpush.bf16.msra.mxu0 %v762
    %1456 = vmatpush.bf16.msra.mxu0 %v758
    %1457 = vmatmul.bf16.gmra.mxu0 %v941
    %v1458 = vpop.f32.mrf.mxu0
    %v1459 = vadd.f32 0.0, %v1458
    %v1460 = vpop.f32.mrf.mxu0
    %1461 = vdwg.mxu0
    %1462 = vmatpush.bf16.msra.mxu0 %v787
    %1463 = vmatpush.bf16.msra.mxu0 %v783
    %1464 = vmatpush.bf16.msra.mxu0 %v779
    %1465 = vmatpush.bf16.msra.mxu0 %v775
    %1466 = vmatpush.bf16.msra.mxu0 %v771
    %1467 = vmatpush.bf16.msra.mxu0 %v767
    %1468 = vmatpush.bf16.msra.mxu0 %v763
    %1469 = vmatpush.bf16.msra.mxu0 %v759
    %1470 = vmatmul.bf16.gmra.mxu0 %v941
    %v1471 = vpop.f32.mrf.mxu0
    %v1472 = vadd.f32 0.0, %v1471
    %v1473 = vpop.f32.mrf.mxu0
    %1474 = vdwg.mxu0
    %1475 = vmatpush.bf16.msra.mxu0 %v788
    %1476 = vmatpush.bf16.msra.mxu0 %v784
    %1477 = vmatpush.bf16.msra.mxu0 %v780
    %1478 = vmatpush.bf16.msra.mxu0 %v776
    %1479 = vmatpush.bf16.msra.mxu0 %v772
    %1480 = vmatpush.bf16.msra.mxu0 %v768
    %1481 = vmatpush.bf16.msra.mxu0 %v764
    %1482 = vmatpush.bf16.msra.mxu0 %v760
    %1483 = vmatmul.bf16.gmra.mxu0 %v941
    %v1484 = vpop.f32.mrf.mxu0
    %v1485 = vadd.f32 0.0, %v1484
    %v1486 = vpop.f32.mrf.mxu0
    %1487 = vdwg.mxu0
    %1488 = vmatpush.bf16.msra.mxu0 %v789
    %1489 = vmatpush.bf16.msra.mxu0 %v785
    %1490 = vmatpush.bf16.msra.mxu0 %v781
    %1491 = vmatpush.bf16.msra.mxu0 %v777
    %1492 = vmatpush.bf16.msra.mxu0 %v773
    %1493 = vmatpush.bf16.msra.mxu0 %v769
    %1494 = vmatpush.bf16.msra.mxu0 %v765
    %1495 = vmatpush.bf16.msra.mxu0 %v761
    %1496 = vmatmul.bf16.gmra.mxu0 %v941
    %v1497 = vpop.f32.mrf.mxu0
    %v1498 = vadd.f32 0.0, %v1497
    %v1499 = vpop.f32.mrf.mxu0
    %1500 = vdwg.mxu0
    %v1501 = vadd.f32 %v1445, %v1459
    %v1502 = vadd.f32 %v1446, %v1472
    %v1503 = vadd.f32 %v1447, %v1485
    %v1504 = vadd.f32 %v1448, %v1498
    %v1505 = vxor.u32 %v1501, 2147483648
    %v1506 = vmul.f32 %v1505, 1.442695
    %v1507 = vpow.pop %v1506
    %v1508 = vadd.f32 %v1507, 1.0
    %v1509 = vrcp.pop %v1508
    %v1510 = vmul.f32 %v1508, %v1509
    %v1511 = vsub.f32 1.0, %v1510
    %v1512 = vmul.f32 %v1509, %v1511
    %v1513 = vadd.f32 %v1509, %v1512
    %vm1514 = vweird.f32 %v1508
    %vm1515 = vweird.f32 %v1509
    %vm1516 = vmor %vm1514, %vm1515
    %v1517 = vsel %vm1516, %v1509, %v1513
    %v1518 = vand.u32 2147483647, %v1508
    %vm1519 = vcmp.eq.f32.partialorder %v1518, 8.507059e+37
    %v1520 = vand.u32 %v1508, 2147483648
    %v1521 = vor.u32 1.1754944e-38, %v1520
    %v1522 = vsel %vm1519, %v1521, %v1517
    %v1523 = vmul.f32 1.0, %v1522
    %v1524 = vxor.u32 %v1502, 2147483648
    %v1525 = vmul.f32 %v1524, 1.442695
    %v1526 = vpow.pop %v1525
    %v1527 = vadd.f32 %v1526, 1.0
    %v1528 = vrcp.pop %v1527
    %v1529 = vmul.f32 %v1527, %v1528
    %v1530 = vsub.f32 1.0, %v1529
    %v1531 = vmul.f32 %v1528, %v1530
    %v1532 = vadd.f32 %v1528, %v1531
    %vm1533 = vweird.f32 %v1527
    %vm1534 = vweird.f32 %v1528
    %vm1535 = vmor %vm1533, %vm1534
    %v1536 = vsel %vm1535, %v1528, %v1532
    %v1537 = vand.u32 2147483647, %v1527
    %vm1538 = vcmp.eq.f32.partialorder %v1537, 8.507059e+37
    %v1539 = vand.u32 %v1527, 2147483648
    %v1540 = vor.u32 1.1754944e-38, %v1539
    %v1541 = vsel %vm1538, %v1540, %v1536
    %v1542 = vmul.f32 1.0, %v1541
    %v1543 = vtanh.pop %v1503
    %v1544 = vxor.u32 %v1504, 2147483648
    %v1545 = vmul.f32 %v1544, 1.442695
    %v1546 = vpow.pop %v1545
    %v1547 = vadd.f32 %v1546, 1.0
    %v1548 = vrcp.pop %v1547
    %v1549 = vmul.f32 %v1547, %v1548
    %v1550 = vsub.f32 1.0, %v1549
    %v1551 = vmul.f32 %v1548, %v1550
    %v1552 = vadd.f32 %v1548, %v1551
    %vm1553 = vweird.f32 %v1547
    %vm1554 = vweird.f32 %v1548
    %vm1555 = vmor %vm1553, %vm1554
    %v1556 = vsel %vm1555, %v1548, %v1552
    %v1557 = vand.u32 2147483647, %v1547
    %vm1558 = vcmp.eq.f32.partialorder %v1557, 8.507059e+37
    %v1559 = vand.u32 %v1547, 2147483648
    %v1560 = vor.u32 1.1754944e-38, %v1559
    %v1561 = vsel %vm1558, %v1560, %v1556
    %v1562 = vmul.f32 1.0, %v1561
    %v1563 = vmul.f32 %v1542, %v938
    %v1564 = vmul.f32 %v1523, %v1543
    %v1565 = vadd.f32 %v1563, %v1564
    %v1566 = vtanh.pop %v1565
    %v1567 = vmul.f32 %v1562, %v1566
    %v1568 = vpack.c.bf16 %v1567, %v1567
    %v1569 = vpack.c.bf16 %v1441, %v1441
    %1570 = vmatpush.bf16.msra.mxu0 %v1066
    %1571 = vmatpush.bf16.msra.mxu0 %v1062
    %1572 = vmatpush.bf16.msra.mxu0 %v1058
    %1573 = vmatpush.bf16.msra.mxu0 %v1054
    %1574 = vmatpush.bf16.msra.mxu0 %v1050
    %1575 = vmatpush.bf16.msra.mxu0 %v1046
    %1576 = vmatpush.bf16.msra.mxu0 %v1042
    %1577 = vmatpush.bf16.msra.mxu0 %v1038
    %1578 = vmatmul.bf16.gmra.mxu0 %v1569
    %v1579 = vpop.f32.mrf.mxu0
    %v1580 = vadd.f32 0.0, %v1579
    %v1581 = vpop.f32.mrf.mxu0
    %1582 = vdwg.mxu0
    %1583 = vmatpush.bf16.msra.mxu0 %v1067
    %1584 = vmatpush.bf16.msra.mxu0 %v1063
    %1585 = vmatpush.bf16.msra.mxu0 %v1059
    %1586 = vmatpush.bf16.msra.mxu0 %v1055
    %1587 = vmatpush.bf16.msra.mxu0 %v1051
    %1588 = vmatpush.bf16.msra.mxu0 %v1047
    %1589 = vmatpush.bf16.msra.mxu0 %v1043
    %1590 = vmatpush.bf16.msra.mxu0 %v1039
    %1591 = vmatmul.bf16.gmra.mxu0 %v1569
    %v1592 = vpop.f32.mrf.mxu0
    %v1593 = vadd.f32 0.0, %v1592
    %v1594 = vpop.f32.mrf.mxu0
    %1595 = vdwg.mxu0
    %1596 = vmatpush.bf16.msra.mxu0 %v1068
    %1597 = vmatpush.bf16.msra.mxu0 %v1064
    %1598 = vmatpush.bf16.msra.mxu0 %v1060
    %1599 = vmatpush.bf16.msra.mxu0 %v1056
    %1600 = vmatpush.bf16.msra.mxu0 %v1052
    %1601 = vmatpush.bf16.msra.mxu0 %v1048
    %1602 = vmatpush.bf16.msra.mxu0 %v1044
    %1603 = vmatpush.bf16.msra.mxu0 %v1040
    %1604 = vmatmul.bf16.gmra.mxu0 %v1569
    %v1605 = vpop.f32.mrf.mxu0
    %v1606 = vadd.f32 0.0, %v1605
    %v1607 = vpop.f32.mrf.mxu0
    %1608 = vdwg.mxu0
    %1609 = vmatpush.bf16.msra.mxu0 %v1069
    %1610 = vmatpush.bf16.msra.mxu0 %v1065
    %1611 = vmatpush.bf16.msra.mxu0 %v1061
    %1612 = vmatpush.bf16.msra.mxu0 %v1057
    %1613 = vmatpush.bf16.msra.mxu0 %v1053
    %1614 = vmatpush.bf16.msra.mxu0 %v1049
    %1615 = vmatpush.bf16.msra.mxu0 %v1045
    %1616 = vmatpush.bf16.msra.mxu0 %v1041
    %1617 = vmatmul.bf16.gmra.mxu0 %v1569
    %v1618 = vpop.f32.mrf.mxu0
    %v1619 = vadd.f32 0.0, %v1618
    %v1620 = vpop.f32.mrf.mxu0
    %1621 = vdwg.mxu0
    %1622 = vmatpush.bf16.msra.mxu0 %v1278
    %1623 = vmatpush.bf16.msra.mxu0 %v1274
    %1624 = vmatpush.bf16.msra.mxu0 %v1270
    %1625 = vmatpush.bf16.msra.mxu0 %v1266
    %1626 = vmatpush.bf16.msra.mxu0 %v1262
    %1627 = vmatpush.bf16.msra.mxu0 %v1258
    %1628 = vmatpush.bf16.msra.mxu0 %v1254
    %1629 = vmatpush.bf16.msra.mxu0 %v1250
    %1630 = vmatmul.bf16.gmra.mxu0 %v1568
    %v1631 = vpop.f32.mrf.mxu0
    %v1632 = vadd.f32 %v1580, %v1631
    %v1633 = vpop.f32.mrf.mxu0
    %1634 = vdwg.mxu0
    %1635 = vmatpush.bf16.msra.mxu0 %v1279
    %1636 = vmatpush.bf16.msra.mxu0 %v1275
    %1637 = vmatpush.bf16.msra.mxu0 %v1271
    %1638 = vmatpush.bf16.msra.mxu0 %v1267
    %1639 = vmatpush.bf16.msra.mxu0 %v1263
    %1640 = vmatpush.bf16.msra.mxu0 %v1259
    %1641 = vmatpush.bf16.msra.mxu0 %v1255
    %1642 = vmatpush.bf16.msra.mxu0 %v1251
    %1643 = vmatmul.bf16.gmra.mxu0 %v1568
    %v1644 = vpop.f32.mrf.mxu0
    %v1645 = vadd.f32 %v1593, %v1644
    %v1646 = vpop.f32.mrf.mxu0
    %1647 = vdwg.mxu0
    %1648 = vmatpush.bf16.msra.mxu0 %v1280
    %1649 = vmatpush.bf16.msra.mxu0 %v1276
    %1650 = vmatpush.bf16.msra.mxu0 %v1272
    %1651 = vmatpush.bf16.msra.mxu0 %v1268
    %1652 = vmatpush.bf16.msra.mxu0 %v1264
    %1653 = vmatpush.bf16.msra.mxu0 %v1260
    %1654 = vmatpush.bf16.msra.mxu0 %v1256
    %1655 = vmatpush.bf16.msra.mxu0 %v1252
    %1656 = vmatmul.bf16.gmra.mxu0 %v1568
    %v1657 = vpop.f32.mrf.mxu0
    %v1658 = vadd.f32 %v1606, %v1657
    %v1659 = vpop.f32.mrf.mxu0
    %1660 = vdwg.mxu0
    %1661 = vmatpush.bf16.msra.mxu0 %v1281
    %1662 = vmatpush.bf16.msra.mxu0 %v1277
    %1663 = vmatpush.bf16.msra.mxu0 %v1273
    %1664 = vmatpush.bf16.msra.mxu0 %v1269
    %1665 = vmatpush.bf16.msra.mxu0 %v1265
    %1666 = vmatpush.bf16.msra.mxu0 %v1261
    %1667 = vmatpush.bf16.msra.mxu0 %v1257
    %1668 = vmatpush.bf16.msra.mxu0 %v1253
    %1669 = vmatmul.bf16.gmra.mxu0 %v1568
    %v1670 = vpop.f32.mrf.mxu0
    %v1671 = vadd.f32 %v1619, %v1670
    %v1672 = vpop.f32.mrf.mxu0
    %1673 = vdwg.mxu0
    %v1674 = vadd.f32 %v1632, %v1367
    %v1675 = vadd.f32 %v1645, %v1368
    %v1676 = vadd.f32 %v1658, %v1369
    %v1677 = vadd.f32 %v1671, %v1370
    %v1678 = vxor.u32 %v1674, 2147483648
    %v1679 = vmul.f32 %v1678, 1.442695
    %v1680 = vpow.pop %v1679
    %v1681 = vadd.f32 %v1680, 1.0
    %v1682 = vrcp.pop %v1681
    %v1683 = vmul.f32 %v1681, %v1682
    %v1684 = vsub.f32 1.0, %v1683
    %v1685 = vmul.f32 %v1682, %v1684
    %v1686 = vadd.f32 %v1682, %v1685
    %vm1687 = vweird.f32 %v1681
    %vm1688 = vweird.f32 %v1682
    %vm1689 = vmor %vm1687, %vm1688
    %v1690 = vsel %vm1689, %v1682, %v1686
    %v1691 = vand.u32 2147483647, %v1681
    %vm1692 = vcmp.eq.f32.partialorder %v1691, 8.507059e+37
    %v1693 = vand.u32 %v1681, 2147483648
    %v1694 = vor.u32 1.1754944e-38, %v1693
    %v1695 = vsel %vm1692, %v1694, %v1690
    %v1696 = vmul.f32 1.0, %v1695
    %v1697 = vxor.u32 %v1675, 2147483648
    %v1698 = vmul.f32 %v1697, 1.442695
    %v1699 = vpow.pop %v1698
    %v1700 = vadd.f32 %v1699, 1.0
    %v1701 = vrcp.pop %v1700
    %v1702 = vmul.f32 %v1700, %v1701
    %v1703 = vsub.f32 1.0, %v1702
    %v1704 = vmul.f32 %v1701, %v1703
    %v1705 = vadd.f32 %v1701, %v1704
    %vm1706 = vweird.f32 %v1700
    %vm1707 = vweird.f32 %v1701
    %vm1708 = vmor %vm1706, %vm1707
    %v1709 = vsel %vm1708, %v1701, %v1705
    %v1710 = vand.u32 2147483647, %v1700
    %vm1711 = vcmp.eq.f32.partialorder %v1710, 8.507059e+37
    %v1712 = vand.u32 %v1700, 2147483648
    %v1713 = vor.u32 1.1754944e-38, %v1712
    %v1714 = vsel %vm1711, %v1713, %v1709
    %v1715 = vmul.f32 1.0, %v1714
    %v1716 = vtanh.pop %v1676
    %v1717 = vxor.u32 %v1677, 2147483648
    %v1718 = vmul.f32 %v1717, 1.442695
    %v1719 = vpow.pop %v1718
    %v1720 = vadd.f32 %v1719, 1.0
    %v1721 = vrcp.pop %v1720
    %v1722 = vmul.f32 %v1720, %v1721
    %v1723 = vsub.f32 1.0, %v1722
    %v1724 = vmul.f32 %v1721, %v1723
    %v1725 = vadd.f32 %v1721, %v1724
    %vm1726 = vweird.f32 %v1720
    %vm1727 = vweird.f32 %v1721
    %vm1728 = vmor %vm1726, %vm1727
    %v1729 = vsel %vm1728, %v1721, %v1725
    %v1730 = vand.u32 2147483647, %v1720
    %vm1731 = vcmp.eq.f32.partialorder %v1730, 8.507059e+37
    %v1732 = vand.u32 %v1720, 2147483648
    %v1733 = vor.u32 1.1754944e-38, %v1732
    %v1734 = vsel %vm1731, %v1733, %v1729
    %v1735 = vmul.f32 1.0, %v1734
    %v1736 = vmul.f32 %v1715, %v1439
    %v1737 = vmul.f32 %v1696, %v1716
    %v1738 = vadd.f32 %v1736, %v1737
    %v1739 = vtanh.pop %v1738
    %v1740 = vmul.f32 %v1735, %v1739
    %s1741 = smul.u32 2, 4
    %s1742 = smul.addr %s1741, 8
    %s1743 = scalar_lea.vmem [#allocation5], %s1742
    %v1744 = vld [vmem:[%s1743] sm:$0xff]
    %v1745 = vld [vmem:[%s1743 + $0x8] sm:$0xff]
    %v1746 = vld [vmem:[%s1743 + $0x10] sm:$0xff]
    %v1747 = vld [vmem:[%s1743 + $0x18] sm:$0xff]
    %1748 = vmatpush.bf16.msra.mxu0 %v786
    %1749 = vmatpush.bf16.msra.mxu0 %v782
    %1750 = vmatpush.bf16.msra.mxu0 %v778
    %1751 = vmatpush.bf16.msra.mxu0 %v774
    %1752 = vmatpush.bf16.msra.mxu0 %v770
    %1753 = vmatpush.bf16.msra.mxu0 %v766
    %1754 = vmatpush.bf16.msra.mxu0 %v762
    %1755 = vmatpush.bf16.msra.mxu0 %v758
    %1756 = vmatmul.bf16.gmra.mxu0 %v1568
    %v1757 = vpop.f32.mrf.mxu0
    %v1758 = vadd.f32 0.0, %v1757
    %v1759 = vpop.f32.mrf.mxu0
    %1760 = vdwg.mxu0
    %1761 = vmatpush.bf16.msra.mxu0 %v787
    %1762 = vmatpush.bf16.msra.mxu0 %v783
    %1763 = vmatpush.bf16.msra.mxu0 %v779
    %1764 = vmatpush.bf16.msra.mxu0 %v775
    %1765 = vmatpush.bf16.msra.mxu0 %v771
    %1766 = vmatpush.bf16.msra.mxu0 %v767
    %1767 = vmatpush.bf16.msra.mxu0 %v763
    %1768 = vmatpush.bf16.msra.mxu0 %v759
    %1769 = vmatmul.bf16.gmra.mxu0 %v1568
    %v1770 = vpop.f32.mrf.mxu0
    %v1771 = vadd.f32 0.0, %v1770
    %v1772 = vpop.f32.mrf.mxu0
    %1773 = vdwg.mxu0
    %1774 = vmatpush.bf16.msra.mxu0 %v788
    %1775 = vmatpush.bf16.msra.mxu0 %v784
    %1776 = vmatpush.bf16.msra.mxu0 %v780
    %1777 = vmatpush.bf16.msra.mxu0 %v776
    %1778 = vmatpush.bf16.msra.mxu0 %v772
    %1779 = vmatpush.bf16.msra.mxu0 %v768
    %1780 = vmatpush.bf16.msra.mxu0 %v764
    %1781 = vmatpush.bf16.msra.mxu0 %v760
    %1782 = vmatmul.bf16.gmra.mxu0 %v1568
    %v1783 = vpop.f32.mrf.mxu0
    %v1784 = vadd.f32 0.0, %v1783
    %v1785 = vpop.f32.mrf.mxu0
    %1786 = vdwg.mxu0
    %1787 = vmatpush.bf16.msra.mxu0 %v789
    %1788 = vmatpush.bf16.msra.mxu0 %v785
    %1789 = vmatpush.bf16.msra.mxu0 %v781
    %1790 = vmatpush.bf16.msra.mxu0 %v777
    %1791 = vmatpush.bf16.msra.mxu0 %v773
    %1792 = vmatpush.bf16.msra.mxu0 %v769
    %1793 = vmatpush.bf16.msra.mxu0 %v765
    %1794 = vmatpush.bf16.msra.mxu0 %v761
    %1795 = vmatmul.bf16.gmra.mxu0 %v1568
    %v1796 = vpop.f32.mrf.mxu0
    %v1797 = vadd.f32 0.0, %v1796
    %v1798 = vpop.f32.mrf.mxu0
    %1799 = vdwg.mxu0
    %v1800 = vadd.f32 %v1744, %v1758
    %v1801 = vadd.f32 %v1745, %v1771
    %v1802 = vadd.f32 %v1746, %v1784
    %v1803 = vadd.f32 %v1747, %v1797
    %v1804 = vxor.u32 %v1800, 2147483648
    %v1805 = vmul.f32 %v1804, 1.442695
    %v1806 = vpow.pop %v1805
    %v1807 = vadd.f32 %v1806, 1.0
    %v1808 = vrcp.pop %v1807
    %v1809 = vmul.f32 %v1807, %v1808
    %v1810 = vsub.f32 1.0, %v1809
    %v1811 = vmul.f32 %v1808, %v1810
    %v1812 = vadd.f32 %v1808, %v1811
    %vm1813 = vweird.f32 %v1807
    %vm1814 = vweird.f32 %v1808
    %vm1815 = vmor %vm1813, %vm1814
    %v1816 = vsel %vm1815, %v1808, %v1812
    %v1817 = vand.u32 2147483647, %v1807
    %vm1818 = vcmp.eq.f32.partialorder %v1817, 8.507059e+37
    %v1819 = vand.u32 %v1807, 2147483648
    %v1820 = vor.u32 1.1754944e-38, %v1819
    %v1821 = vsel %vm1818, %v1820, %v1816
    %v1822 = vmul.f32 1.0, %v1821
    %v1823 = vxor.u32 %v1801, 2147483648
    %v1824 = vmul.f32 %v1823, 1.442695
    %v1825 = vpow.pop %v1824
    %v1826 = vadd.f32 %v1825, 1.0
    %v1827 = vrcp.pop %v1826
    %v1828 = vmul.f32 %v1826, %v1827
    %v1829 = vsub.f32 1.0, %v1828
    %v1830 = vmul.f32 %v1827, %v1829
    %v1831 = vadd.f32 %v1827, %v1830
    %vm1832 = vweird.f32 %v1826
    %vm1833 = vweird.f32 %v1827
    %vm1834 = vmor %vm1832, %vm1833
    %v1835 = vsel %vm1834, %v1827, %v1831
    %v1836 = vand.u32 2147483647, %v1826
    %vm1837 = vcmp.eq.f32.partialorder %v1836, 8.507059e+37
    %v1838 = vand.u32 %v1826, 2147483648
    %v1839 = vor.u32 1.1754944e-38, %v1838
    %v1840 = vsel %vm1837, %v1839, %v1835
    %v1841 = vmul.f32 1.0, %v1840
    %v1842 = vtanh.pop %v1802
    %v1843 = vxor.u32 %v1803, 2147483648
    %v1844 = vmul.f32 %v1843, 1.442695
    %v1845 = vpow.pop %v1844
    %v1846 = vadd.f32 %v1845, 1.0
    %v1847 = vrcp.pop %v1846
    %v1848 = vmul.f32 %v1846, %v1847
    %v1849 = vsub.f32 1.0, %v1848
    %v1850 = vmul.f32 %v1847, %v1849
    %v1851 = vadd.f32 %v1847, %v1850
    %vm1852 = vweird.f32 %v1846
    %vm1853 = vweird.f32 %v1847
    %vm1854 = vmor %vm1852, %vm1853
    %v1855 = vsel %vm1854, %v1847, %v1851
    %v1856 = vand.u32 2147483647, %v1846
    %vm1857 = vcmp.eq.f32.partialorder %v1856, 8.507059e+37
    %v1858 = vand.u32 %v1846, 2147483648
    %v1859 = vor.u32 1.1754944e-38, %v1858
    %v1860 = vsel %vm1857, %v1859, %v1855
    %v1861 = vmul.f32 1.0, %v1860
    %v1862 = vmul.f32 %v1841, %v1565
    %v1863 = vmul.f32 %v1822, %v1842
    %v1864 = vadd.f32 %v1862, %v1863
    %v1865 = vtanh.pop %v1864
    %v1866 = vmul.f32 %v1861, %v1865
    %v1867 = vpack.c.bf16 %v1866, %v1866
    %v1868 = vpack.c.bf16 %v1740, %v1740
    %1869 = vmatpush.bf16.msra.mxu0 %v1066
    %1870 = vmatpush.bf16.msra.mxu0 %v1062
    %1871 = vmatpush.bf16.msra.mxu0 %v1058
    %1872 = vmatpush.bf16.msra.mxu0 %v1054
    %1873 = vmatpush.bf16.msra.mxu0 %v1050
    %1874 = vmatpush.bf16.msra.mxu0 %v1046
    %1875 = vmatpush.bf16.msra.mxu0 %v1042
    %1876 = vmatpush.bf16.msra.mxu0 %v1038
    %1877 = vmatmul.bf16.gmra.mxu0 %v1868
    %v1878 = vpop.f32.mrf.mxu0
    %v1879 = vadd.f32 0.0, %v1878
    %v1880 = vpop.f32.mrf.mxu0
    %1881 = vdwg.mxu0
    %1882 = vmatpush.bf16.msra.mxu0 %v1067
    %1883 = vmatpush.bf16.msra.mxu0 %v1063
    %1884 = vmatpush.bf16.msra.mxu0 %v1059
    %1885 = vmatpush.bf16.msra.mxu0 %v1055
    %1886 = vmatpush.bf16.msra.mxu0 %v1051
    %1887 = vmatpush.bf16.msra.mxu0 %v1047
    %1888 = vmatpush.bf16.msra.mxu0 %v1043
    %1889 = vmatpush.bf16.msra.mxu0 %v1039
    %1890 = vmatmul.bf16.gmra.mxu0 %v1868
    %v1891 = vpop.f32.mrf.mxu0
    %v1892 = vadd.f32 0.0, %v1891
    %v1893 = vpop.f32.mrf.mxu0
    %1894 = vdwg.mxu0
    %1895 = vmatpush.bf16.msra.mxu0 %v1068
    %1896 = vmatpush.bf16.msra.mxu0 %v1064
    %1897 = vmatpush.bf16.msra.mxu0 %v1060
    %1898 = vmatpush.bf16.msra.mxu0 %v1056
    %1899 = vmatpush.bf16.msra.mxu0 %v1052
    %1900 = vmatpush.bf16.msra.mxu0 %v1048
    %1901 = vmatpush.bf16.msra.mxu0 %v1044
    %1902 = vmatpush.bf16.msra.mxu0 %v1040
    %1903 = vmatmul.bf16.gmra.mxu0 %v1868
    %v1904 = vpop.f32.mrf.mxu0
    %v1905 = vadd.f32 0.0, %v1904
    %v1906 = vpop.f32.mrf.mxu0
    %1907 = vdwg.mxu0
    %1908 = vmatpush.bf16.msra.mxu0 %v1069
    %1909 = vmatpush.bf16.msra.mxu0 %v1065
    %1910 = vmatpush.bf16.msra.mxu0 %v1061
    %1911 = vmatpush.bf16.msra.mxu0 %v1057
    %1912 = vmatpush.bf16.msra.mxu0 %v1053
    %1913 = vmatpush.bf16.msra.mxu0 %v1049
    %1914 = vmatpush.bf16.msra.mxu0 %v1045
    %1915 = vmatpush.bf16.msra.mxu0 %v1041
    %1916 = vmatmul.bf16.gmra.mxu0 %v1868
    %v1917 = vpop.f32.mrf.mxu0
    %v1918 = vadd.f32 0.0, %v1917
    %v1919 = vpop.f32.mrf.mxu0
    %1920 = vdwg.mxu0
    %1921 = vmatpush.bf16.msra.mxu0 %v1278
    %1922 = vmatpush.bf16.msra.mxu0 %v1274
    %1923 = vmatpush.bf16.msra.mxu0 %v1270
    %1924 = vmatpush.bf16.msra.mxu0 %v1266
    %1925 = vmatpush.bf16.msra.mxu0 %v1262
    %1926 = vmatpush.bf16.msra.mxu0 %v1258
    %1927 = vmatpush.bf16.msra.mxu0 %v1254
    %1928 = vmatpush.bf16.msra.mxu0 %v1250
    %1929 = vmatmul.bf16.gmra.mxu0 %v1867
    %v1930 = vpop.f32.mrf.mxu0
    %v1931 = vadd.f32 %v1879, %v1930
    %v1932 = vpop.f32.mrf.mxu0
    %1933 = vdwg.mxu0
    %1934 = vmatpush.bf16.msra.mxu0 %v1279
    %1935 = vmatpush.bf16.msra.mxu0 %v1275
    %1936 = vmatpush.bf16.msra.mxu0 %v1271
    %1937 = vmatpush.bf16.msra.mxu0 %v1267
    %1938 = vmatpush.bf16.msra.mxu0 %v1263
    %1939 = vmatpush.bf16.msra.mxu0 %v1259
    %1940 = vmatpush.bf16.msra.mxu0 %v1255
    %1941 = vmatpush.bf16.msra.mxu0 %v1251
    %1942 = vmatmul.bf16.gmra.mxu0 %v1867
    %v1943 = vpop.f32.mrf.mxu0
    %v1944 = vadd.f32 %v1892, %v1943
    %v1945 = vpop.f32.mrf.mxu0
    %1946 = vdwg.mxu0
    %1947 = vmatpush.bf16.msra.mxu0 %v1280
    %1948 = vmatpush.bf16.msra.mxu0 %v1276
    %1949 = vmatpush.bf16.msra.mxu0 %v1272
    %1950 = vmatpush.bf16.msra.mxu0 %v1268
    %1951 = vmatpush.bf16.msra.mxu0 %v1264
    %1952 = vmatpush.bf16.msra.mxu0 %v1260
    %1953 = vmatpush.bf16.msra.mxu0 %v1256
    %1954 = vmatpush.bf16.msra.mxu0 %v1252
    %1955 = vmatmul.bf16.gmra.mxu0 %v1867
    %v1956 = vpop.f32.mrf.mxu0
    %v1957 = vadd.f32 %v1905, %v1956
    %v1958 = vpop.f32.mrf.mxu0
    %1959 = vdwg.mxu0
    %1960 = vmatpush.bf16.msra.mxu0 %v1281
    %1961 = vmatpush.bf16.msra.mxu0 %v1277
    %1962 = vmatpush.bf16.msra.mxu0 %v1273
    %1963 = vmatpush.bf16.msra.mxu0 %v1269
    %1964 = vmatpush.bf16.msra.mxu0 %v1265
    %1965 = vmatpush.bf16.msra.mxu0 %v1261
    %1966 = vmatpush.bf16.msra.mxu0 %v1257
    %1967 = vmatpush.bf16.msra.mxu0 %v1253
    %1968 = vmatmul.bf16.gmra.mxu0 %v1867
    %v1969 = vpop.f32.mrf.mxu0
    %v1970 = vadd.f32 %v1918, %v1969
    %v1971 = vpop.f32.mrf.mxu0
    %1972 = vdwg.mxu0
    %v1973 = vadd.f32 %v1931, %v1367
    %v1974 = vadd.f32 %v1944, %v1368
    %v1975 = vadd.f32 %v1957, %v1369
    %v1976 = vadd.f32 %v1970, %v1370
    %v1977 = vxor.u32 %v1973, 2147483648
    %v1978 = vmul.f32 %v1977, 1.442695
    %v1979 = vpow.pop %v1978
    %v1980 = vadd.f32 %v1979, 1.0
    %v1981 = vrcp.pop %v1980
    %v1982 = vmul.f32 %v1980, %v1981
    %v1983 = vsub.f32 1.0, %v1982
    %v1984 = vmul.f32 %v1981, %v1983
    %v1985 = vadd.f32 %v1981, %v1984
    %vm1986 = vweird.f32 %v1980
    %vm1987 = vweird.f32 %v1981
    %vm1988 = vmor %vm1986, %vm1987
    %v1989 = vsel %vm1988, %v1981, %v1985
    %v1990 = vand.u32 2147483647, %v1980
    %vm1991 = vcmp.eq.f32.partialorder %v1990, 8.507059e+37
    %v1992 = vand.u32 %v1980, 2147483648
    %v1993 = vor.u32 1.1754944e-38, %v1992
    %v1994 = vsel %vm1991, %v1993, %v1989
    %v1995 = vmul.f32 1.0, %v1994
    %v1996 = vxor.u32 %v1974, 2147483648
    %v1997 = vmul.f32 %v1996, 1.442695
    %v1998 = vpow.pop %v1997
    %v1999 = vadd.f32 %v1998, 1.0
    %v2000 = vrcp.pop %v1999
    %v2001 = vmul.f32 %v1999, %v2000
    %v2002 = vsub.f32 1.0, %v2001
    %v2003 = vmul.f32 %v2000, %v2002
    %v2004 = vadd.f32 %v2000, %v2003
    %vm2005 = vweird.f32 %v1999
    %vm2006 = vweird.f32 %v2000
    %vm2007 = vmor %vm2005, %vm2006
    %v2008 = vsel %vm2007, %v2000, %v2004
    %v2009 = vand.u32 2147483647, %v1999
    %vm2010 = vcmp.eq.f32.partialorder %v2009, 8.507059e+37
    %v2011 = vand.u32 %v1999, 2147483648
    %v2012 = vor.u32 1.1754944e-38, %v2011
    %v2013 = vsel %vm2010, %v2012, %v2008
    %v2014 = vmul.f32 1.0, %v2013
    %v2015 = vtanh.pop %v1975
    %v2016 = vxor.u32 %v1976, 2147483648
    %v2017 = vmul.f32 %v2016, 1.442695
    %v2018 = vpow.pop %v2017
    %v2019 = vadd.f32 %v2018, 1.0
    %v2020 = vrcp.pop %v2019
    %v2021 = vmul.f32 %v2019, %v2020
    %v2022 = vsub.f32 1.0, %v2021
    %v2023 = vmul.f32 %v2020, %v2022
    %v2024 = vadd.f32 %v2020, %v2023
    %vm2025 = vweird.f32 %v2019
    %vm2026 = vweird.f32 %v2020
    %vm2027 = vmor %vm2025, %vm2026
    %v2028 = vsel %vm2027, %v2020, %v2024
    %v2029 = vand.u32 2147483647, %v2019
    %vm2030 = vcmp.eq.f32.partialorder %v2029, 8.507059e+37
    %v2031 = vand.u32 %v2019, 2147483648
    %v2032 = vor.u32 1.1754944e-38, %v2031
    %v2033 = vsel %vm2030, %v2032, %v2028
    %v2034 = vmul.f32 1.0, %v2033
    %v2035 = vmul.f32 %v2014, %v1738
    %v2036 = vmul.f32 %v1995, %v2015
    %v2037 = vadd.f32 %v2035, %v2036
    %v2038 = vtanh.pop %v2037
    %v2039 = vmul.f32 %v2034, %v2038
    %s2040 = smul.u32 3, 4
    %s2041 = smul.addr %s2040, 8
    %s2042 = scalar_lea.vmem [#allocation5], %s2041
    %v2043 = vld [vmem:[%s2042] sm:$0xff]
    %v2044 = vld [vmem:[%s2042 + $0x8] sm:$0xff]
    %v2045 = vld [vmem:[%s2042 + $0x10] sm:$0xff]
    %v2046 = vld [vmem:[%s2042 + $0x18] sm:$0xff]
    %2047 = vmatpush.bf16.msra.mxu0 %v786
    %2048 = vmatpush.bf16.msra.mxu0 %v782
    %2049 = vmatpush.bf16.msra.mxu0 %v778
    %2050 = vmatpush.bf16.msra.mxu0 %v774
    %2051 = vmatpush.bf16.msra.mxu0 %v770
    %2052 = vmatpush.bf16.msra.mxu0 %v766
    %2053 = vmatpush.bf16.msra.mxu0 %v762
    %2054 = vmatpush.bf16.msra.mxu0 %v758
    %2055 = vmatmul.bf16.gmra.mxu0 %v1867
    %v2056 = vpop.f32.mrf.mxu0
    %v2057 = vadd.f32 0.0, %v2056
    %v2058 = vpop.f32.mrf.mxu0
    %2059 = vdwg.mxu0
    %2060 = vmatpush.bf16.msra.mxu0 %v787
    %2061 = vmatpush.bf16.msra.mxu0 %v783
    %2062 = vmatpush.bf16.msra.mxu0 %v779
    %2063 = vmatpush.bf16.msra.mxu0 %v775
    %2064 = vmatpush.bf16.msra.mxu0 %v771
    %2065 = vmatpush.bf16.msra.mxu0 %v767
    %2066 = vmatpush.bf16.msra.mxu0 %v763
    %2067 = vmatpush.bf16.msra.mxu0 %v759
    %2068 = vmatmul.bf16.gmra.mxu0 %v1867
    %v2069 = vpop.f32.mrf.mxu0
    %v2070 = vadd.f32 0.0, %v2069
    %v2071 = vpop.f32.mrf.mxu0
    %2072 = vdwg.mxu0
    %2073 = vmatpush.bf16.msra.mxu0 %v788
    %2074 = vmatpush.bf16.msra.mxu0 %v784
    %2075 = vmatpush.bf16.msra.mxu0 %v780
    %2076 = vmatpush.bf16.msra.mxu0 %v776
    %2077 = vmatpush.bf16.msra.mxu0 %v772
    %2078 = vmatpush.bf16.msra.mxu0 %v768
    %2079 = vmatpush.bf16.msra.mxu0 %v764
    %2080 = vmatpush.bf16.msra.mxu0 %v760
    %2081 = vmatmul.bf16.gmra.mxu0 %v1867
    %v2082 = vpop.f32.mrf.mxu0
    %v2083 = vadd.f32 0.0, %v2082
    %v2084 = vpop.f32.mrf.mxu0
    %2085 = vdwg.mxu0
    %2086 = vmatpush.bf16.msra.mxu0 %v789
    %2087 = vmatpush.bf16.msra.mxu0 %v785
    %2088 = vmatpush.bf16.msra.mxu0 %v781
    %2089 = vmatpush.bf16.msra.mxu0 %v777
    %2090 = vmatpush.bf16.msra.mxu0 %v773
    %2091 = vmatpush.bf16.msra.mxu0 %v769
    %2092 = vmatpush.bf16.msra.mxu0 %v765
    %2093 = vmatpush.bf16.msra.mxu0 %v761
    %2094 = vmatmul.bf16.gmra.mxu0 %v1867
    %v2095 = vpop.f32.mrf.mxu0
    %v2096 = vadd.f32 0.0, %v2095
    %v2097 = vpop.f32.mrf.mxu0
    %2098 = vdwg.mxu0
    %v2099 = vadd.f32 %v2043, %v2057
    %v2100 = vadd.f32 %v2044, %v2070
    %v2101 = vadd.f32 %v2045, %v2083
    %v2102 = vadd.f32 %v2046, %v2096
    %v2103 = vxor.u32 %v2099, 2147483648
    %v2104 = vmul.f32 %v2103, 1.442695
    %v2105 = vpow.pop %v2104
    %v2106 = vadd.f32 %v2105, 1.0
    %v2107 = vrcp.pop %v2106
    %v2108 = vmul.f32 %v2106, %v2107
    %v2109 = vsub.f32 1.0, %v2108
    %v2110 = vmul.f32 %v2107, %v2109
    %v2111 = vadd.f32 %v2107, %v2110
    %vm2112 = vweird.f32 %v2106
    %vm2113 = vweird.f32 %v2107
    %vm2114 = vmor %vm2112, %vm2113
    %v2115 = vsel %vm2114, %v2107, %v2111
    %v2116 = vand.u32 2147483647, %v2106
    %vm2117 = vcmp.eq.f32.partialorder %v2116, 8.507059e+37
    %v2118 = vand.u32 %v2106, 2147483648
    %v2119 = vor.u32 1.1754944e-38, %v2118
    %v2120 = vsel %vm2117, %v2119, %v2115
    %v2121 = vmul.f32 1.0, %v2120
    %v2122 = vxor.u32 %v2100, 2147483648
    %v2123 = vmul.f32 %v2122, 1.442695
    %v2124 = vpow.pop %v2123
    %v2125 = vadd.f32 %v2124, 1.0
    %v2126 = vrcp.pop %v2125
    %v2127 = vmul.f32 %v2125, %v2126
    %v2128 = vsub.f32 1.0, %v2127
    %v2129 = vmul.f32 %v2126, %v2128
    %v2130 = vadd.f32 %v2126, %v2129
    %vm2131 = vweird.f32 %v2125
    %vm2132 = vweird.f32 %v2126
    %vm2133 = vmor %vm2131, %vm2132
    %v2134 = vsel %vm2133, %v2126, %v2130
    %v2135 = vand.u32 2147483647, %v2125
    %vm2136 = vcmp.eq.f32.partialorder %v2135, 8.507059e+37
    %v2137 = vand.u32 %v2125, 2147483648
    %v2138 = vor.u32 1.1754944e-38, %v2137
    %v2139 = vsel %vm2136, %v2138, %v2134
    %v2140 = vmul.f32 1.0, %v2139
    %v2141 = vtanh.pop %v2101
    %v2142 = vxor.u32 %v2102, 2147483648
    %v2143 = vmul.f32 %v2142, 1.442695
    %v2144 = vpow.pop %v2143
    %v2145 = vadd.f32 %v2144, 1.0
    %v2146 = vrcp.pop %v2145
    %v2147 = vmul.f32 %v2145, %v2146
    %v2148 = vsub.f32 1.0, %v2147
    %v2149 = vmul.f32 %v2146, %v2148
    %v2150 = vadd.f32 %v2146, %v2149
    %vm2151 = vweird.f32 %v2145
    %vm2152 = vweird.f32 %v2146
    %vm2153 = vmor %vm2151, %vm2152
    %v2154 = vsel %vm2153, %v2146, %v2150
    %v2155 = vand.u32 2147483647, %v2145
    %vm2156 = vcmp.eq.f32.partialorder %v2155, 8.507059e+37
    %v2157 = vand.u32 %v2145, 2147483648
    %v2158 = vor.u32 1.1754944e-38, %v2157
    %v2159 = vsel %vm2156, %v2158, %v2154
    %v2160 = vmul.f32 1.0, %v2159
    %v2161 = vmul.f32 %v2140, %v1864
    %v2162 = vmul.f32 %v2121, %v2141
    %v2163 = vadd.f32 %v2161, %v2162
    %v2164 = vtanh.pop %v2163
    %v2165 = vmul.f32 %v2160, %v2164
    %v2166 = vpack.c.bf16 %v2165, %v2165
    %v2167 = vpack.c.bf16 %v2039, %v2039
    %2168 = vmatpush.bf16.msra.mxu0 %v1066
    %2169 = vmatpush.bf16.msra.mxu0 %v1062
    %2170 = vmatpush.bf16.msra.mxu0 %v1058
    %2171 = vmatpush.bf16.msra.mxu0 %v1054
    %2172 = vmatpush.bf16.msra.mxu0 %v1050
    %2173 = vmatpush.bf16.msra.mxu0 %v1046
    %2174 = vmatpush.bf16.msra.mxu0 %v1042
    %2175 = vmatpush.bf16.msra.mxu0 %v1038
    %2176 = vmatmul.bf16.gmra.mxu0 %v2167
    %v2177 = vpop.f32.mrf.mxu0
    %v2178 = vadd.f32 0.0, %v2177
    %v2179 = vpop.f32.mrf.mxu0
    %2180 = vdwg.mxu0
    %2181 = vmatpush.bf16.msra.mxu0 %v1067
    %2182 = vmatpush.bf16.msra.mxu0 %v1063
    %2183 = vmatpush.bf16.msra.mxu0 %v1059
    %2184 = vmatpush.bf16.msra.mxu0 %v1055
    %2185 = vmatpush.bf16.msra.mxu0 %v1051
    %2186 = vmatpush.bf16.msra.mxu0 %v1047
    %2187 = vmatpush.bf16.msra.mxu0 %v1043
    %2188 = vmatpush.bf16.msra.mxu0 %v1039
    %2189 = vmatmul.bf16.gmra.mxu0 %v2167
    %v2190 = vpop.f32.mrf.mxu0
    %v2191 = vadd.f32 0.0, %v2190
    %v2192 = vpop.f32.mrf.mxu0
    %2193 = vdwg.mxu0
    %2194 = vmatpush.bf16.msra.mxu0 %v1068
    %2195 = vmatpush.bf16.msra.mxu0 %v1064
    %2196 = vmatpush.bf16.msra.mxu0 %v1060
    %2197 = vmatpush.bf16.msra.mxu0 %v1056
    %2198 = vmatpush.bf16.msra.mxu0 %v1052
    %2199 = vmatpush.bf16.msra.mxu0 %v1048
    %2200 = vmatpush.bf16.msra.mxu0 %v1044
    %2201 = vmatpush.bf16.msra.mxu0 %v1040
    %2202 = vmatmul.bf16.gmra.mxu0 %v2167
    %v2203 = vpop.f32.mrf.mxu0
    %v2204 = vadd.f32 0.0, %v2203
    %v2205 = vpop.f32.mrf.mxu0
    %2206 = vdwg.mxu0
    %2207 = vmatpush.bf16.msra.mxu0 %v1069
    %2208 = vmatpush.bf16.msra.mxu0 %v1065
    %2209 = vmatpush.bf16.msra.mxu0 %v1061
    %2210 = vmatpush.bf16.msra.mxu0 %v1057
    %2211 = vmatpush.bf16.msra.mxu0 %v1053
    %2212 = vmatpush.bf16.msra.mxu0 %v1049
    %2213 = vmatpush.bf16.msra.mxu0 %v1045
    %2214 = vmatpush.bf16.msra.mxu0 %v1041
    %2215 = vmatmul.bf16.gmra.mxu0 %v2167
    %v2216 = vpop.f32.mrf.mxu0
    %v2217 = vadd.f32 0.0, %v2216
    %v2218 = vpop.f32.mrf.mxu0
    %2219 = vdwg.mxu0
    %2220 = vmatpush.bf16.msra.mxu0 %v1278
    %2221 = vmatpush.bf16.msra.mxu0 %v1274
    %2222 = vmatpush.bf16.msra.mxu0 %v1270
    %2223 = vmatpush.bf16.msra.mxu0 %v1266
    %2224 = vmatpush.bf16.msra.mxu0 %v1262
    %2225 = vmatpush.bf16.msra.mxu0 %v1258
    %2226 = vmatpush.bf16.msra.mxu0 %v1254
    %2227 = vmatpush.bf16.msra.mxu0 %v1250
    %2228 = vmatmul.bf16.gmra.mxu0 %v2166
    %v2229 = vpop.f32.mrf.mxu0
    %v2230 = vadd.f32 %v2178, %v2229
    %v2231 = vpop.f32.mrf.mxu0
    %2232 = vdwg.mxu0
    %2233 = vmatpush.bf16.msra.mxu0 %v1279
    %2234 = vmatpush.bf16.msra.mxu0 %v1275
    %2235 = vmatpush.bf16.msra.mxu0 %v1271
    %2236 = vmatpush.bf16.msra.mxu0 %v1267
    %2237 = vmatpush.bf16.msra.mxu0 %v1263
    %2238 = vmatpush.bf16.msra.mxu0 %v1259
    %2239 = vmatpush.bf16.msra.mxu0 %v1255
    %2240 = vmatpush.bf16.msra.mxu0 %v1251
    %2241 = vmatmul.bf16.gmra.mxu0 %v2166
    %v2242 = vpop.f32.mrf.mxu0
    %v2243 = vadd.f32 %v2191, %v2242
    %v2244 = vpop.f32.mrf.mxu0
    %2245 = vdwg.mxu0
    %2246 = vmatpush.bf16.msra.mxu0 %v1280
    %2247 = vmatpush.bf16.msra.mxu0 %v1276
    %2248 = vmatpush.bf16.msra.mxu0 %v1272
    %2249 = vmatpush.bf16.msra.mxu0 %v1268
    %2250 = vmatpush.bf16.msra.mxu0 %v1264
    %2251 = vmatpush.bf16.msra.mxu0 %v1260
    %2252 = vmatpush.bf16.msra.mxu0 %v1256
    %2253 = vmatpush.bf16.msra.mxu0 %v1252
    %2254 = vmatmul.bf16.gmra.mxu0 %v2166
    %v2255 = vpop.f32.mrf.mxu0
    %v2256 = vadd.f32 %v2204, %v2255
    %v2257 = vpop.f32.mrf.mxu0
    %2258 = vdwg.mxu0
    %2259 = vmatpush.bf16.msra.mxu0 %v1281
    %2260 = vmatpush.bf16.msra.mxu0 %v1277
    %2261 = vmatpush.bf16.msra.mxu0 %v1273
    %2262 = vmatpush.bf16.msra.mxu0 %v1269
    %2263 = vmatpush.bf16.msra.mxu0 %v1265
    %2264 = vmatpush.bf16.msra.mxu0 %v1261
    %2265 = vmatpush.bf16.msra.mxu0 %v1257
    %2266 = vmatpush.bf16.msra.mxu0 %v1253
    %2267 = vmatmul.bf16.gmra.mxu0 %v2166
    %v2268 = vpop.f32.mrf.mxu0
    %v2269 = vadd.f32 %v2217, %v2268
    %v2270 = vpop.f32.mrf.mxu0
    %2271 = vdwg.mxu0
    %v2272 = vadd.f32 %v2230, %v1367
    %v2273 = vadd.f32 %v2243, %v1368
    %v2274 = vadd.f32 %v2256, %v1369
    %v2275 = vadd.f32 %v2269, %v1370
    %v2276 = vxor.u32 %v2272, 2147483648
    %v2277 = vmul.f32 %v2276, 1.442695
    %v2278 = vpow.pop %v2277
    %v2279 = vadd.f32 %v2278, 1.0
    %v2280 = vrcp.pop %v2279
    %v2281 = vmul.f32 %v2279, %v2280
    %v2282 = vsub.f32 1.0, %v2281
    %v2283 = vmul.f32 %v2280, %v2282
    %v2284 = vadd.f32 %v2280, %v2283
    %vm2285 = vweird.f32 %v2279
    %vm2286 = vweird.f32 %v2280
    %vm2287 = vmor %vm2285, %vm2286
    %v2288 = vsel %vm2287, %v2280, %v2284
    %v2289 = vand.u32 2147483647, %v2279
    %vm2290 = vcmp.eq.f32.partialorder %v2289, 8.507059e+37
    %v2291 = vand.u32 %v2279, 2147483648
    %v2292 = vor.u32 1.1754944e-38, %v2291
    %v2293 = vsel %vm2290, %v2292, %v2288
    %v2294 = vmul.f32 1.0, %v2293
    %v2295 = vxor.u32 %v2273, 2147483648
    %v2296 = vmul.f32 %v2295, 1.442695
    %v2297 = vpow.pop %v2296
    %v2298 = vadd.f32 %v2297, 1.0
    %v2299 = vrcp.pop %v2298
    %v2300 = vmul.f32 %v2298, %v2299
    %v2301 = vsub.f32 1.0, %v2300
    %v2302 = vmul.f32 %v2299, %v2301
    %v2303 = vadd.f32 %v2299, %v2302
    %vm2304 = vweird.f32 %v2298
    %vm2305 = vweird.f32 %v2299
    %vm2306 = vmor %vm2304, %vm2305
    %v2307 = vsel %vm2306, %v2299, %v2303
    %v2308 = vand.u32 2147483647, %v2298
    %vm2309 = vcmp.eq.f32.partialorder %v2308, 8.507059e+37
    %v2310 = vand.u32 %v2298, 2147483648
    %v2311 = vor.u32 1.1754944e-38, %v2310
    %v2312 = vsel %vm2309, %v2311, %v2307
    %v2313 = vmul.f32 1.0, %v2312
    %v2314 = vtanh.pop %v2274
    %v2315 = vxor.u32 %v2275, 2147483648
    %v2316 = vmul.f32 %v2315, 1.442695
    %v2317 = vpow.pop %v2316
    %v2318 = vadd.f32 %v2317, 1.0
    %v2319 = vrcp.pop %v2318
    %v2320 = vmul.f32 %v2318, %v2319
    %v2321 = vsub.f32 1.0, %v2320
    %v2322 = vmul.f32 %v2319, %v2321
    %v2323 = vadd.f32 %v2319, %v2322
    %vm2324 = vweird.f32 %v2318
    %vm2325 = vweird.f32 %v2319
    %vm2326 = vmor %vm2324, %vm2325
    %v2327 = vsel %vm2326, %v2319, %v2323
    %v2328 = vand.u32 2147483647, %v2318
    %vm2329 = vcmp.eq.f32.partialorder %v2328, 8.507059e+37
    %v2330 = vand.u32 %v2318, 2147483648
    %v2331 = vor.u32 1.1754944e-38, %v2330
    %v2332 = vsel %vm2329, %v2331, %v2327
    %v2333 = vmul.f32 1.0, %v2332
    %v2334 = vmul.f32 %v2313, %v2037
    %v2335 = vmul.f32 %v2294, %v2314
    %v2336 = vadd.f32 %v2334, %v2335
    %v2337 = vtanh.pop %v2336
    %v2338 = vmul.f32 %v2333, %v2337
    %s2339 = smul.u32 4, 4
    %s2340 = smul.addr %s2339, 8
    %s2341 = scalar_lea.vmem [#allocation5], %s2340
    %v2342 = vld [vmem:[%s2341] sm:$0xff]
    %v2343 = vld [vmem:[%s2341 + $0x8] sm:$0xff]
    %v2344 = vld [vmem:[%s2341 + $0x10] sm:$0xff]
    %v2345 = vld [vmem:[%s2341 + $0x18] sm:$0xff]
    %2346 = vmatpush.bf16.msra.mxu0 %v786
    %2347 = vmatpush.bf16.msra.mxu0 %v782
    %2348 = vmatpush.bf16.msra.mxu0 %v778
    %2349 = vmatpush.bf16.msra.mxu0 %v774
    %2350 = vmatpush.bf16.msra.mxu0 %v770
    %2351 = vmatpush.bf16.msra.mxu0 %v766
    %2352 = vmatpush.bf16.msra.mxu0 %v762
    %2353 = vmatpush.bf16.msra.mxu0 %v758
    %2354 = vmatmul.bf16.gmra.mxu0 %v2166
    %v2355 = vpop.f32.mrf.mxu0
    %v2356 = vadd.f32 0.0, %v2355
    %v2357 = vpop.f32.mrf.mxu0
    %2358 = vdwg.mxu0
    %2359 = vmatpush.bf16.msra.mxu0 %v787
    %2360 = vmatpush.bf16.msra.mxu0 %v783
    %2361 = vmatpush.bf16.msra.mxu0 %v779
    %2362 = vmatpush.bf16.msra.mxu0 %v775
    %2363 = vmatpush.bf16.msra.mxu0 %v771
    %2364 = vmatpush.bf16.msra.mxu0 %v767
    %2365 = vmatpush.bf16.msra.mxu0 %v763
    %2366 = vmatpush.bf16.msra.mxu0 %v759
    %2367 = vmatmul.bf16.gmra.mxu0 %v2166
    %v2368 = vpop.f32.mrf.mxu0
    %v2369 = vadd.f32 0.0, %v2368
    %v2370 = vpop.f32.mrf.mxu0
    %2371 = vdwg.mxu0
    %2372 = vmatpush.bf16.msra.mxu0 %v788
    %2373 = vmatpush.bf16.msra.mxu0 %v784
    %2374 = vmatpush.bf16.msra.mxu0 %v780
    %2375 = vmatpush.bf16.msra.mxu0 %v776
    %2376 = vmatpush.bf16.msra.mxu0 %v772
    %2377 = vmatpush.bf16.msra.mxu0 %v768
    %2378 = vmatpush.bf16.msra.mxu0 %v764
    %2379 = vmatpush.bf16.msra.mxu0 %v760
    %2380 = vmatmul.bf16.gmra.mxu0 %v2166
    %v2381 = vpop.f32.mrf.mxu0
    %v2382 = vadd.f32 0.0, %v2381
    %v2383 = vpop.f32.mrf.mxu0
    %2384 = vdwg.mxu0
    %2385 = vmatpush.bf16.msra.mxu0 %v789
    %2386 = vmatpush.bf16.msra.mxu0 %v785
    %2387 = vmatpush.bf16.msra.mxu0 %v781
    %2388 = vmatpush.bf16.msra.mxu0 %v777
    %2389 = vmatpush.bf16.msra.mxu0 %v773
    %2390 = vmatpush.bf16.msra.mxu0 %v769
    %2391 = vmatpush.bf16.msra.mxu0 %v765
    %2392 = vmatpush.bf16.msra.mxu0 %v761
    %2393 = vmatmul.bf16.gmra.mxu0 %v2166
    %v2394 = vpop.f32.mrf.mxu0
    %v2395 = vadd.f32 0.0, %v2394
    %v2396 = vpop.f32.mrf.mxu0
    %2397 = vdwg.mxu0
    %v2398 = vadd.f32 %v2342, %v2356
    %v2399 = vadd.f32 %v2343, %v2369
    %v2400 = vadd.f32 %v2344, %v2382
    %v2401 = vadd.f32 %v2345, %v2395
    %v2402 = vxor.u32 %v2398, 2147483648
    %v2403 = vmul.f32 %v2402, 1.442695
    %v2404 = vpow.pop %v2403
    %v2405 = vadd.f32 %v2404, 1.0
    %v2406 = vrcp.pop %v2405
    %v2407 = vmul.f32 %v2405, %v2406
    %v2408 = vsub.f32 1.0, %v2407
    %v2409 = vmul.f32 %v2406, %v2408
    %v2410 = vadd.f32 %v2406, %v2409
    %vm2411 = vweird.f32 %v2405
    %vm2412 = vweird.f32 %v2406
    %vm2413 = vmor %vm2411, %vm2412
    %v2414 = vsel %vm2413, %v2406, %v2410
    %v2415 = vand.u32 2147483647, %v2405
    %vm2416 = vcmp.eq.f32.partialorder %v2415, 8.507059e+37
    %v2417 = vand.u32 %v2405, 2147483648
    %v2418 = vor.u32 1.1754944e-38, %v2417
    %v2419 = vsel %vm2416, %v2418, %v2414
    %v2420 = vmul.f32 1.0, %v2419
    %v2421 = vxor.u32 %v2399, 2147483648
    %v2422 = vmul.f32 %v2421, 1.442695
    %v2423 = vpow.pop %v2422
    %v2424 = vadd.f32 %v2423, 1.0
    %v2425 = vrcp.pop %v2424
    %v2426 = vmul.f32 %v2424, %v2425
    %v2427 = vsub.f32 1.0, %v2426
    %v2428 = vmul.f32 %v2425, %v2427
    %v2429 = vadd.f32 %v2425, %v2428
    %vm2430 = vweird.f32 %v2424
    %vm2431 = vweird.f32 %v2425
    %vm2432 = vmor %vm2430, %vm2431
    %v2433 = vsel %vm2432, %v2425, %v2429
    %v2434 = vand.u32 2147483647, %v2424
    %vm2435 = vcmp.eq.f32.partialorder %v2434, 8.507059e+37
    %v2436 = vand.u32 %v2424, 2147483648
    %v2437 = vor.u32 1.1754944e-38, %v2436
    %v2438 = vsel %vm2435, %v2437, %v2433
    %v2439 = vmul.f32 1.0, %v2438
    %v2440 = vtanh.pop %v2400
    %v2441 = vxor.u32 %v2401, 2147483648
    %v2442 = vmul.f32 %v2441, 1.442695
    %v2443 = vpow.pop %v2442
    %v2444 = vadd.f32 %v2443, 1.0
    %v2445 = vrcp.pop %v2444
    %v2446 = vmul.f32 %v2444, %v2445
    %v2447 = vsub.f32 1.0, %v2446
    %v2448 = vmul.f32 %v2445, %v2447
    %v2449 = vadd.f32 %v2445, %v2448
    %vm2450 = vweird.f32 %v2444
    %vm2451 = vweird.f32 %v2445
    %vm2452 = vmor %vm2450, %vm2451
    %v2453 = vsel %vm2452, %v2445, %v2449
    %v2454 = vand.u32 2147483647, %v2444
    %vm2455 = vcmp.eq.f32.partialorder %v2454, 8.507059e+37
    %v2456 = vand.u32 %v2444, 2147483648
    %v2457 = vor.u32 1.1754944e-38, %v2456
    %v2458 = vsel %vm2455, %v2457, %v2453
    %v2459 = vmul.f32 1.0, %v2458
    %v2460 = vmul.f32 %v2439, %v2163
    %v2461 = vmul.f32 %v2420, %v2440
    %v2462 = vadd.f32 %v2460, %v2461
    %v2463 = vtanh.pop %v2462
    %v2464 = vmul.f32 %v2459, %v2463
    %v2465 = vpack.c.bf16 %v2464, %v2464
    %v2466 = vpack.c.bf16 %v2338, %v2338
    %2467 = vmatpush.bf16.msra.mxu0 %v1066
    %2468 = vmatpush.bf16.msra.mxu0 %v1062
    %2469 = vmatpush.bf16.msra.mxu0 %v1058
    %2470 = vmatpush.bf16.msra.mxu0 %v1054
    %2471 = vmatpush.bf16.msra.mxu0 %v1050
    %2472 = vmatpush.bf16.msra.mxu0 %v1046
    %2473 = vmatpush.bf16.msra.mxu0 %v1042
    %2474 = vmatpush.bf16.msra.mxu0 %v1038
    %2475 = vmatmul.bf16.gmra.mxu0 %v2466
    %v2476 = vpop.f32.mrf.mxu0
    %v2477 = vadd.f32 0.0, %v2476
    %v2478 = vpop.f32.mrf.mxu0
    %2479 = vdwg.mxu0
    %2480 = vmatpush.bf16.msra.mxu0 %v1067
    %2481 = vmatpush.bf16.msra.mxu0 %v1063
    %2482 = vmatpush.bf16.msra.mxu0 %v1059
    %2483 = vmatpush.bf16.msra.mxu0 %v1055
    %2484 = vmatpush.bf16.msra.mxu0 %v1051
    %2485 = vmatpush.bf16.msra.mxu0 %v1047
    %2486 = vmatpush.bf16.msra.mxu0 %v1043
    %2487 = vmatpush.bf16.msra.mxu0 %v1039
    %2488 = vmatmul.bf16.gmra.mxu0 %v2466
    %v2489 = vpop.f32.mrf.mxu0
    %v2490 = vadd.f32 0.0, %v2489
    %v2491 = vpop.f32.mrf.mxu0
    %2492 = vdwg.mxu0
    %2493 = vmatpush.bf16.msra.mxu0 %v1068
    %2494 = vmatpush.bf16.msra.mxu0 %v1064
    %2495 = vmatpush.bf16.msra.mxu0 %v1060
    %2496 = vmatpush.bf16.msra.mxu0 %v1056
    %2497 = vmatpush.bf16.msra.mxu0 %v1052
    %2498 = vmatpush.bf16.msra.mxu0 %v1048
    %2499 = vmatpush.bf16.msra.mxu0 %v1044
    %2500 = vmatpush.bf16.msra.mxu0 %v1040
    %2501 = vmatmul.bf16.gmra.mxu0 %v2466
    %v2502 = vpop.f32.mrf.mxu0
    %v2503 = vadd.f32 0.0, %v2502
    %v2504 = vpop.f32.mrf.mxu0
    %2505 = vdwg.mxu0
    %2506 = vmatpush.bf16.msra.mxu0 %v1069
    %2507 = vmatpush.bf16.msra.mxu0 %v1065
    %2508 = vmatpush.bf16.msra.mxu0 %v1061
    %2509 = vmatpush.bf16.msra.mxu0 %v1057
    %2510 = vmatpush.bf16.msra.mxu0 %v1053
    %2511 = vmatpush.bf16.msra.mxu0 %v1049
    %2512 = vmatpush.bf16.msra.mxu0 %v1045
    %2513 = vmatpush.bf16.msra.mxu0 %v1041
    %2514 = vmatmul.bf16.gmra.mxu0 %v2466
    %v2515 = vpop.f32.mrf.mxu0
    %v2516 = vadd.f32 0.0, %v2515
    %v2517 = vpop.f32.mrf.mxu0
    %2518 = vdwg.mxu0
    %2519 = vmatpush.bf16.msra.mxu0 %v1278
    %2520 = vmatpush.bf16.msra.mxu0 %v1274
    %2521 = vmatpush.bf16.msra.mxu0 %v1270
    %2522 = vmatpush.bf16.msra.mxu0 %v1266
    %2523 = vmatpush.bf16.msra.mxu0 %v1262
    %2524 = vmatpush.bf16.msra.mxu0 %v1258
    %2525 = vmatpush.bf16.msra.mxu0 %v1254
    %2526 = vmatpush.bf16.msra.mxu0 %v1250
    %2527 = vmatmul.bf16.gmra.mxu0 %v2465
    %v2528 = vpop.f32.mrf.mxu0
    %v2529 = vadd.f32 %v2477, %v2528
    %v2530 = vpop.f32.mrf.mxu0
    %2531 = vdwg.mxu0
    %2532 = vmatpush.bf16.msra.mxu0 %v1279
    %2533 = vmatpush.bf16.msra.mxu0 %v1275
    %2534 = vmatpush.bf16.msra.mxu0 %v1271
    %2535 = vmatpush.bf16.msra.mxu0 %v1267
    %2536 = vmatpush.bf16.msra.mxu0 %v1263
    %2537 = vmatpush.bf16.msra.mxu0 %v1259
    %2538 = vmatpush.bf16.msra.mxu0 %v1255
    %2539 = vmatpush.bf16.msra.mxu0 %v1251
    %2540 = vmatmul.bf16.gmra.mxu0 %v2465
    %v2541 = vpop.f32.mrf.mxu0
    %v2542 = vadd.f32 %v2490, %v2541
    %v2543 = vpop.f32.mrf.mxu0
    %2544 = vdwg.mxu0
    %2545 = vmatpush.bf16.msra.mxu0 %v1280
    %2546 = vmatpush.bf16.msra.mxu0 %v1276
    %2547 = vmatpush.bf16.msra.mxu0 %v1272
    %2548 = vmatpush.bf16.msra.mxu0 %v1268
    %2549 = vmatpush.bf16.msra.mxu0 %v1264
    %2550 = vmatpush.bf16.msra.mxu0 %v1260
    %2551 = vmatpush.bf16.msra.mxu0 %v1256
    %2552 = vmatpush.bf16.msra.mxu0 %v1252
    %2553 = vmatmul.bf16.gmra.mxu0 %v2465
    %v2554 = vpop.f32.mrf.mxu0
    %v2555 = vadd.f32 %v2503, %v2554
    %v2556 = vpop.f32.mrf.mxu0
    %2557 = vdwg.mxu0
    %2558 = vmatpush.bf16.msra.mxu0 %v1281
    %2559 = vmatpush.bf16.msra.mxu0 %v1277
    %2560 = vmatpush.bf16.msra.mxu0 %v1273
    %2561 = vmatpush.bf16.msra.mxu0 %v1269
    %2562 = vmatpush.bf16.msra.mxu0 %v1265
    %2563 = vmatpush.bf16.msra.mxu0 %v1261
    %2564 = vmatpush.bf16.msra.mxu0 %v1257
    %2565 = vmatpush.bf16.msra.mxu0 %v1253
    %2566 = vmatmul.bf16.gmra.mxu0 %v2465
    %v2567 = vpop.f32.mrf.mxu0
    %v2568 = vadd.f32 %v2516, %v2567
    %v2569 = vpop.f32.mrf.mxu0
    %2570 = vdwg.mxu0
    %v2571 = vadd.f32 %v2529, %v1367
    %v2572 = vadd.f32 %v2542, %v1368
    %v2573 = vadd.f32 %v2555, %v1369
    %v2574 = vadd.f32 %v2568, %v1370
    %v2575 = vxor.u32 %v2571, 2147483648
    %v2576 = vmul.f32 %v2575, 1.442695
    %v2577 = vpow.pop %v2576
    %v2578 = vadd.f32 %v2577, 1.0
    %v2579 = vrcp.pop %v2578
    %v2580 = vmul.f32 %v2578, %v2579
    %v2581 = vsub.f32 1.0, %v2580
    %v2582 = vmul.f32 %v2579, %v2581
    %v2583 = vadd.f32 %v2579, %v2582
    %vm2584 = vweird.f32 %v2578
    %vm2585 = vweird.f32 %v2579
    %vm2586 = vmor %vm2584, %vm2585
    %v2587 = vsel %vm2586, %v2579, %v2583
    %v2588 = vand.u32 2147483647, %v2578
    %vm2589 = vcmp.eq.f32.partialorder %v2588, 8.507059e+37
    %v2590 = vand.u32 %v2578, 2147483648
    %v2591 = vor.u32 1.1754944e-38, %v2590
    %v2592 = vsel %vm2589, %v2591, %v2587
    %v2593 = vmul.f32 1.0, %v2592
    %v2594 = vxor.u32 %v2572, 2147483648
    %v2595 = vmul.f32 %v2594, 1.442695
    %v2596 = vpow.pop %v2595
    %v2597 = vadd.f32 %v2596, 1.0
    %v2598 = vrcp.pop %v2597
    %v2599 = vmul.f32 %v2597, %v2598
    %v2600 = vsub.f32 1.0, %v2599
    %v2601 = vmul.f32 %v2598, %v2600
    %v2602 = vadd.f32 %v2598, %v2601
    %vm2603 = vweird.f32 %v2597
    %vm2604 = vweird.f32 %v2598
    %vm2605 = vmor %vm2603, %vm2604
    %v2606 = vsel %vm2605, %v2598, %v2602
    %v2607 = vand.u32 2147483647, %v2597
    %vm2608 = vcmp.eq.f32.partialorder %v2607, 8.507059e+37
    %v2609 = vand.u32 %v2597, 2147483648
    %v2610 = vor.u32 1.1754944e-38, %v2609
    %v2611 = vsel %vm2608, %v2610, %v2606
    %v2612 = vmul.f32 1.0, %v2611
    %v2613 = vtanh.pop %v2573
    %v2614 = vxor.u32 %v2574, 2147483648
    %v2615 = vmul.f32 %v2614, 1.442695
    %v2616 = vpow.pop %v2615
    %v2617 = vadd.f32 %v2616, 1.0
    %v2618 = vrcp.pop %v2617
    %v2619 = vmul.f32 %v2617, %v2618
    %v2620 = vsub.f32 1.0, %v2619
    %v2621 = vmul.f32 %v2618, %v2620
    %v2622 = vadd.f32 %v2618, %v2621
    %vm2623 = vweird.f32 %v2617
    %vm2624 = vweird.f32 %v2618
    %vm2625 = vmor %vm2623, %vm2624
    %v2626 = vsel %vm2625, %v2618, %v2622
    %v2627 = vand.u32 2147483647, %v2617
    %vm2628 = vcmp.eq.f32.partialorder %v2627, 8.507059e+37
    %v2629 = vand.u32 %v2617, 2147483648
    %v2630 = vor.u32 1.1754944e-38, %v2629
    %v2631 = vsel %vm2628, %v2630, %v2626
    %v2632 = vmul.f32 1.0, %v2631
    %v2633 = vmul.f32 %v2612, %v2336
    %v2634 = vmul.f32 %v2593, %v2613
    %v2635 = vadd.f32 %v2633, %v2634
    %v2636 = vtanh.pop %v2635
    %v2637 = vmul.f32 %v2632, %v2636
    %s2638 = smul.u32 5, 4
    %s2639 = smul.addr %s2638, 8
    %s2640 = scalar_lea.vmem [#allocation5], %s2639
    %v2641 = vld [vmem:[%s2640] sm:$0xff]
    %v2642 = vld [vmem:[%s2640 + $0x8] sm:$0xff]
    %v2643 = vld [vmem:[%s2640 + $0x10] sm:$0xff]
    %v2644 = vld [vmem:[%s2640 + $0x18] sm:$0xff]
    %2645 = vmatpush.bf16.msra.mxu0 %v786
    %2646 = vmatpush.bf16.msra.mxu0 %v782
    %2647 = vmatpush.bf16.msra.mxu0 %v778
    %2648 = vmatpush.bf16.msra.mxu0 %v774
    %2649 = vmatpush.bf16.msra.mxu0 %v770
    %2650 = vmatpush.bf16.msra.mxu0 %v766
    %2651 = vmatpush.bf16.msra.mxu0 %v762
    %2652 = vmatpush.bf16.msra.mxu0 %v758
    %2653 = vmatmul.bf16.gmra.mxu0 %v2465
    %v2654 = vpop.f32.mrf.mxu0
    %v2655 = vadd.f32 0.0, %v2654
    %v2656 = vpop.f32.mrf.mxu0
    %2657 = vdwg.mxu0
    %2658 = vmatpush.bf16.msra.mxu0 %v787
    %2659 = vmatpush.bf16.msra.mxu0 %v783
    %2660 = vmatpush.bf16.msra.mxu0 %v779
    %2661 = vmatpush.bf16.msra.mxu0 %v775
    %2662 = vmatpush.bf16.msra.mxu0 %v771
    %2663 = vmatpush.bf16.msra.mxu0 %v767
    %2664 = vmatpush.bf16.msra.mxu0 %v763
    %2665 = vmatpush.bf16.msra.mxu0 %v759
    %2666 = vmatmul.bf16.gmra.mxu0 %v2465
    %v2667 = vpop.f32.mrf.mxu0
    %v2668 = vadd.f32 0.0, %v2667
    %v2669 = vpop.f32.mrf.mxu0
    %2670 = vdwg.mxu0
    %2671 = vmatpush.bf16.msra.mxu0 %v788
    %2672 = vmatpush.bf16.msra.mxu0 %v784
    %2673 = vmatpush.bf16.msra.mxu0 %v780
    %2674 = vmatpush.bf16.msra.mxu0 %v776
    %2675 = vmatpush.bf16.msra.mxu0 %v772
    %2676 = vmatpush.bf16.msra.mxu0 %v768
    %2677 = vmatpush.bf16.msra.mxu0 %v764
    %2678 = vmatpush.bf16.msra.mxu0 %v760
    %2679 = vmatmul.bf16.gmra.mxu0 %v2465
    %v2680 = vpop.f32.mrf.mxu0
    %v2681 = vadd.f32 0.0, %v2680
    %v2682 = vpop.f32.mrf.mxu0
    %2683 = vdwg.mxu0
    %2684 = vmatpush.bf16.msra.mxu0 %v789
    %2685 = vmatpush.bf16.msra.mxu0 %v785
    %2686 = vmatpush.bf16.msra.mxu0 %v781
    %2687 = vmatpush.bf16.msra.mxu0 %v777
    %2688 = vmatpush.bf16.msra.mxu0 %v773
    %2689 = vmatpush.bf16.msra.mxu0 %v769
    %2690 = vmatpush.bf16.msra.mxu0 %v765
    %2691 = vmatpush.bf16.msra.mxu0 %v761
    %2692 = vmatmul.bf16.gmra.mxu0 %v2465
    %v2693 = vpop.f32.mrf.mxu0
    %v2694 = vadd.f32 0.0, %v2693
    %v2695 = vpop.f32.mrf.mxu0
    %2696 = vdwg.mxu0
    %v2697 = vadd.f32 %v2641, %v2655
    %v2698 = vadd.f32 %v2642, %v2668
    %v2699 = vadd.f32 %v2643, %v2681
    %v2700 = vadd.f32 %v2644, %v2694
    %v2701 = vxor.u32 %v2697, 2147483648
    %v2702 = vmul.f32 %v2701, 1.442695
    %v2703 = vpow.pop %v2702
    %v2704 = vadd.f32 %v2703, 1.0
    %v2705 = vrcp.pop %v2704
    %v2706 = vmul.f32 %v2704, %v2705
    %v2707 = vsub.f32 1.0, %v2706
    %v2708 = vmul.f32 %v2705, %v2707
    %v2709 = vadd.f32 %v2705, %v2708
    %vm2710 = vweird.f32 %v2704
    %vm2711 = vweird.f32 %v2705
    %vm2712 = vmor %vm2710, %vm2711
    %v2713 = vsel %vm2712, %v2705, %v2709
    %v2714 = vand.u32 2147483647, %v2704
    %vm2715 = vcmp.eq.f32.partialorder %v2714, 8.507059e+37
    %v2716 = vand.u32 %v2704, 2147483648
    %v2717 = vor.u32 1.1754944e-38, %v2716
    %v2718 = vsel %vm2715, %v2717, %v2713
    %v2719 = vmul.f32 1.0, %v2718
    %v2720 = vxor.u32 %v2698, 2147483648
    %v2721 = vmul.f32 %v2720, 1.442695
    %v2722 = vpow.pop %v2721
    %v2723 = vadd.f32 %v2722, 1.0
    %v2724 = vrcp.pop %v2723
    %v2725 = vmul.f32 %v2723, %v2724
    %v2726 = vsub.f32 1.0, %v2725
    %v2727 = vmul.f32 %v2724, %v2726
    %v2728 = vadd.f32 %v2724, %v2727
    %vm2729 = vweird.f32 %v2723
    %vm2730 = vweird.f32 %v2724
    %vm2731 = vmor %vm2729, %vm2730
    %v2732 = vsel %vm2731, %v2724, %v2728
    %v2733 = vand.u32 2147483647, %v2723
    %vm2734 = vcmp.eq.f32.partialorder %v2733, 8.507059e+37
    %v2735 = vand.u32 %v2723, 2147483648
    %v2736 = vor.u32 1.1754944e-38, %v2735
    %v2737 = vsel %vm2734, %v2736, %v2732
    %v2738 = vmul.f32 1.0, %v2737
    %v2739 = vtanh.pop %v2699
    %v2740 = vxor.u32 %v2700, 2147483648
    %v2741 = vmul.f32 %v2740, 1.442695
    %v2742 = vpow.pop %v2741
    %v2743 = vadd.f32 %v2742, 1.0
    %v2744 = vrcp.pop %v2743
    %v2745 = vmul.f32 %v2743, %v2744
    %v2746 = vsub.f32 1.0, %v2745
    %v2747 = vmul.f32 %v2744, %v2746
    %v2748 = vadd.f32 %v2744, %v2747
    %vm2749 = vweird.f32 %v2743
    %vm2750 = vweird.f32 %v2744
    %vm2751 = vmor %vm2749, %vm2750
    %v2752 = vsel %vm2751, %v2744, %v2748
    %v2753 = vand.u32 2147483647, %v2743
    %vm2754 = vcmp.eq.f32.partialorder %v2753, 8.507059e+37
    %v2755 = vand.u32 %v2743, 2147483648
    %v2756 = vor.u32 1.1754944e-38, %v2755
    %v2757 = vsel %vm2754, %v2756, %v2752
    %v2758 = vmul.f32 1.0, %v2757
    %v2759 = vmul.f32 %v2738, %v2462
    %v2760 = vmul.f32 %v2719, %v2739
    %v2761 = vadd.f32 %v2759, %v2760
    %v2762 = vtanh.pop %v2761
    %v2763 = vmul.f32 %v2758, %v2762
    %v2764 = vpack.c.bf16 %v2763, %v2763
    %v2765 = vpack.c.bf16 %v2637, %v2637
    %2766 = vmatpush.bf16.msra.mxu0 %v1066
    %2767 = vmatpush.bf16.msra.mxu0 %v1062
    %2768 = vmatpush.bf16.msra.mxu0 %v1058
    %2769 = vmatpush.bf16.msra.mxu0 %v1054
    %2770 = vmatpush.bf16.msra.mxu0 %v1050
    %2771 = vmatpush.bf16.msra.mxu0 %v1046
    %2772 = vmatpush.bf16.msra.mxu0 %v1042
    %2773 = vmatpush.bf16.msra.mxu0 %v1038
    %2774 = vmatmul.bf16.gmra.mxu0 %v2765
    %v2775 = vpop.f32.mrf.mxu0
    %v2776 = vadd.f32 0.0, %v2775
    %v2777 = vpop.f32.mrf.mxu0
    %2778 = vdwg.mxu0
    %2779 = vmatpush.bf16.msra.mxu0 %v1067
    %2780 = vmatpush.bf16.msra.mxu0 %v1063
    %2781 = vmatpush.bf16.msra.mxu0 %v1059
    %2782 = vmatpush.bf16.msra.mxu0 %v1055
    %2783 = vmatpush.bf16.msra.mxu0 %v1051
    %2784 = vmatpush.bf16.msra.mxu0 %v1047
    %2785 = vmatpush.bf16.msra.mxu0 %v1043
    %2786 = vmatpush.bf16.msra.mxu0 %v1039
    %2787 = vmatmul.bf16.gmra.mxu0 %v2765
    %v2788 = vpop.f32.mrf.mxu0
    %v2789 = vadd.f32 0.0, %v2788
    %v2790 = vpop.f32.mrf.mxu0
    %2791 = vdwg.mxu0
    %2792 = vmatpush.bf16.msra.mxu0 %v1068
    %2793 = vmatpush.bf16.msra.mxu0 %v1064
    %2794 = vmatpush.bf16.msra.mxu0 %v1060
    %2795 = vmatpush.bf16.msra.mxu0 %v1056
    %2796 = vmatpush.bf16.msra.mxu0 %v1052
    %2797 = vmatpush.bf16.msra.mxu0 %v1048
    %2798 = vmatpush.bf16.msra.mxu0 %v1044
    %2799 = vmatpush.bf16.msra.mxu0 %v1040
    %2800 = vmatmul.bf16.gmra.mxu0 %v2765
    %v2801 = vpop.f32.mrf.mxu0
    %v2802 = vadd.f32 0.0, %v2801
    %v2803 = vpop.f32.mrf.mxu0
    %2804 = vdwg.mxu0
    %2805 = vmatpush.bf16.msra.mxu0 %v1069
    %2806 = vmatpush.bf16.msra.mxu0 %v1065
    %2807 = vmatpush.bf16.msra.mxu0 %v1061
    %2808 = vmatpush.bf16.msra.mxu0 %v1057
    %2809 = vmatpush.bf16.msra.mxu0 %v1053
    %2810 = vmatpush.bf16.msra.mxu0 %v1049
    %2811 = vmatpush.bf16.msra.mxu0 %v1045
    %2812 = vmatpush.bf16.msra.mxu0 %v1041
    %2813 = vmatmul.bf16.gmra.mxu0 %v2765
    %v2814 = vpop.f32.mrf.mxu0
    %v2815 = vadd.f32 0.0, %v2814
    %v2816 = vpop.f32.mrf.mxu0
    %2817 = vdwg.mxu0
    %2818 = vmatpush.bf16.msra.mxu0 %v1278
    %2819 = vmatpush.bf16.msra.mxu0 %v1274
    %2820 = vmatpush.bf16.msra.mxu0 %v1270
    %2821 = vmatpush.bf16.msra.mxu0 %v1266
    %2822 = vmatpush.bf16.msra.mxu0 %v1262
    %2823 = vmatpush.bf16.msra.mxu0 %v1258
    %2824 = vmatpush.bf16.msra.mxu0 %v1254
    %2825 = vmatpush.bf16.msra.mxu0 %v1250
    %2826 = vmatmul.bf16.gmra.mxu0 %v2764
    %v2827 = vpop.f32.mrf.mxu0
    %v2828 = vadd.f32 %v2776, %v2827
    %v2829 = vpop.f32.mrf.mxu0
    %2830 = vdwg.mxu0
    %2831 = vmatpush.bf16.msra.mxu0 %v1279
    %2832 = vmatpush.bf16.msra.mxu0 %v1275
    %2833 = vmatpush.bf16.msra.mxu0 %v1271
    %2834 = vmatpush.bf16.msra.mxu0 %v1267
    %2835 = vmatpush.bf16.msra.mxu0 %v1263
    %2836 = vmatpush.bf16.msra.mxu0 %v1259
    %2837 = vmatpush.bf16.msra.mxu0 %v1255
    %2838 = vmatpush.bf16.msra.mxu0 %v1251
    %2839 = vmatmul.bf16.gmra.mxu0 %v2764
    %v2840 = vpop.f32.mrf.mxu0
    %v2841 = vadd.f32 %v2789, %v2840
    %v2842 = vpop.f32.mrf.mxu0
    %2843 = vdwg.mxu0
    %2844 = vmatpush.bf16.msra.mxu0 %v1280
    %2845 = vmatpush.bf16.msra.mxu0 %v1276
    %2846 = vmatpush.bf16.msra.mxu0 %v1272
    %2847 = vmatpush.bf16.msra.mxu0 %v1268
    %2848 = vmatpush.bf16.msra.mxu0 %v1264
    %2849 = vmatpush.bf16.msra.mxu0 %v1260
    %2850 = vmatpush.bf16.msra.mxu0 %v1256
    %2851 = vmatpush.bf16.msra.mxu0 %v1252
    %2852 = vmatmul.bf16.gmra.mxu0 %v2764
    %v2853 = vpop.f32.mrf.mxu0
    %v2854 = vadd.f32 %v2802, %v2853
    %v2855 = vpop.f32.mrf.mxu0
    %2856 = vdwg.mxu0
    %2857 = vmatpush.bf16.msra.mxu0 %v1281
    %2858 = vmatpush.bf16.msra.mxu0 %v1277
    %2859 = vmatpush.bf16.msra.mxu0 %v1273
    %2860 = vmatpush.bf16.msra.mxu0 %v1269
    %2861 = vmatpush.bf16.msra.mxu0 %v1265
    %2862 = vmatpush.bf16.msra.mxu0 %v1261
    %2863 = vmatpush.bf16.msra.mxu0 %v1257
    %2864 = vmatpush.bf16.msra.mxu0 %v1253
    %2865 = vmatmul.bf16.gmra.mxu0 %v2764
    %v2866 = vpop.f32.mrf.mxu0
    %v2867 = vadd.f32 %v2815, %v2866
    %v2868 = vpop.f32.mrf.mxu0
    %2869 = vdwg.mxu0
    %v2870 = vadd.f32 %v2828, %v1367
    %v2871 = vadd.f32 %v2841, %v1368
    %v2872 = vadd.f32 %v2854, %v1369
    %v2873 = vadd.f32 %v2867, %v1370
    %v2874 = vxor.u32 %v2870, 2147483648
    %v2875 = vmul.f32 %v2874, 1.442695
    %v2876 = vpow.pop %v2875
    %v2877 = vadd.f32 %v2876, 1.0
    %v2878 = vrcp.pop %v2877
    %v2879 = vmul.f32 %v2877, %v2878
    %v2880 = vsub.f32 1.0, %v2879
    %v2881 = vmul.f32 %v2878, %v2880
    %v2882 = vadd.f32 %v2878, %v2881
    %vm2883 = vweird.f32 %v2877
    %vm2884 = vweird.f32 %v2878
    %vm2885 = vmor %vm2883, %vm2884
    %v2886 = vsel %vm2885, %v2878, %v2882
    %v2887 = vand.u32 2147483647, %v2877
    %vm2888 = vcmp.eq.f32.partialorder %v2887, 8.507059e+37
    %v2889 = vand.u32 %v2877, 2147483648
    %v2890 = vor.u32 1.1754944e-38, %v2889
    %v2891 = vsel %vm2888, %v2890, %v2886
    %v2892 = vmul.f32 1.0, %v2891
    %v2893 = vxor.u32 %v2871, 2147483648
    %v2894 = vmul.f32 %v2893, 1.442695
    %v2895 = vpow.pop %v2894
    %v2896 = vadd.f32 %v2895, 1.0
    %v2897 = vrcp.pop %v2896
    %v2898 = vmul.f32 %v2896, %v2897
    %v2899 = vsub.f32 1.0, %v2898
    %v2900 = vmul.f32 %v2897, %v2899
    %v2901 = vadd.f32 %v2897, %v2900
    %vm2902 = vweird.f32 %v2896
    %vm2903 = vweird.f32 %v2897
    %vm2904 = vmor %vm2902, %vm2903
    %v2905 = vsel %vm2904, %v2897, %v2901
    %v2906 = vand.u32 2147483647, %v2896
    %vm2907 = vcmp.eq.f32.partialorder %v2906, 8.507059e+37
    %v2908 = vand.u32 %v2896, 2147483648
    %v2909 = vor.u32 1.1754944e-38, %v2908
    %v2910 = vsel %vm2907, %v2909, %v2905
    %v2911 = vmul.f32 1.0, %v2910
    %v2912 = vtanh.pop %v2872
    %v2913 = vxor.u32 %v2873, 2147483648
    %v2914 = vmul.f32 %v2913, 1.442695
    %v2915 = vpow.pop %v2914
    %v2916 = vadd.f32 %v2915, 1.0
    %v2917 = vrcp.pop %v2916
    %v2918 = vmul.f32 %v2916, %v2917
    %v2919 = vsub.f32 1.0, %v2918
    %v2920 = vmul.f32 %v2917, %v2919
    %v2921 = vadd.f32 %v2917, %v2920
    %vm2922 = vweird.f32 %v2916
    %vm2923 = vweird.f32 %v2917
    %vm2924 = vmor %vm2922, %vm2923
    %v2925 = vsel %vm2924, %v2917, %v2921
    %v2926 = vand.u32 2147483647, %v2916
    %vm2927 = vcmp.eq.f32.partialorder %v2926, 8.507059e+37
    %v2928 = vand.u32 %v2916, 2147483648
    %v2929 = vor.u32 1.1754944e-38, %v2928
    %v2930 = vsel %vm2927, %v2929, %v2925
    %v2931 = vmul.f32 1.0, %v2930
    %v2932 = vmul.f32 %v2911, %v2635
    %v2933 = vmul.f32 %v2892, %v2912
    %v2934 = vadd.f32 %v2932, %v2933
    %v2935 = vtanh.pop %v2934
    %v2936 = vmul.f32 %v2931, %v2935
    %s2937 = smul.u32 6, 4
    %s2938 = smul.addr %s2937, 8
    %s2939 = scalar_lea.vmem [#allocation5], %s2938
    %v2940 = vld [vmem:[%s2939] sm:$0xff]
    %v2941 = vld [vmem:[%s2939 + $0x8] sm:$0xff]
    %v2942 = vld [vmem:[%s2939 + $0x10] sm:$0xff]
    %v2943 = vld [vmem:[%s2939 + $0x18] sm:$0xff]
    %2944 = vmatpush.bf16.msra.mxu0 %v786
    %2945 = vmatpush.bf16.msra.mxu0 %v782
    %2946 = vmatpush.bf16.msra.mxu0 %v778
    %2947 = vmatpush.bf16.msra.mxu0 %v774
    %2948 = vmatpush.bf16.msra.mxu0 %v770
    %2949 = vmatpush.bf16.msra.mxu0 %v766
    %2950 = vmatpush.bf16.msra.mxu0 %v762
    %2951 = vmatpush.bf16.msra.mxu0 %v758
    %2952 = vmatmul.bf16.gmra.mxu0 %v2764
    %v2953 = vpop.f32.mrf.mxu0
    %v2954 = vadd.f32 0.0, %v2953
    %v2955 = vpop.f32.mrf.mxu0
    %2956 = vdwg.mxu0
    %2957 = vmatpush.bf16.msra.mxu0 %v787
    %2958 = vmatpush.bf16.msra.mxu0 %v783
    %2959 = vmatpush.bf16.msra.mxu0 %v779
    %2960 = vmatpush.bf16.msra.mxu0 %v775
    %2961 = vmatpush.bf16.msra.mxu0 %v771
    %2962 = vmatpush.bf16.msra.mxu0 %v767
    %2963 = vmatpush.bf16.msra.mxu0 %v763
    %2964 = vmatpush.bf16.msra.mxu0 %v759
    %2965 = vmatmul.bf16.gmra.mxu0 %v2764
    %v2966 = vpop.f32.mrf.mxu0
    %v2967 = vadd.f32 0.0, %v2966
    %v2968 = vpop.f32.mrf.mxu0
    %2969 = vdwg.mxu0
    %2970 = vmatpush.bf16.msra.mxu0 %v788
    %2971 = vmatpush.bf16.msra.mxu0 %v784
    %2972 = vmatpush.bf16.msra.mxu0 %v780
    %2973 = vmatpush.bf16.msra.mxu0 %v776
    %2974 = vmatpush.bf16.msra.mxu0 %v772
    %2975 = vmatpush.bf16.msra.mxu0 %v768
    %2976 = vmatpush.bf16.msra.mxu0 %v764
    %2977 = vmatpush.bf16.msra.mxu0 %v760
    %2978 = vmatmul.bf16.gmra.mxu0 %v2764
    %v2979 = vpop.f32.mrf.mxu0
    %v2980 = vadd.f32 0.0, %v2979
    %v2981 = vpop.f32.mrf.mxu0
    %2982 = vdwg.mxu0
    %2983 = vmatpush.bf16.msra.mxu0 %v789
    %2984 = vmatpush.bf16.msra.mxu0 %v785
    %2985 = vmatpush.bf16.msra.mxu0 %v781
    %2986 = vmatpush.bf16.msra.mxu0 %v777
    %2987 = vmatpush.bf16.msra.mxu0 %v773
    %2988 = vmatpush.bf16.msra.mxu0 %v769
    %2989 = vmatpush.bf16.msra.mxu0 %v765
    %2990 = vmatpush.bf16.msra.mxu0 %v761
    %2991 = vmatmul.bf16.gmra.mxu0 %v2764
    %v2992 = vpop.f32.mrf.mxu0
    %v2993 = vadd.f32 0.0, %v2992
    %v2994 = vpop.f32.mrf.mxu0
    %2995 = vdwg.mxu0
    %v2996 = vadd.f32 %v2940, %v2954
    %v2997 = vadd.f32 %v2941, %v2967
    %v2998 = vadd.f32 %v2942, %v2980
    %v2999 = vadd.f32 %v2943, %v2993
    %v3000 = vxor.u32 %v2996, 2147483648
    %v3001 = vmul.f32 %v3000, 1.442695
    %v3002 = vpow.pop %v3001
    %v3003 = vadd.f32 %v3002, 1.0
    %v3004 = vrcp.pop %v3003
    %v3005 = vmul.f32 %v3003, %v3004
    %v3006 = vsub.f32 1.0, %v3005
    %v3007 = vmul.f32 %v3004, %v3006
    %v3008 = vadd.f32 %v3004, %v3007
    %vm3009 = vweird.f32 %v3003
    %vm3010 = vweird.f32 %v3004
    %vm3011 = vmor %vm3009, %vm3010
    %v3012 = vsel %vm3011, %v3004, %v3008
    %v3013 = vand.u32 2147483647, %v3003
    %vm3014 = vcmp.eq.f32.partialorder %v3013, 8.507059e+37
    %v3015 = vand.u32 %v3003, 2147483648
    %v3016 = vor.u32 1.1754944e-38, %v3015
    %v3017 = vsel %vm3014, %v3016, %v3012
    %v3018 = vmul.f32 1.0, %v3017
    %v3019 = vxor.u32 %v2997, 2147483648
    %v3020 = vmul.f32 %v3019, 1.442695
    %v3021 = vpow.pop %v3020
    %v3022 = vadd.f32 %v3021, 1.0
    %v3023 = vrcp.pop %v3022
    %v3024 = vmul.f32 %v3022, %v3023
    %v3025 = vsub.f32 1.0, %v3024
    %v3026 = vmul.f32 %v3023, %v3025
    %v3027 = vadd.f32 %v3023, %v3026
    %vm3028 = vweird.f32 %v3022
    %vm3029 = vweird.f32 %v3023
    %vm3030 = vmor %vm3028, %vm3029
    %v3031 = vsel %vm3030, %v3023, %v3027
    %v3032 = vand.u32 2147483647, %v3022
    %vm3033 = vcmp.eq.f32.partialorder %v3032, 8.507059e+37
    %v3034 = vand.u32 %v3022, 2147483648
    %v3035 = vor.u32 1.1754944e-38, %v3034
    %v3036 = vsel %vm3033, %v3035, %v3031
    %v3037 = vmul.f32 1.0, %v3036
    %v3038 = vtanh.pop %v2998
    %v3039 = vxor.u32 %v2999, 2147483648
    %v3040 = vmul.f32 %v3039, 1.442695
    %v3041 = vpow.pop %v3040
    %v3042 = vadd.f32 %v3041, 1.0
    %v3043 = vrcp.pop %v3042
    %v3044 = vmul.f32 %v3042, %v3043
    %v3045 = vsub.f32 1.0, %v3044
    %v3046 = vmul.f32 %v3043, %v3045
    %v3047 = vadd.f32 %v3043, %v3046
    %vm3048 = vweird.f32 %v3042
    %vm3049 = vweird.f32 %v3043
    %vm3050 = vmor %vm3048, %vm3049
    %v3051 = vsel %vm3050, %v3043, %v3047
    %v3052 = vand.u32 2147483647, %v3042
    %vm3053 = vcmp.eq.f32.partialorder %v3052, 8.507059e+37
    %v3054 = vand.u32 %v3042, 2147483648
    %v3055 = vor.u32 1.1754944e-38, %v3054
    %v3056 = vsel %vm3053, %v3055, %v3051
    %v3057 = vmul.f32 1.0, %v3056
    %v3058 = vmul.f32 %v3037, %v2761
    %v3059 = vmul.f32 %v3018, %v3038
    %v3060 = vadd.f32 %v3058, %v3059
    %v3061 = vtanh.pop %v3060
    %v3062 = vmul.f32 %v3057, %v3061
    %v3063 = vpack.c.bf16 %v3062, %v3062
    %v3064 = vpack.c.bf16 %v2936, %v2936
    %3065 = vmatpush.bf16.msra.mxu0 %v1066
    %3066 = vmatpush.bf16.msra.mxu0 %v1062
    %3067 = vmatpush.bf16.msra.mxu0 %v1058
    %3068 = vmatpush.bf16.msra.mxu0 %v1054
    %3069 = vmatpush.bf16.msra.mxu0 %v1050
    %3070 = vmatpush.bf16.msra.mxu0 %v1046
    %3071 = vmatpush.bf16.msra.mxu0 %v1042
    %3072 = vmatpush.bf16.msra.mxu0 %v1038
    %3073 = vmatmul.bf16.gmra.mxu0 %v3064
    %v3074 = vpop.f32.mrf.mxu0
    %v3075 = vadd.f32 0.0, %v3074
    %v3076 = vpop.f32.mrf.mxu0
    %3077 = vdwg.mxu0
    %3078 = vmatpush.bf16.msra.mxu0 %v1067
    %3079 = vmatpush.bf16.msra.mxu0 %v1063
    %3080 = vmatpush.bf16.msra.mxu0 %v1059
    %3081 = vmatpush.bf16.msra.mxu0 %v1055
    %3082 = vmatpush.bf16.msra.mxu0 %v1051
    %3083 = vmatpush.bf16.msra.mxu0 %v1047
    %3084 = vmatpush.bf16.msra.mxu0 %v1043
    %3085 = vmatpush.bf16.msra.mxu0 %v1039
    %3086 = vmatmul.bf16.gmra.mxu0 %v3064
    %v3087 = vpop.f32.mrf.mxu0
    %v3088 = vadd.f32 0.0, %v3087
    %v3089 = vpop.f32.mrf.mxu0
    %3090 = vdwg.mxu0
    %3091 = vmatpush.bf16.msra.mxu0 %v1068
    %3092 = vmatpush.bf16.msra.mxu0 %v1064
    %3093 = vmatpush.bf16.msra.mxu0 %v1060
    %3094 = vmatpush.bf16.msra.mxu0 %v1056
    %3095 = vmatpush.bf16.msra.mxu0 %v1052
    %3096 = vmatpush.bf16.msra.mxu0 %v1048
    %3097 = vmatpush.bf16.msra.mxu0 %v1044
    %3098 = vmatpush.bf16.msra.mxu0 %v1040
    %3099 = vmatmul.bf16.gmra.mxu0 %v3064
    %v3100 = vpop.f32.mrf.mxu0
    %v3101 = vadd.f32 0.0, %v3100
    %v3102 = vpop.f32.mrf.mxu0
    %3103 = vdwg.mxu0
    %3104 = vmatpush.bf16.msra.mxu0 %v1069
    %3105 = vmatpush.bf16.msra.mxu0 %v1065
    %3106 = vmatpush.bf16.msra.mxu0 %v1061
    %3107 = vmatpush.bf16.msra.mxu0 %v1057
    %3108 = vmatpush.bf16.msra.mxu0 %v1053
    %3109 = vmatpush.bf16.msra.mxu0 %v1049
    %3110 = vmatpush.bf16.msra.mxu0 %v1045
    %3111 = vmatpush.bf16.msra.mxu0 %v1041
    %3112 = vmatmul.bf16.gmra.mxu0 %v3064
    %v3113 = vpop.f32.mrf.mxu0
    %v3114 = vadd.f32 0.0, %v3113
    %v3115 = vpop.f32.mrf.mxu0
    %3116 = vdwg.mxu0
    %3117 = vmatpush.bf16.msra.mxu0 %v1278
    %3118 = vmatpush.bf16.msra.mxu0 %v1274
    %3119 = vmatpush.bf16.msra.mxu0 %v1270
    %3120 = vmatpush.bf16.msra.mxu0 %v1266
    %3121 = vmatpush.bf16.msra.mxu0 %v1262
    %3122 = vmatpush.bf16.msra.mxu0 %v1258
    %3123 = vmatpush.bf16.msra.mxu0 %v1254
    %3124 = vmatpush.bf16.msra.mxu0 %v1250
    %3125 = vmatmul.bf16.gmra.mxu0 %v3063
    %v3126 = vpop.f32.mrf.mxu0
    %v3127 = vadd.f32 %v3075, %v3126
    %v3128 = vpop.f32.mrf.mxu0
    %3129 = vdwg.mxu0
    %3130 = vmatpush.bf16.msra.mxu0 %v1279
    %3131 = vmatpush.bf16.msra.mxu0 %v1275
    %3132 = vmatpush.bf16.msra.mxu0 %v1271
    %3133 = vmatpush.bf16.msra.mxu0 %v1267
    %3134 = vmatpush.bf16.msra.mxu0 %v1263
    %3135 = vmatpush.bf16.msra.mxu0 %v1259
    %3136 = vmatpush.bf16.msra.mxu0 %v1255
    %3137 = vmatpush.bf16.msra.mxu0 %v1251
    %3138 = vmatmul.bf16.gmra.mxu0 %v3063
    %v3139 = vpop.f32.mrf.mxu0
    %v3140 = vadd.f32 %v3088, %v3139
    %v3141 = vpop.f32.mrf.mxu0
    %3142 = vdwg.mxu0
    %3143 = vmatpush.bf16.msra.mxu0 %v1280
    %3144 = vmatpush.bf16.msra.mxu0 %v1276
    %3145 = vmatpush.bf16.msra.mxu0 %v1272
    %3146 = vmatpush.bf16.msra.mxu0 %v1268
    %3147 = vmatpush.bf16.msra.mxu0 %v1264
    %3148 = vmatpush.bf16.msra.mxu0 %v1260
    %3149 = vmatpush.bf16.msra.mxu0 %v1256
    %3150 = vmatpush.bf16.msra.mxu0 %v1252
    %3151 = vmatmul.bf16.gmra.mxu0 %v3063
    %v3152 = vpop.f32.mrf.mxu0
    %v3153 = vadd.f32 %v3101, %v3152
    %v3154 = vpop.f32.mrf.mxu0
    %3155 = vdwg.mxu0
    %3156 = vmatpush.bf16.msra.mxu0 %v1281
    %3157 = vmatpush.bf16.msra.mxu0 %v1277
    %3158 = vmatpush.bf16.msra.mxu0 %v1273
    %3159 = vmatpush.bf16.msra.mxu0 %v1269
    %3160 = vmatpush.bf16.msra.mxu0 %v1265
    %3161 = vmatpush.bf16.msra.mxu0 %v1261
    %3162 = vmatpush.bf16.msra.mxu0 %v1257
    %3163 = vmatpush.bf16.msra.mxu0 %v1253
    %3164 = vmatmul.bf16.gmra.mxu0 %v3063
    %v3165 = vpop.f32.mrf.mxu0
    %v3166 = vadd.f32 %v3114, %v3165
    %v3167 = vpop.f32.mrf.mxu0
    %3168 = vdwg.mxu0
    %v3169 = vadd.f32 %v3127, %v1367
    %v3170 = vadd.f32 %v3140, %v1368
    %v3171 = vadd.f32 %v3153, %v1369
    %v3172 = vadd.f32 %v3166, %v1370
    %v3173 = vxor.u32 %v3169, 2147483648
    %v3174 = vmul.f32 %v3173, 1.442695
    %v3175 = vpow.pop %v3174
    %v3176 = vadd.f32 %v3175, 1.0
    %v3177 = vrcp.pop %v3176
    %v3178 = vmul.f32 %v3176, %v3177
    %v3179 = vsub.f32 1.0, %v3178
    %v3180 = vmul.f32 %v3177, %v3179
    %v3181 = vadd.f32 %v3177, %v3180
    %vm3182 = vweird.f32 %v3176
    %vm3183 = vweird.f32 %v3177
    %vm3184 = vmor %vm3182, %vm3183
    %v3185 = vsel %vm3184, %v3177, %v3181
    %v3186 = vand.u32 2147483647, %v3176
    %vm3187 = vcmp.eq.f32.partialorder %v3186, 8.507059e+37
    %v3188 = vand.u32 %v3176, 2147483648
    %v3189 = vor.u32 1.1754944e-38, %v3188
    %v3190 = vsel %vm3187, %v3189, %v3185
    %v3191 = vmul.f32 1.0, %v3190
    %v3192 = vxor.u32 %v3170, 2147483648
    %v3193 = vmul.f32 %v3192, 1.442695
    %v3194 = vpow.pop %v3193
    %v3195 = vadd.f32 %v3194, 1.0
    %v3196 = vrcp.pop %v3195
    %v3197 = vmul.f32 %v3195, %v3196
    %v3198 = vsub.f32 1.0, %v3197
    %v3199 = vmul.f32 %v3196, %v3198
    %v3200 = vadd.f32 %v3196, %v3199
    %vm3201 = vweird.f32 %v3195
    %vm3202 = vweird.f32 %v3196
    %vm3203 = vmor %vm3201, %vm3202
    %v3204 = vsel %vm3203, %v3196, %v3200
    %v3205 = vand.u32 2147483647, %v3195
    %vm3206 = vcmp.eq.f32.partialorder %v3205, 8.507059e+37
    %v3207 = vand.u32 %v3195, 2147483648
    %v3208 = vor.u32 1.1754944e-38, %v3207
    %v3209 = vsel %vm3206, %v3208, %v3204
    %v3210 = vmul.f32 1.0, %v3209
    %v3211 = vtanh.pop %v3171
    %v3212 = vxor.u32 %v3172, 2147483648
    %v3213 = vmul.f32 %v3212, 1.442695
    %v3214 = vpow.pop %v3213
    %v3215 = vadd.f32 %v3214, 1.0
    %v3216 = vrcp.pop %v3215
    %v3217 = vmul.f32 %v3215, %v3216
    %v3218 = vsub.f32 1.0, %v3217
    %v3219 = vmul.f32 %v3216, %v3218
    %v3220 = vadd.f32 %v3216, %v3219
    %vm3221 = vweird.f32 %v3215
    %vm3222 = vweird.f32 %v3216
    %vm3223 = vmor %vm3221, %vm3222
    %v3224 = vsel %vm3223, %v3216, %v3220
    %v3225 = vand.u32 2147483647, %v3215
    %vm3226 = vcmp.eq.f32.partialorder %v3225, 8.507059e+37
    %v3227 = vand.u32 %v3215, 2147483648
    %v3228 = vor.u32 1.1754944e-38, %v3227
    %v3229 = vsel %vm3226, %v3228, %v3224
    %v3230 = vmul.f32 1.0, %v3229
    %v3231 = vmul.f32 %v3210, %v2934
    %v3232 = vmul.f32 %v3191, %v3211
    %v3233 = vadd.f32 %v3231, %v3232
    %v3234 = vtanh.pop %v3233
    %v3235 = vmul.f32 %v3230, %v3234
    %s3236 = smul.u32 7, 4
    %s3237 = smul.addr %s3236, 8
    %s3238 = scalar_lea.vmem [#allocation5], %s3237
    %v3239 = vld [vmem:[%s3238] sm:$0xff]
    %v3240 = vld [vmem:[%s3238 + $0x8] sm:$0xff]
    %v3241 = vld [vmem:[%s3238 + $0x10] sm:$0xff]
    %v3242 = vld [vmem:[%s3238 + $0x18] sm:$0xff]
    %3243 = vmatpush.bf16.msra.mxu0 %v786
    %3244 = vmatpush.bf16.msra.mxu0 %v782
    %3245 = vmatpush.bf16.msra.mxu0 %v778
    %3246 = vmatpush.bf16.msra.mxu0 %v774
    %3247 = vmatpush.bf16.msra.mxu0 %v770
    %3248 = vmatpush.bf16.msra.mxu0 %v766
    %3249 = vmatpush.bf16.msra.mxu0 %v762
    %3250 = vmatpush.bf16.msra.mxu0 %v758
    %3251 = vmatmul.bf16.gmra.mxu0 %v3063
    %v3252 = vpop.f32.mrf.mxu0
    %v3253 = vadd.f32 0.0, %v3252
    %v3254 = vpop.f32.mrf.mxu0
    %3255 = vdwg.mxu0
    %3256 = vmatpush.bf16.msra.mxu0 %v787
    %3257 = vmatpush.bf16.msra.mxu0 %v783
    %3258 = vmatpush.bf16.msra.mxu0 %v779
    %3259 = vmatpush.bf16.msra.mxu0 %v775
    %3260 = vmatpush.bf16.msra.mxu0 %v771
    %3261 = vmatpush.bf16.msra.mxu0 %v767
    %3262 = vmatpush.bf16.msra.mxu0 %v763
    %3263 = vmatpush.bf16.msra.mxu0 %v759
    %3264 = vmatmul.bf16.gmra.mxu0 %v3063
    %v3265 = vpop.f32.mrf.mxu0
    %v3266 = vadd.f32 0.0, %v3265
    %v3267 = vpop.f32.mrf.mxu0
    %3268 = vdwg.mxu0
    %3269 = vmatpush.bf16.msra.mxu0 %v788
    %3270 = vmatpush.bf16.msra.mxu0 %v784
    %3271 = vmatpush.bf16.msra.mxu0 %v780
    %3272 = vmatpush.bf16.msra.mxu0 %v776
    %3273 = vmatpush.bf16.msra.mxu0 %v772
    %3274 = vmatpush.bf16.msra.mxu0 %v768
    %3275 = vmatpush.bf16.msra.mxu0 %v764
    %3276 = vmatpush.bf16.msra.mxu0 %v760
    %3277 = vmatmul.bf16.gmra.mxu0 %v3063
    %v3278 = vpop.f32.mrf.mxu0
    %v3279 = vadd.f32 0.0, %v3278
    %v3280 = vpop.f32.mrf.mxu0
    %3281 = vdwg.mxu0
    %3282 = vmatpush.bf16.msra.mxu0 %v789
    %3283 = vmatpush.bf16.msra.mxu0 %v785
    %3284 = vmatpush.bf16.msra.mxu0 %v781
    %3285 = vmatpush.bf16.msra.mxu0 %v777
    %3286 = vmatpush.bf16.msra.mxu0 %v773
    %3287 = vmatpush.bf16.msra.mxu0 %v769
    %3288 = vmatpush.bf16.msra.mxu0 %v765
    %3289 = vmatpush.bf16.msra.mxu0 %v761
    %3290 = vmatmul.bf16.gmra.mxu0 %v3063
    %v3291 = vpop.f32.mrf.mxu0
    %v3292 = vadd.f32 0.0, %v3291
    %v3293 = vpop.f32.mrf.mxu0
    %3294 = vdwg.mxu0
    %v3295 = vadd.f32 %v3239, %v3253
    %v3296 = vadd.f32 %v3240, %v3266
    %v3297 = vadd.f32 %v3241, %v3279
    %v3298 = vadd.f32 %v3242, %v3292
    %v3299 = vxor.u32 %v3295, 2147483648
    %v3300 = vmul.f32 %v3299, 1.442695
    %v3301 = vpow.pop %v3300
    %v3302 = vadd.f32 %v3301, 1.0
    %v3303 = vrcp.pop %v3302
    %v3304 = vmul.f32 %v3302, %v3303
    %v3305 = vsub.f32 1.0, %v3304
    %v3306 = vmul.f32 %v3303, %v3305
    %v3307 = vadd.f32 %v3303, %v3306
    %vm3308 = vweird.f32 %v3302
    %vm3309 = vweird.f32 %v3303
    %vm3310 = vmor %vm3308, %vm3309
    %v3311 = vsel %vm3310, %v3303, %v3307
    %v3312 = vand.u32 2147483647, %v3302
    %vm3313 = vcmp.eq.f32.partialorder %v3312, 8.507059e+37
    %v3314 = vand.u32 %v3302, 2147483648
    %v3315 = vor.u32 1.1754944e-38, %v3314
    %v3316 = vsel %vm3313, %v3315, %v3311
    %v3317 = vmul.f32 1.0, %v3316
    %v3318 = vxor.u32 %v3296, 2147483648
    %v3319 = vmul.f32 %v3318, 1.442695
    %v3320 = vpow.pop %v3319
    %v3321 = vadd.f32 %v3320, 1.0
    %v3322 = vrcp.pop %v3321
    %v3323 = vmul.f32 %v3321, %v3322
    %v3324 = vsub.f32 1.0, %v3323
    %v3325 = vmul.f32 %v3322, %v3324
    %v3326 = vadd.f32 %v3322, %v3325
    %vm3327 = vweird.f32 %v3321
    %vm3328 = vweird.f32 %v3322
    %vm3329 = vmor %vm3327, %vm3328
    %v3330 = vsel %vm3329, %v3322, %v3326
    %v3331 = vand.u32 2147483647, %v3321
    %vm3332 = vcmp.eq.f32.partialorder %v3331, 8.507059e+37
    %v3333 = vand.u32 %v3321, 2147483648
    %v3334 = vor.u32 1.1754944e-38, %v3333
    %v3335 = vsel %vm3332, %v3334, %v3330
    %v3336 = vmul.f32 1.0, %v3335
    %v3337 = vtanh.pop %v3297
    %v3338 = vxor.u32 %v3298, 2147483648
    %v3339 = vmul.f32 %v3338, 1.442695
    %v3340 = vpow.pop %v3339
    %v3341 = vadd.f32 %v3340, 1.0
    %v3342 = vrcp.pop %v3341
    %v3343 = vmul.f32 %v3341, %v3342
    %v3344 = vsub.f32 1.0, %v3343
    %v3345 = vmul.f32 %v3342, %v3344
    %v3346 = vadd.f32 %v3342, %v3345
    %vm3347 = vweird.f32 %v3341
    %vm3348 = vweird.f32 %v3342
    %vm3349 = vmor %vm3347, %vm3348
    %v3350 = vsel %vm3349, %v3342, %v3346
    %v3351 = vand.u32 2147483647, %v3341
    %vm3352 = vcmp.eq.f32.partialorder %v3351, 8.507059e+37
    %v3353 = vand.u32 %v3341, 2147483648
    %v3354 = vor.u32 1.1754944e-38, %v3353
    %v3355 = vsel %vm3352, %v3354, %v3350
    %v3356 = vmul.f32 1.0, %v3355
    %v3357 = vmul.f32 %v3336, %v3060
    %v3358 = vmul.f32 %v3317, %v3337
    %v3359 = vadd.f32 %v3357, %v3358
    %v3360 = vtanh.pop %v3359
    %v3361 = vmul.f32 %v3356, %v3360
    %v3362 = vpack.c.bf16 %v3361, %v3361
    %v3363 = vpack.c.bf16 %v3235, %v3235
    %3364 = vmatpush.bf16.msra.mxu0 %v1066
    %3365 = vmatpush.bf16.msra.mxu0 %v1062
    %3366 = vmatpush.bf16.msra.mxu0 %v1058
    %3367 = vmatpush.bf16.msra.mxu0 %v1054
    %3368 = vmatpush.bf16.msra.mxu0 %v1050
    %3369 = vmatpush.bf16.msra.mxu0 %v1046
    %3370 = vmatpush.bf16.msra.mxu0 %v1042
    %3371 = vmatpush.bf16.msra.mxu0 %v1038
    %3372 = vmatmul.bf16.gmra.mxu0 %v3363
    %v3373 = vpop.f32.mrf.mxu0
    %v3374 = vadd.f32 0.0, %v3373
    %v3375 = vpop.f32.mrf.mxu0
    %3376 = vdwg.mxu0
    %3377 = vmatpush.bf16.msra.mxu0 %v1067
    %3378 = vmatpush.bf16.msra.mxu0 %v1063
    %3379 = vmatpush.bf16.msra.mxu0 %v1059
    %3380 = vmatpush.bf16.msra.mxu0 %v1055
    %3381 = vmatpush.bf16.msra.mxu0 %v1051
    %3382 = vmatpush.bf16.msra.mxu0 %v1047
    %3383 = vmatpush.bf16.msra.mxu0 %v1043
    %3384 = vmatpush.bf16.msra.mxu0 %v1039
    %3385 = vmatmul.bf16.gmra.mxu0 %v3363
    %v3386 = vpop.f32.mrf.mxu0
    %v3387 = vadd.f32 0.0, %v3386
    %v3388 = vpop.f32.mrf.mxu0
    %3389 = vdwg.mxu0
    %3390 = vmatpush.bf16.msra.mxu0 %v1068
    %3391 = vmatpush.bf16.msra.mxu0 %v1064
    %3392 = vmatpush.bf16.msra.mxu0 %v1060
    %3393 = vmatpush.bf16.msra.mxu0 %v1056
    %3394 = vmatpush.bf16.msra.mxu0 %v1052
    %3395 = vmatpush.bf16.msra.mxu0 %v1048
    %3396 = vmatpush.bf16.msra.mxu0 %v1044
    %3397 = vmatpush.bf16.msra.mxu0 %v1040
    %3398 = vmatmul.bf16.gmra.mxu0 %v3363
    %v3399 = vpop.f32.mrf.mxu0
    %v3400 = vadd.f32 0.0, %v3399
    %v3401 = vpop.f32.mrf.mxu0
    %3402 = vdwg.mxu0
    %3403 = vmatpush.bf16.msra.mxu0 %v1069
    %3404 = vmatpush.bf16.msra.mxu0 %v1065
    %3405 = vmatpush.bf16.msra.mxu0 %v1061
    %3406 = vmatpush.bf16.msra.mxu0 %v1057
    %3407 = vmatpush.bf16.msra.mxu0 %v1053
    %3408 = vmatpush.bf16.msra.mxu0 %v1049
    %3409 = vmatpush.bf16.msra.mxu0 %v1045
    %3410 = vmatpush.bf16.msra.mxu0 %v1041
    %3411 = vmatmul.bf16.gmra.mxu0 %v3363
    %v3412 = vpop.f32.mrf.mxu0
    %v3413 = vadd.f32 0.0, %v3412
    %v3414 = vpop.f32.mrf.mxu0
    %3415 = vdwg.mxu0
    %3416 = vmatpush.bf16.msra.mxu0 %v1278
    %3417 = vmatpush.bf16.msra.mxu0 %v1274
    %3418 = vmatpush.bf16.msra.mxu0 %v1270
    %3419 = vmatpush.bf16.msra.mxu0 %v1266
    %3420 = vmatpush.bf16.msra.mxu0 %v1262
    %3421 = vmatpush.bf16.msra.mxu0 %v1258
    %3422 = vmatpush.bf16.msra.mxu0 %v1254
    %3423 = vmatpush.bf16.msra.mxu0 %v1250
    %3424 = vmatmul.bf16.gmra.mxu0 %v3362
    %v3425 = vpop.f32.mrf.mxu0
    %v3426 = vadd.f32 %v3374, %v3425
    %v3427 = vpop.f32.mrf.mxu0
    %3428 = vdwg.mxu0
    %3429 = vmatpush.bf16.msra.mxu0 %v1279
    %3430 = vmatpush.bf16.msra.mxu0 %v1275
    %3431 = vmatpush.bf16.msra.mxu0 %v1271
    %3432 = vmatpush.bf16.msra.mxu0 %v1267
    %3433 = vmatpush.bf16.msra.mxu0 %v1263
    %3434 = vmatpush.bf16.msra.mxu0 %v1259
    %3435 = vmatpush.bf16.msra.mxu0 %v1255
    %3436 = vmatpush.bf16.msra.mxu0 %v1251
    %3437 = vmatmul.bf16.gmra.mxu0 %v3362
    %v3438 = vpop.f32.mrf.mxu0
    %v3439 = vadd.f32 %v3387, %v3438
    %v3440 = vpop.f32.mrf.mxu0
    %3441 = vdwg.mxu0
    %3442 = vmatpush.bf16.msra.mxu0 %v1280
    %3443 = vmatpush.bf16.msra.mxu0 %v1276
    %3444 = vmatpush.bf16.msra.mxu0 %v1272
    %3445 = vmatpush.bf16.msra.mxu0 %v1268
    %3446 = vmatpush.bf16.msra.mxu0 %v1264
    %3447 = vmatpush.bf16.msra.mxu0 %v1260
    %3448 = vmatpush.bf16.msra.mxu0 %v1256
    %3449 = vmatpush.bf16.msra.mxu0 %v1252
    %3450 = vmatmul.bf16.gmra.mxu0 %v3362
    %v3451 = vpop.f32.mrf.mxu0
    %v3452 = vadd.f32 %v3400, %v3451
    %v3453 = vpop.f32.mrf.mxu0
    %3454 = vdwg.mxu0
    %3455 = vmatpush.bf16.msra.mxu0 %v1281
    %3456 = vmatpush.bf16.msra.mxu0 %v1277
    %3457 = vmatpush.bf16.msra.mxu0 %v1273
    %3458 = vmatpush.bf16.msra.mxu0 %v1269
    %3459 = vmatpush.bf16.msra.mxu0 %v1265
    %3460 = vmatpush.bf16.msra.mxu0 %v1261
    %3461 = vmatpush.bf16.msra.mxu0 %v1257
    %3462 = vmatpush.bf16.msra.mxu0 %v1253
    %3463 = vmatmul.bf16.gmra.mxu0 %v3362
    %v3464 = vpop.f32.mrf.mxu0
    %v3465 = vadd.f32 %v3413, %v3464
    %v3466 = vpop.f32.mrf.mxu0
    %3467 = vdwg.mxu0
    %v3468 = vadd.f32 %v3426, %v1367
    %v3469 = vadd.f32 %v3439, %v1368
    %v3470 = vadd.f32 %v3452, %v1369
    %v3471 = vadd.f32 %v3465, %v1370
    %v3472 = vxor.u32 %v3468, 2147483648
    %v3473 = vmul.f32 %v3472, 1.442695
    %v3474 = vpow.pop %v3473
    %v3475 = vadd.f32 %v3474, 1.0
    %v3476 = vrcp.pop %v3475
    %v3477 = vmul.f32 %v3475, %v3476
    %v3478 = vsub.f32 1.0, %v3477
    %v3479 = vmul.f32 %v3476, %v3478
    %v3480 = vadd.f32 %v3476, %v3479
    %vm3481 = vweird.f32 %v3475
    %vm3482 = vweird.f32 %v3476
    %vm3483 = vmor %vm3481, %vm3482
    %v3484 = vsel %vm3483, %v3476, %v3480
    %v3485 = vand.u32 2147483647, %v3475
    %vm3486 = vcmp.eq.f32.partialorder %v3485, 8.507059e+37
    %v3487 = vand.u32 %v3475, 2147483648
    %v3488 = vor.u32 1.1754944e-38, %v3487
    %v3489 = vsel %vm3486, %v3488, %v3484
    %v3490 = vmul.f32 1.0, %v3489
    %v3491 = vxor.u32 %v3469, 2147483648
    %v3492 = vmul.f32 %v3491, 1.442695
    %v3493 = vpow.pop %v3492
    %v3494 = vadd.f32 %v3493, 1.0
    %v3495 = vrcp.pop %v3494
    %v3496 = vmul.f32 %v3494, %v3495
    %v3497 = vsub.f32 1.0, %v3496
    %v3498 = vmul.f32 %v3495, %v3497
    %v3499 = vadd.f32 %v3495, %v3498
    %vm3500 = vweird.f32 %v3494
    %vm3501 = vweird.f32 %v3495
    %vm3502 = vmor %vm3500, %vm3501
    %v3503 = vsel %vm3502, %v3495, %v3499
    %v3504 = vand.u32 2147483647, %v3494
    %vm3505 = vcmp.eq.f32.partialorder %v3504, 8.507059e+37
    %v3506 = vand.u32 %v3494, 2147483648
    %v3507 = vor.u32 1.1754944e-38, %v3506
    %v3508 = vsel %vm3505, %v3507, %v3503
    %v3509 = vmul.f32 1.0, %v3508
    %v3510 = vtanh.pop %v3470
    %v3511 = vxor.u32 %v3471, 2147483648
    %v3512 = vmul.f32 %v3511, 1.442695
    %v3513 = vpow.pop %v3512
    %v3514 = vadd.f32 %v3513, 1.0
    %v3515 = vrcp.pop %v3514
    %v3516 = vmul.f32 %v3514, %v3515
    %v3517 = vsub.f32 1.0, %v3516
    %v3518 = vmul.f32 %v3515, %v3517
    %v3519 = vadd.f32 %v3515, %v3518
    %vm3520 = vweird.f32 %v3514
    %vm3521 = vweird.f32 %v3515
    %vm3522 = vmor %vm3520, %vm3521
    %v3523 = vsel %vm3522, %v3515, %v3519
    %v3524 = vand.u32 2147483647, %v3514
    %vm3525 = vcmp.eq.f32.partialorder %v3524, 8.507059e+37
    %v3526 = vand.u32 %v3514, 2147483648
    %v3527 = vor.u32 1.1754944e-38, %v3526
    %v3528 = vsel %vm3525, %v3527, %v3523
    %v3529 = vmul.f32 1.0, %v3528
    %v3530 = vmul.f32 %v3509, %v3233
    %v3531 = vmul.f32 %v3490, %v3510
    %v3532 = vadd.f32 %v3530, %v3531
    %v3533 = vtanh.pop %v3532
    %v3534 = vmul.f32 %v3529, %v3533
    %s3535 = smul.u32 4, 16
    %s3536 = smul.u32 %s3535, 1
    %s3537 = sshll.u32 %s3536, 4
    %3538 = dma.done [#allocation6], %s3537
    %s3539 = sshll.u32 %s3536, 4
    %3540 = dma.done %s148, %s3539
    %s3541 = sshll.u32 %s3536, 4
    %3542 = dma.done %s162, %s3541
    %v3543 = vld [vmem:[#allocation2] sm:$0xf]
    %v3544 = vld [vmem:[#allocation2 + $0x4] sm:$0xf]
    %v3545 = vld [vmem:[#allocation2 + $0x8] sm:$0xf]
    %v3546 = vld [vmem:[#allocation2 + $0xc] sm:$0xf]
    %v3547 = vld [vmem:[#allocation2 + $0x10] sm:$0xf]
    %v3548 = vld [vmem:[#allocation2 + $0x14] sm:$0xf]
    %v3549 = vld [vmem:[#allocation2 + $0x18] sm:$0xf]
    %v3550 = vld [vmem:[#allocation2 + $0x1c] sm:$0xf]
    %v3551 = vld [vmem:[#allocation2 + $0x20] sm:$0xf]
    %v3552 = vld [vmem:[#allocation2 + $0x24] sm:$0xf]
    %v3553 = vld [vmem:[#allocation2 + $0x28] sm:$0xf]
    %v3554 = vld [vmem:[#allocation2 + $0x2c] sm:$0xf]
    %v3555 = vld [vmem:[#allocation2 + $0x30] sm:$0xf]
    %v3556 = vld [vmem:[#allocation2 + $0x34] sm:$0xf]
    %v3557 = vld [vmem:[#allocation2 + $0x38] sm:$0xf]
    %v3558 = vld [vmem:[#allocation2 + $0x3c] sm:$0xf]
    %v3559 = vld [vmem:[%s12] sm:$0xf]
    %v3560 = vld [vmem:[#allocation3] sm:$0xf]
    %v3561 = vld [vmem:[#allocation3 + $0x4] sm:$0xf]
    %v3562 = vld [vmem:[#allocation3 + $0x8] sm:$0xf]
    %v3563 = vld [vmem:[#allocation3 + $0xc] sm:$0xf]
    %v3564 = vld [vmem:[#allocation3 + $0x10] sm:$0xf]
    %v3565 = vld [vmem:[#allocation3 + $0x14] sm:$0xf]
    %v3566 = vld [vmem:[#allocation3 + $0x18] sm:$0xf]
    %v3567 = vld [vmem:[#allocation3 + $0x1c] sm:$0xf]
    %v3568 = vld [vmem:[#allocation3 + $0x20] sm:$0xf]
    %v3569 = vld [vmem:[#allocation3 + $0x24] sm:$0xf]
    %v3570 = vld [vmem:[#allocation3 + $0x28] sm:$0xf]
    %v3571 = vld [vmem:[#allocation3 + $0x2c] sm:$0xf]
    %v3572 = vld [vmem:[#allocation3 + $0x30] sm:$0xf]
    %v3573 = vld [vmem:[#allocation3 + $0x34] sm:$0xf]
    %v3574 = vld [vmem:[#allocation3 + $0x38] sm:$0xf]
    %v3575 = vld [vmem:[#allocation3 + $0x3c] sm:$0xf]
    %v3592 = vunpack.c.l.b16 %v3560
    %v3593 = vunpack.c.l.b16 %v3561
    %v3594 = vunpack.c.l.b16 %v3562
    %v3595 = vunpack.c.l.b16 %v3563
    %v3596 = vunpack.c.l.b16 %v3564
    %v3597 = vunpack.c.l.b16 %v3565
    %v3598 = vunpack.c.l.b16 %v3566
    %v3599 = vunpack.c.l.b16 %v3567
    %v3600 = vunpack.c.l.b16 %v3568
    %v3601 = vunpack.c.l.b16 %v3569
    %v3602 = vunpack.c.l.b16 %v3570
    %v3603 = vunpack.c.l.b16 %v3571
    %v3604 = vunpack.c.l.b16 %v3572
    %v3605 = vunpack.c.l.b16 %v3573
    %v3606 = vunpack.c.l.b16 %v3574
    %v3607 = vunpack.c.l.b16 %v3575
    %v3608 = vpack.c.b16 %v3593, %v3592
    %v3609 = vpack.c.b16 %v3595, %v3594
    %v3610 = vpack.c.b16 %v3597, %v3596
    %v3611 = vpack.c.b16 %v3599, %v3598
    %v3612 = vpack.c.b16 %v3601, %v3600
    %v3613 = vpack.c.b16 %v3603, %v3602
    %v3614 = vpack.c.b16 %v3605, %v3604
    %v3615 = vpack.c.b16 %v3607, %v3606
    %3624 = vmatpush.bf16.msra.mxu0 %v3615
    %3625 = vmatpush.bf16.msra.mxu0 %v3614
    %3626 = vmatpush.bf16.msra.mxu0 %v3613
    %3627 = vmatpush.bf16.msra.mxu0 %v3612
    %3628 = vmatpush.bf16.msra.mxu0 %v3611
    %3629 = vmatpush.bf16.msra.mxu0 %v3610
    %3630 = vmatpush.bf16.msra.mxu0 %v3609
    %3631 = vmatpush.bf16.msra.mxu0 %v3608
    %3632 = vmatmul.bf16.gmra.mxu0 %v3559
    %v3633 = vpop.f32.mrf.mxu0
    %v3634 = vadd.f32 0.0, %v3633
    %v3635 = vpop.f32.mrf.mxu0
    %3636 = vdwg.mxu0
    %v3653 = vunpack.c.l.b16 %v3543
    %v3654 = vunpack.c.l.b16 %v3544
    %v3655 = vunpack.c.l.b16 %v3545
    %v3656 = vunpack.c.l.b16 %v3546
    %v3657 = vunpack.c.l.b16 %v3547
    %v3658 = vunpack.c.l.b16 %v3548
    %v3659 = vunpack.c.l.b16 %v3549
    %v3660 = vunpack.c.l.b16 %v3550
    %v3661 = vunpack.c.l.b16 %v3551
    %v3662 = vunpack.c.l.b16 %v3552
    %v3663 = vunpack.c.l.b16 %v3553
    %v3664 = vunpack.c.l.b16 %v3554
    %v3665 = vunpack.c.l.b16 %v3555
    %v3666 = vunpack.c.l.b16 %v3556
    %v3667 = vunpack.c.l.b16 %v3557
    %v3668 = vunpack.c.l.b16 %v3558
    %v3669 = vpack.c.b16 %v3654, %v3653
    %v3670 = vpack.c.b16 %v3656, %v3655
    %v3671 = vpack.c.b16 %v3658, %v3657
    %v3672 = vpack.c.b16 %v3660, %v3659
    %v3673 = vpack.c.b16 %v3662, %v3661
    %v3674 = vpack.c.b16 %v3664, %v3663
    %v3675 = vpack.c.b16 %v3666, %v3665
    %v3676 = vpack.c.b16 %v3668, %v3667
    %3685 = vmatpush.bf16.msra.mxu0 %v3676
    %3686 = vmatpush.bf16.msra.mxu0 %v3675
    %3687 = vmatpush.bf16.msra.mxu0 %v3674
    %3688 = vmatpush.bf16.msra.mxu0 %v3673
    %3689 = vmatpush.bf16.msra.mxu0 %v3672
    %3690 = vmatpush.bf16.msra.mxu0 %v3671
    %3691 = vmatpush.bf16.msra.mxu0 %v3670
    %3692 = vmatpush.bf16.msra.mxu0 %v3669
    %3693 = vmatmul.bf16.gmra.mxu0 %v3362
    %v3694 = vpop.f32.mrf.mxu0
    %v3695 = vadd.f32 %v3634, %v3694
    %v3696 = vpop.f32.mrf.mxu0
    %3697 = vdwg.mxu0
    %v3698 = vld [vmem:[%s10] sm:$0x1]
    %v3700 = vperm.slane %v3698, 0
    %v3702 = vadd.f32 %v3695, %v3700
    %v3703 = vpack.c.bf16 %v3702, %v3702
    %v3704 = vld [vmem:[#allocation4] sm:$0xf]
    %v3705 = vld [vmem:[#allocation4 + $0x4] sm:$0xf]
    %v3706 = vld [vmem:[#allocation4 + $0x8] sm:$0xf]
    %v3707 = vld [vmem:[#allocation4 + $0xc] sm:$0xf]
    %v3708 = vld [vmem:[#allocation4 + $0x10] sm:$0xf]
    %v3709 = vld [vmem:[#allocation4 + $0x14] sm:$0xf]
    %v3710 = vld [vmem:[#allocation4 + $0x18] sm:$0xf]
    %v3711 = vld [vmem:[#allocation4 + $0x1c] sm:$0xf]
    %v3712 = vld [vmem:[#allocation4 + $0x20] sm:$0xf]
    %v3713 = vld [vmem:[#allocation4 + $0x24] sm:$0xf]
    %v3714 = vld [vmem:[#allocation4 + $0x28] sm:$0xf]
    %v3715 = vld [vmem:[#allocation4 + $0x2c] sm:$0xf]
    %v3716 = vld [vmem:[#allocation4 + $0x30] sm:$0xf]
    %v3717 = vld [vmem:[#allocation4 + $0x34] sm:$0xf]
    %v3718 = vld [vmem:[#allocation4 + $0x38] sm:$0xf]
    %v3719 = vld [vmem:[#allocation4 + $0x3c] sm:$0xf]
    %v3720 = vld [vmem:[%s11] sm:$0x1]
    %v3722 = vperm.slane %v3720, 0
    %v3740 = vunpack.c.l.b16 %v3704
    %v3741 = vunpack.c.l.b16 %v3705
    %v3742 = vunpack.c.l.b16 %v3706
    %v3743 = vunpack.c.l.b16 %v3707
    %v3744 = vunpack.c.l.b16 %v3708
    %v3745 = vunpack.c.l.b16 %v3709
    %v3746 = vunpack.c.l.b16 %v3710
    %v3747 = vunpack.c.l.b16 %v3711
    %v3748 = vunpack.c.l.b16 %v3712
    %v3749 = vunpack.c.l.b16 %v3713
    %v3750 = vunpack.c.l.b16 %v3714
    %v3751 = vunpack.c.l.b16 %v3715
    %v3752 = vunpack.c.l.b16 %v3716
    %v3753 = vunpack.c.l.b16 %v3717
    %v3754 = vunpack.c.l.b16 %v3718
    %v3755 = vunpack.c.l.b16 %v3719
    %v3756 = vpack.c.b16 %v3741, %v3740
    %v3757 = vpack.c.b16 %v3743, %v3742
    %v3758 = vpack.c.b16 %v3745, %v3744
    %v3759 = vpack.c.b16 %v3747, %v3746
    %v3760 = vpack.c.b16 %v3749, %v3748
    %v3761 = vpack.c.b16 %v3751, %v3750
    %v3762 = vpack.c.b16 %v3753, %v3752
    %v3763 = vpack.c.b16 %v3755, %v3754
    %3772 = vmatpush.bf16.msra.mxu0 %v3763
    %3773 = vmatpush.bf16.msra.mxu0 %v3762
    %3774 = vmatpush.bf16.msra.mxu0 %v3761
    %3775 = vmatpush.bf16.msra.mxu0 %v3760
    %3776 = vmatpush.bf16.msra.mxu0 %v3759
    %3777 = vmatpush.bf16.msra.mxu0 %v3758
    %3778 = vmatpush.bf16.msra.mxu0 %v3757
    %3779 = vmatpush.bf16.msra.mxu0 %v3756
    %3780 = vmatmul.bf16.gmra.mxu0 %v3703
    %v3781 = vpop.f32.mrf.mxu0
    %v3782 = vadd.f32 %v3722, %v3781
    %v3783 = vpop.f32.mrf.mxu0
    %3784 = vdwg.mxu0
    %v3785 = vlaneseq
    %v3786 = vshrl.u32 %v3785, 7
    %vm3787 = vcmp.lt.s32.totalorder %v3786, 2
    %v3788 = vsel %vm3787, %v3782, -1e+30
    %v3789 = vrot.slane %v3788, 4
    %v3790 = vmax.f32 %v3788, %v3789
    %v3791 = vrot.slane %v3790, 2
    %v3792 = vmax.f32 %v3790, %v3791
    %v3793 = vrot.slane %v3792, 1
    %v3794 = vmax.f32 %v3792, %v3793
    %v3795 = vsub.f32 %v3788, %v3794
    %v3796 = vmul.f32 %v3795, 1.442695
    %v3797 = vpow.pop %v3796
    %v3798 = vrot.slane %v3797, 4
    %v3799 = vadd.f32 %v3797, %v3798
    %v3800 = vrot.slane %v3799, 2
    %v3801 = vadd.f32 %v3799, %v3800
    %v3802 = vrot.slane %v3801, 1
    %v3803 = vadd.f32 %v3801, %v3802
    %v3804 = vrcp.pop %v3803
    %v3805 = vmul.f32 %v3803, %v3804
    %v3806 = vsub.f32 1.0, %v3805
    %v3807 = vmul.f32 %v3804, %v3806
    %v3808 = vadd.f32 %v3804, %v3807
    %vm3809 = vweird.f32 %v3803
    %vm3810 = vweird.f32 %v3804
    %vm3811 = vmor %vm3809, %vm3810
    %v3812 = vsel %vm3811, %v3804, %v3808
    %v3813 = vand.u32 2147483647, %v3803
    %vm3814 = vcmp.eq.f32.partialorder %v3813, 8.507059e+37
    %v3815 = vand.u32 %v3803, 2147483648
    %v3816 = vor.u32 1.1754944e-38, %v3815
    %v3817 = vsel %vm3814, %v3816, %v3812
    %v3818 = vmul.f32 %v3797, %v3817
    %3819 = vst [vmem:[#allocation18] sm:$0xff] %v3818
    %3820 = vst [vmem:[#allocation19] sm:$0xff] %v3361
    %s3821 = scalar_lea.vmem [#allocation19], 8
    %3822 = vst [vmem:[%s3821] sm:$0xff] %v3359
    %s3823 = scalar_lea.vmem [#allocation19], 16
    %3824 = vst [vmem:[%s3823] sm:$0xff] %v3534
    %s3825 = scalar_lea.vmem [#allocation19], 24
    %3826 = vst [vmem:[%s3825] sm:$0xff] %v3532
    // Predicated region
    $region78: #{tpu_custom_call.1} parent=1 // pred_check
      _
    $region79: #{tpu_custom_call.1} parent=1 // pred_check_branch
      %3828 = sbr.rel (0) target = $region81
    $region80: #{tpu_custom_call.1} parent=1 // pred_region
      %3830 = vsyncadd [#allocation9], 0
      %s3832 = sshll.u32 [#allocation18], 4
      %s3833 = int_to_ptr.vmem [resolvable:$true] %s3832
      %s3834 = sshll.u32 %s13, 4
      %s3835 = int_to_ptr.hbm [resolvable:$true] %s3834
      %3837 = dma.vmem_to_hbm [thread:$0]  %s3833, 128, %s3835, [#allocation9]
    $region81: #{tpu_custom_call.1} parent=1 // pred_fallthru
      _
    // Predicated region
    $region82: #{tpu_custom_call.1} parent=1 // pred_check
      _
    $region83: #{tpu_custom_call.1} parent=1 // pred_check_branch
      %3839 = sbr.rel (0) target = $region85
    $region84: #{tpu_custom_call.1} parent=1 // pred_region
      %3841 = vsyncadd [#allocation20], 0
      %s3842 = sshll.u32 [#allocation19], 4
      %s3843 = int_to_ptr.vmem [resolvable:$true] %s3842
      %s3844 = sshll.u32 %s14, 4
      %s3845 = int_to_ptr.hbm [resolvable:$true] %s3844
      %3850 = dma.vmem_to_hbm [thread:$0]  %s3843, 512, %s3845, [#allocation20], 128, 128, 8
    $region85: #{tpu_custom_call.1} parent=1 // pred_fallthru
      _
    // Predicated region
    $region86: #{tpu_custom_call.1} parent=1 // pred_check
      _
    $region87: #{tpu_custom_call.1} parent=1 // pred_check_branch
      %3852 = sbr.rel (0) target = $region89
    $region88: #{tpu_custom_call.1} parent=1 // pred_region
      %3854 = dma.done [#allocation9], 128
    $region89: #{tpu_custom_call.1} parent=1 // pred_fallthru
      _
    // Predicated region
    $region90: #{tpu_custom_call.1} parent=1 // pred_check
      _
    $region91: #{tpu_custom_call.1} parent=1 // pred_check_branch
      %3856 = sbr.rel (0) target = $region93
    $region92: #{tpu_custom_call.1} parent=1 // pred_region
      %3858 = dma.done [#allocation20], 512
    $region93: #{tpu_custom_call.1} parent=1 // pred_fallthru
      _
    %3859 = vsyncpa [#allocation8], 1
    %3860 = vsyncpa [#allocation11], 1
    %3861 = vsyncpa [#allocation14], 1
    %3862 = vsyncpa [#allocation17], 1
    %3863 = vsyncpa [#allocation9], 1
    %3864 = vsyncpa [#allocation20], 1
  %3865 = vsyncmov [#allocation6]
  %s3866 = vpop.sfrf %3865
  %p3867 = scmp.eq.s32.totalorder %s3866, 0
  %p3868 = pneg %p3867
  %3870 = shalt.err (%p3868)
  %s3871 = scalar_lea.sflag [#allocation6], 1
  %3872 = vsyncmov %s3871
  %s3873 = vpop.sfrf %3872
  %p3874 = scmp.eq.s32.totalorder %s3873, 0
  %p3875 = pneg %p3874
  %3877 = shalt.err (%p3875)
  %s3878 = scalar_lea.sflag [#allocation6], 2
  %3879 = vsyncmov %s3878
  %s3880 = vpop.sfrf %3879
  %p3881 = scmp.eq.s32.totalorder %s3880, 0
  %p3882 = pneg %p3881
  %3884 = shalt.err (%p3882)

</llo_original>
